<compile_context>
chip_gen: v6e
topology: v6e:2x2x1
jax: 0.10.0
libtpu: 0.0.40
codegen_flags: <defaults>
</compile_context>

<pallas_src>
import functools

import numpy as np

import jax
import jax.numpy as jnp
from jax import lax
from jax.experimental import pallas as pl
from jax.experimental.pallas import tpu as pltpu

EPS = 1e-5


def _round_up(v, m):
    return -(-v // m) * m


def _is_bf16(dt):
    return jnp.dtype(dt) == jnp.dtype(jnp.bfloat16)


# --------------------------------------------------------------------------- #
# Kernels
# --------------------------------------------------------------------------- #
def conv1x1_bn_kernel(x_ref, w_ref, sc_ref, sh_ref, y_ref, stats_ref, *,
                      relu_in, m_total, mx_dtype):
    """(tm, Cin) @ (Cin, Cout) with the previous BN(+ReLU) fused into the input
    read and this conv's BN statistics fused into the epilogue."""
    tm = x_ref.shape[0]
    a = x_ref[...].astype(jnp.float32) * sc_ref[...] + sh_ref[...]
    if relu_in:
        a = jnp.maximum(a, 0.0)
    y = jnp.dot(a.astype(mx_dtype), w_ref[...],
                preferred_element_type=jnp.float32)
    y_ref[...] = y.astype(y_ref.dtype)
    # Masked per-block partial stats (rows past m_total belong to a padded tail
    # block and must not contribute).  Single merged (2, Cout) store.
    rows = pl.program_id(0) * tm + lax.broadcasted_iota(jnp.int32, (tm, 1), 0)
    ym = jnp.where(rows < m_total, y, 0.0)
    stats_ref[0] = jnp.concatenate(
        [jnp.sum(ym, axis=0, keepdims=True),
         jnp.sum(ym * ym, axis=0, keepdims=True)], axis=0)


def conv3x3_bn_kernel(x_ref, a_ref, g_ref, sc_ref, sh_ref, y_ref, stats_ref,
                      pad_ref, *, stride, mx_dtype):
    """3x3 conv (stride handled exactly) over the lane-flattened (W*Cin)
    layout, Nb images per grid step.

    x_ref : (Nb, H, W*Cin)       pre-BN activation of the previous conv
    a_ref : (3, W*Cin, Wo*Cout)  banded weight (kw taps + padding + stride)
    g_ref : (Wo*Cout, Cout)      0/1 channel-gather matrix for the stats epilogue
    """
    Nb, H, Kw = x_ref.shape
    Ho = y_ref.shape[1]
    WoC2 = y_ref.shape[2]

    s_acc = jnp.zeros((2, WoC2), jnp.float32)
    for b in range(Nb):
        # Fused BN + ReLU of the previous conv on the input read.
        x = x_ref[b].astype(jnp.float32)                        # (H, Kw)
        act = jnp.maximum(x * sc_ref[...] + sh_ref[...], 0.0)

        # 1-row top/bottom halo built in VMEM (no HBM pad pass).
        pad_ref[0:1, :] = jnp.zeros((1, Kw), jnp.float32)
        pad_ref[H + 1:H + 2, :] = jnp.zeros((1, Kw), jnp.float32)
        pad_ref[1:H + 1, :] = act

        acc = jnp.zeros((Ho, WoC2), jnp.float32)
        for kh in range(3):
            if stride == 1:
                strip = pad_ref[kh:kh + Ho, :]                  # contiguous rows
            else:
                # Single strided sublane read: only the strided output rows.
                strip = pad_ref[pl.ds(kh, Ho, stride=stride), :]
            acc = acc + jnp.dot(strip.astype(mx_dtype), a_ref[kh],
                                preferred_element_type=jnp.float32)

        y_ref[b] = acc.astype(y_ref.dtype)
        s_acc = s_acc + jnp.concatenate(
            [jnp.sum(acc, axis=0, keepdims=True),
             jnp.sum(acc * acc, axis=0, keepdims=True)], axis=0)

    # Per-channel sum / sum-of-squares of the pre-BN output: one matmul + one
    # (2, C2) store.
    stats_ref[0] = jnp.dot(s_acc, g_ref[...], preferred_element_type=jnp.float32)


def bn_add_relu_kernel(h_ref, i_ref, s3_ref, b3_ref, si_ref, bi_ref, o_ref):
    """BN3(h) + BN_idn(idn) + ReLU, row-tiled elementwise (lane-dense layout)."""
    h = h_ref[...].astype(jnp.float32)
    idn = i_ref[...].astype(jnp.float32)
    y = h * s3_ref[...] + b3_ref[...] + idn * si_ref[...] + bi_ref[...]
    o_ref[...] = jnp.maximum(y, 0.0).astype(o_ref.dtype)


# --------------------------------------------------------------------------- #
# pallas_call wrappers
# --------------------------------------------------------------------------- #
def conv1x1_bn(x2d, w, scale_in, shift_in, *, relu_in, out_dtype, tm_cap=2048):
    # TODO(synk): for Cout < 128, lane-flatten this conv too (block-diagonal
    # (W*Cin, W*Cout) weight) so the output store is lane-dense like the 3x3.
    M, Cin = x2d.shape
    Cout = w.shape[1]
    if scale_in is None:                       # raw input -> identity affine
        scale_in = jnp.ones((1, Cin), jnp.float32)
        shift_in = jnp.zeros((1, Cin), jnp.float32)
    bf16 = _is_bf16(out_dtype)
    mx_dtype = jnp.bfloat16 if bf16 else jnp.float32
    align = 16 if bf16 else 8
    # Big row tiles (amortize per-step overhead) but keep >= 2 grid steps
    # so both v7x TensorCores get work.
    tm = min(tm_cap, max(align, _round_up(-(-M // 2), align)))
    nb = pl.cdiv(M, tm)
    y, stats = pl.pallas_call(
        functools.partial(conv1x1_bn_kernel, relu_in=relu_in, m_total=M,
                          mx_dtype=mx_dtype),
        grid=(nb,),
        in_specs=[pl.BlockSpec((tm, Cin), lambda i: (i, 0)),
                  pl.BlockSpec((Cin, Cout), lambda i: (0, 0)),
                  pl.BlockSpec((1, Cin), lambda i: (0, 0)),
                  pl.BlockSpec((1, Cin), lambda i: (0, 0))],
        out_specs=(pl.BlockSpec((tm, Cout), lambda i: (i, 0)),
                   pl.BlockSpec((1, 2, Cout), lambda i: (i, 0, 0))),
        out_shape=(jax.ShapeDtypeStruct((M, Cout), out_dtype),
                   jax.ShapeDtypeStruct((nb, 2, Cout), jnp.float32)),
        compiler_params=pltpu.CompilerParams(
            dimension_semantics=("parallel",)),
    )(x2d, w.astype(mx_dtype), scale_in.astype(jnp.float32),
      shift_in.astype(jnp.float32))
    return y, stats


def conv3x3_bn(h1_3d, w2, scale1, shift1, H, W, C1, stride, *, out_dtype):
    N = h1_3d.shape[0]
    C2 = w2.shape[3]
    Ho = (H - 1) // stride + 1
    Wo = (W - 1) // stride + 1
    Kw = W * C1
    WoC2 = Wo * C2
    bf16 = _is_bf16(out_dtype)
    mx_dtype = jnp.bfloat16 if bf16 else jnp.float32

    # Banded weight over the flattened (w, c_in) lane axis: absorbs the 3 kw
    # taps, the left/right zero padding and the stride into one matmul per kh.
    # TODO(synk): for large W*C (real ResNet stages, esp. v7x 64MiB VMEM) tile
    # the Kw axis of A with an extra grid dim + VMEM f32 accumulator instead of
    # keeping the whole (3, Kw, WoC2) block resident.
    P = np.zeros((3, W, Wo), np.float32)
    for kw in range(3):
        for jo in range(Wo):
            j = jo * stride + kw - 1
            if 0 <= j < W:
                P[kw, j, jo] = 1.0
    A = jnp.einsum("qjo,kqcd->kjcod", jnp.asarray(P), w2)       # (3,W,C1,Wo,C2)
    A = A.reshape(3, Kw, WoC2).astype(mx_dtype)
    G = jnp.asarray(np.tile(np.eye(C2, dtype=np.float32), (Wo, 1)))  # (WoC2,C2)
    sc = jnp.tile(scale1.astype(jnp.float32), (1, W))           # (1, W*C1)
    sh = jnp.tile(shift1.astype(jnp.float32), (1, W))

    # Several images per grid step (amortize the fixed A/G fetch and per-step
    # overhead) while keeping >= 2 grid steps for v7x's two TensorCores and a
    # modest VMEM block.
    nb_img = 1
    for cand in range(N, 0, -1):
        if N % cand:
            continue
        if N > 1 and N // cand < 2:
            continue
        if cand * H * Kw * 4 > (2 << 20):
            continue
        nb_img = cand
        break
    grid_n = N // nb_img

    y, stats = pl.pallas_call(
        functools.partial(conv3x3_bn_kernel, stride=stride, mx_dtype=mx_dtype),
        grid=(grid_n,),
        in_specs=[pl.BlockSpec((nb_img, H, Kw), lambda n: (n, 0, 0)),
                  pl.BlockSpec((3, Kw, WoC2), lambda n: (0, 0, 0)),
                  pl.BlockSpec((WoC2, C2), lambda n: (0, 0)),
                  pl.BlockSpec((1, Kw), lambda n: (0, 0)),
                  pl.BlockSpec((1, Kw), lambda n: (0, 0))],
        out_specs=(pl.BlockSpec((nb_img, Ho, WoC2), lambda n: (n, 0, 0)),
                   pl.BlockSpec((1, 2, C2), lambda n: (n, 0, 0))),
        out_shape=(jax.ShapeDtypeStruct((N, Ho, WoC2), out_dtype),
                   jax.ShapeDtypeStruct((grid_n, 2, C2), jnp.float32)),
        scratch_shapes=[pltpu.VMEM((H + 2, Kw), jnp.float32)],   # halo'd slab
        compiler_params=pltpu.CompilerParams(
            dimension_semantics=("parallel",)),
    )(h1_3d, A, G, sc, sh)
    return y, stats


def bn_add_relu(h3, s3, b3, idn, si, bi, *, out_dtype):
    M, C = h3.shape
    total = M * C
    # Lane-dense layout: view the (M, C) tensors as (M*C/128, 128) rows (free,
    # contiguous row-major bytes) and tile the per-channel vectors to 128 lanes
    # -> unmasked full-lane stores.  Fallback keeps the (M, C) layout.
    lane_flat = (C < 128) and (128 % C == 0) and (total % 128 == 0)
    if lane_flat:
        reps = 128 // C
        h = h3.reshape(total // 128, 128)
        i2 = idn.reshape(total // 128, 128)
        s3u, b3u = jnp.tile(s3, (1, reps)), jnp.tile(b3, (1, reps))
        siu, biu = jnp.tile(si, (1, reps)), jnp.tile(bi, (1, reps))
    else:
        h, i2, s3u, b3u, siu, biu = h3, idn, s3, b3, si, bi
    R, Cw = h.shape
    align = 16 if _is_bf16(out_dtype) else 8
    tm = min(1024, max(align, _round_up(-(-R // 2), align)))
    nb = pl.cdiv(R, tm)
    out = pl.pallas_call(
        bn_add_relu_kernel,
        grid=(nb,),
        in_specs=[pl.BlockSpec((tm, Cw), lambda i: (i, 0)),
                  pl.BlockSpec((tm, Cw), lambda i: (i, 0)),
                  pl.BlockSpec((1, Cw), lambda i: (0, 0)),
                  pl.BlockSpec((1, Cw), lambda i: (0, 0)),
                  pl.BlockSpec((1, Cw), lambda i: (0, 0)),
                  pl.BlockSpec((1, Cw), lambda i: (0, 0))],
        out_specs=pl.BlockSpec((tm, Cw), lambda i: (i, 0)),
        out_shape=jax.ShapeDtypeStruct((R, Cw), out_dtype),
        input_output_aliases={0: 0},           # reuse h's buffer for the output
        compiler_params=pltpu.CompilerParams(
            dimension_semantics=("parallel",)),
    )(h, i2, s3u, b3u, siu, biu)
    return out.reshape(M, C)


def finalize_bn(partial_stats, count, gamma, beta):
    """Tiny (2,C) reduction of the per-block stats -> BN scale/shift."""
    s = jnp.sum(partial_stats, axis=0)                      # (2, C)
    mean = s[0] / count
    # Single-pass fused stats (E[x^2]-mean^2), f32 accumulation, clamped >= 0.
    # TODO(synk): switch to a shifted-sum / Welford accumulation for channels
    # with |mean| >> std (catastrophic-cancellation guard); same cost.
    var = jnp.maximum(s[1] / count - mean * mean, 0.0)
    scale = gamma.reshape(1, -1) * lax.rsqrt(var + EPS).reshape(1, -1)
    shift = beta.reshape(1, -1) - mean.reshape(1, -1) * scale
    return scale, shift


# --------------------------------------------------------------------------- #
# Forward pass
# --------------------------------------------------------------------------- #
@functools.partial(jax.jit,
                   static_argnames=("in_channel", "out_channel_3", "stride",
                                    "storage_dtype"))
def residual_layer_forward(params, x_nchw, *, in_channel, out_channel_3,
                           stride=1, storage_dtype=jnp.float32):
    x = jnp.transpose(x_nchw, (0, 2, 3, 1)).astype(storage_dtype)  # NCHW->NHWC
    N, H, W, Cin = x.shape
    C1 = params["w1"].shape[1]
    C2 = params["w2"].shape[3]
    C3 = params["w3"].shape[1]
    Ho = (H - 1) // stride + 1
    Wo = (W - 1) // stride + 1

    # ---- main branch --------------------------------------------------------
    h1, st1 = conv1x1_bn(x.reshape(-1, Cin), params["w1"], None, None,
                         relu_in=False, out_dtype=storage_dtype)
    sc1, sh1 = finalize_bn(st1, N * H * W, params["g1"], params["be1"])

    h2, st2 = conv3x3_bn(h1.reshape(N, H, W * C1), params["w2"], sc1, sh1,
                         H, W, C1, stride, out_dtype=storage_dtype)
    sc2, sh2 = finalize_bn(st2, N * Ho * Wo, params["g2"], params["be2"])

    h3, st3 = conv1x1_bn(h2.reshape(-1, C2), params["w3"], sc2, sh2,
                         relu_in=True, out_dtype=storage_dtype)
    sc3, sh3 = finalize_bn(st3, N * Ho * Wo, params["g3"], params["be3"])

    # ---- identity / downsample branch ---------------------------------------
    if stride != 1 or in_channel != out_channel_3:
        # TODO(synk): fuse the spatial subsample into the downsample conv's
        # index_map (today it is an extra XLA strided-slice HBM pass).
        xs = x[:, ::stride, ::stride, :] if stride != 1 else x
        idn, std = conv1x1_bn(xs.reshape(-1, Cin), params["wd"], None, None,
                              relu_in=False, out_dtype=storage_dtype)
        sci, shi = finalize_bn(std, N * Ho * Wo, params["gd"], params["bed"])
    else:
        idn = x.reshape(-1, C3)
        sci = jnp.ones((1, C3), jnp.float32)
        shi = jnp.zeros((1, C3), jnp.float32)

    # ---- BN3 + BN_downsample + residual add + ReLU (lane-dense, tiled) -------
    out = bn_add_relu(h3, sc3, sh3, idn, sci, shi, out_dtype=storage_dtype)
    out = out.reshape(N, Ho, Wo, C3)
    return jnp.transpose(out, (0, 3, 1, 2))                       # NHWC -> NCHW


# --------------------------------------------------------------------------- #
# Pure-JAX reference (keeps the conv biases; BN cancels them exactly)
# --------------------------------------------------------------------------- #
def _ref_bn(h, g, b, relu):
    mean = jnp.mean(h, axis=(0, 1, 2), keepdims=True)
    var = jnp.mean((h - mean) ** 2, axis=(0, 1, 2), keepdims=True)
    y = (h - mean) * lax.rsqrt(var + EPS) * g.reshape(1, 1, 1, -1) \
        + b.reshape(1, 1, 1, -1)
    return jnp.maximum(y, 0.0) if relu else y


def ref_forward(params, x_nchw, in_channel, out_channel_3, stride=1):
    x = jnp.transpose(x_nchw, (0, 2, 3, 1)).astype(jnp.float32)
    h = jnp.einsum("nhwc,cd->nhwd", x, params["w1"]) + params["b1"].reshape(1, 1, 1, -1)
    h = _ref_bn(h, params["g1"], params["be1"], True)
    h = lax.conv_general_dilated(h, params["w2"], (stride, stride),
                                 ((1, 1), (1, 1)),
                                 dimension_numbers=("NHWC", "HWIO", "NHWC"))
    h = h + params["b2"].reshape(1, 1, 1, -1)
    h = _ref_bn(h, params["g2"], params["be2"], True)
    h = jnp.einsum("nhwc,cd->nhwd", h, params["w3"]) + params["b3"].reshape(1, 1, 1, -1)
    h = _ref_bn(h, params["g3"], params["be3"], False)
    if stride != 1 or in_channel != out_channel_3:
        idn = x[:, ::stride, ::stride, :]
        idn = jnp.einsum("nhwc,cd->nhwd", idn, params["wd"]) + params["bd"].reshape(1, 1, 1, -1)
        idn = _ref_bn(idn, params["gd"], params["bed"], False)
    else:
        idn = x
    out = jnp.maximum(h + idn, 0.0)
    return jnp.transpose(out, (0, 3, 1, 2))


# --------------------------------------------------------------------------- #
# Parameter init (PyTorch-style)
# --------------------------------------------------------------------------- #
def init_params(key, cin, c1, c2, c3):
    ks = jax.random.split(key, 16)

    def u(k, shape, fan_in):
        bound = 1.0 / float(fan_in) ** 0.5
        return jax.random.uniform(k, shape, jnp.float32, -bound, bound)

    def bn(kg, kb, c):
        return (1.0 + 0.1 * jax.random.normal(kg, (1, c), jnp.float32),
                0.1 * jax.random.normal(kb, (1, c), jnp.float32))

    p = {}
    p["w1"], p["b1"] = u(ks[0], (cin, c1), cin), u(ks[1], (1, c1), cin)
    p["g1"], p["be1"] = bn(ks[2], ks[3], c1)
    p["w2"], p["b2"] = u(ks[4], (3, 3, c1, c2), 9 * c1), u(ks[5], (1, c2), 9 * c1)
    p["g2"], p["be2"] = bn(ks[6], ks[7], c2)
    p["w3"], p["b3"] = u(ks[8], (c2, c3), c2), u(ks[9], (1, c3), c2)
    p["g3"], p["be3"] = bn(ks[10], ks[11], c3)
    p["wd"], p["bd"] = u(ks[12], (cin, c3), cin), u(ks[13], (1, c3), cin)
    p["gd"], p["bed"] = bn(ks[14], ks[15], c3)
    return p


if __name__ == "__main__":
    key = jax.random.PRNGKey(0)
    kx, kp, kx2, kp2 = jax.random.split(key, 4)

    # Bottleneck config with downsample branch (in_channel != out_channel_3).
    in_channel, c1, c2, out_channel_3 = 4, 8, 8, 16
    params = init_params(kp, in_channel, c1, c2, out_channel_3)
    x = jax.random.normal(kx, (2, in_channel, 16, 16), jnp.float32)   # NCHW

    for stride in (1, 2):
        out = residual_layer_forward(params, x, in_channel=in_channel,
                                     out_channel_3=out_channel_3, stride=stride)
        out = jax.block_until_ready(out)
        ref = ref_forward(params, x, in_channel, out_channel_3, stride)
        assert out.shape == ref.shape, (out.shape, ref.shape)
        err = float(jnp.max(jnp.abs(out - ref)))
        assert err < 5e-2, f"stride={stride} f32 max abs err {err}"

    # Identity-branch config (in_channel == out_channel_3, stride 1).
    params2 = init_params(kp2, 16, 8, 8, 16)
    x2 = jax.random.normal(kx2, (2, 16, 16, 16), jnp.float32)
    out = jax.block_until_ready(
        residual_layer_forward(params2, x2, in_channel=16, out_channel_3=16,
                               stride=1))
    ref = ref_forward(params2, x2, 16, 16, 1)
    err = float(jnp.max(jnp.abs(out - ref)))
    assert err < 5e-2, f"identity-branch f32 max abs err {err}"

    # bf16 activation storage + bf16 MXU operands (v6e/v7x fast path).
    out_bf = residual_layer_forward(params, x, in_channel=in_channel,
                                    out_channel_3=out_channel_3, stride=2,
                                    storage_dtype=jnp.bfloat16)
    out_bf = jax.block_until_ready(out_bf)
    ref2 = ref_forward(params, x, in_channel, out_channel_3, 2)
    err = float(jnp.max(jnp.abs(out_bf.astype(jnp.float32) - ref2)))
    assert err < 4e-1, f"bf16 max abs err {err}"

    print("KERNEL_OK")
</pallas_src>

<mosaic_0001>
module attributes {stable_mosaic.version = 11 : i64} {
  func.func @conv1x1_bn_kernel(%arg0: i32, %arg1: memref<256x4xf32, #tpu.memory_space<vmem>>, %arg2: memref<4x16xf32, #tpu.memory_space<vmem>>, %arg3: memref<1x4xf32, #tpu.memory_space<vmem>>, %arg4: memref<1x4xf32, #tpu.memory_space<vmem>>, %arg5: memref<256x16xf32, #tpu.memory_space<vmem>>, %arg6: memref<1x2x16xf32, #tpu.memory_space<vmem>>) attributes {dimension_semantics = [#tpu.dimension_semantics<parallel>], iteration_bounds = array<i64: 2>, scalar_prefetch = 0 : i64, scratch_operands = 0 : i64, tpu.core_type = #tpu.core_type<tc>, window_params = [{transform_indices = @transform_0, window_bounds = array<i64: 256, 4>}, {pipeline_mode = #tpu.pipeline_mode<synchronous>, transform_indices = @transform_1, window_bounds = array<i64: 4, 16>}, {pipeline_mode = #tpu.pipeline_mode<synchronous>, transform_indices = @transform_2, window_bounds = array<i64: 1, 4>}, {pipeline_mode = #tpu.pipeline_mode<synchronous>, transform_indices = @transform_3, window_bounds = array<i64: 1, 4>}, {transform_indices = @transform_4, window_bounds = array<i64: 256, 16>}, {transform_indices = @transform_5, window_bounds = array<i64: 1, 2, 16>}]} {
    %c0 = arith.constant 0 : index
    %c0_0 = arith.constant 0 : index
    %0 = vector.load %arg1[%c0, %c0_0] : memref<256x4xf32, #tpu.memory_space<vmem>>, vector<256x4xf32>
    %c0_1 = arith.constant 0 : index
    %c0_2 = arith.constant 0 : index
    %1 = vector.load %arg3[%c0_1, %c0_2] : memref<1x4xf32, #tpu.memory_space<vmem>>, vector<1x4xf32>
    %2 = vector.broadcast %1 : vector<1x4xf32> to vector<256x4xf32>
    %3 = arith.mulf %0, %2 : vector<256x4xf32>
    %c0_3 = arith.constant 0 : index
    %c0_4 = arith.constant 0 : index
    %4 = vector.load %arg4[%c0_3, %c0_4] : memref<1x4xf32, #tpu.memory_space<vmem>>, vector<1x4xf32>
    %5 = vector.broadcast %4 : vector<1x4xf32> to vector<256x4xf32>
    %6 = arith.addf %3, %5 : vector<256x4xf32>
    %c0_5 = arith.constant 0 : index
    %c0_6 = arith.constant 0 : index
    %7 = vector.load %arg2[%c0_5, %c0_6] : memref<4x16xf32, #tpu.memory_space<vmem>>, vector<4x16xf32>
    %cst = arith.constant dense<0.000000e+00> : vector<256x16xf32>
    %8 = tpu.matmul %6, %7, %cst {dimension_numbers = #tpu.dot_dimension_numbers<[1], [0], [0], [1], [0, 0, 1, 1], [], []>} : vector<256x4xf32>, vector<4x16xf32>, vector<256x16xf32> -> vector<256x16xf32>
    %c0_7 = arith.constant 0 : index
    %c0_8 = arith.constant 0 : index
    %9 = vector.load %arg5[%c0_7, %c0_8] : memref<256x16xf32, #tpu.memory_space<vmem>>, vector<256x16xf32>
    tpu.vector_store %arg5[%c0_7, %c0_8], %8 {strides = array<i32>} : memref<256x16xf32, #tpu.memory_space<vmem>>, vector<256x16xf32>,
    %c256_i32 = arith.constant 256 : i32
    %10 = arith.muli %arg0, %c256_i32 : i32
    %11 = tpu.iota {dimensions = array<i32: 0>} : vector<256x1xi32>
    %12 = vector.broadcast %10 : i32 to vector<256x1xi32>
    %13 = arith.addi %12, %11 : vector<256x1xi32>
    %c512_i32 = arith.constant 512 : i32
    %14 = vector.broadcast %c512_i32 : i32 to vector<256x1xi32>
    %15 = arith.cmpi slt, %13, %14 : vector<256x1xi32>
    %cst_9 = arith.constant 0.000000e+00 : f32
    %16 = vector.shape_cast %15 : vector<256x1xi1> to vector<256x1xi1>
    %17 = vector.broadcast %16 : vector<256x1xi1> to vector<256x16xi1>
    %18 = vector.broadcast %cst_9 : f32 to vector<256x16xf32>
    %19 = arith.select %17, %8, %18 : vector<256x16xi1>, vector<256x16xf32>
    %cst_10 = arith.constant dense<0.000000e+00> : vector<16xf32>
    %20 = vector.multi_reduction <add>, %19, %cst_10 [0] : vector<256x16xf32> to vector<16xf32>
    %21 = vector.shape_cast %20 : vector<16xf32> to vector<1x16xf32>
    %22 = arith.mulf %19, %19 : vector<256x16xf32>
    %cst_11 = arith.constant dense<0.000000e+00> : vector<16xf32>
    %23 = vector.multi_reduction <add>, %22, %cst_11 [0] : vector<256x16xf32> to vector<16xf32>
    %24 = vector.shape_cast %23 : vector<16xf32> to vector<1x16xf32>
    %25 = tpu.concatenate %21, %24 in 0 : vector<1x16xf32>, vector<1x16xf32> -> vector<2x16xf32>
    %c0_12 = arith.constant 0 : index
    %c0_13 = arith.constant 0 : index
    %c0_14 = arith.constant 0 : index
    %26 = vector.load %arg6[%c0_12, %c0_13, %c0_14] : memref<1x2x16xf32, #tpu.memory_space<vmem>>, vector<1x2x16xf32>
    %27 = vector.shape_cast %26 : vector<1x2x16xf32> to vector<2x16xf32>
    %28 = vector.shape_cast %25 : vector<2x16xf32> to vector<1x2x16xf32>
    tpu.vector_store %arg6[%c0_12, %c0_13, %c0_14], %28 {strides = array<i32>} : memref<1x2x16xf32, #tpu.memory_space<vmem>>, vector<1x2x16xf32>,
    return
  }
  func.func @transform_0(%arg0: i32) -> (i32, i32) {
    %c0_i32 = arith.constant 0 : i32
    %c0_i32_0 = arith.constant 0 : i32
    return %arg0, %c0_i32 : i32, i32
  }
  func.func @transform_1(%arg0: i32) -> (i32, i32) {
    %c0_i32 = arith.constant 0 : i32
    %c0_i32_0 = arith.constant 0 : i32
    %c0_i32_1 = arith.constant 0 : i32
    return %c0_i32, %c0_i32_0 : i32, i32
  }
  func.func @transform_2(%arg0: i32) -> (i32, i32) {
    %c0_i32 = arith.constant 0 : i32
    %c0_i32_0 = arith.constant 0 : i32
    %c0_i32_1 = arith.constant 0 : i32
    return %c0_i32, %c0_i32_0 : i32, i32
  }
  func.func @transform_3(%arg0: i32) -> (i32, i32) {
    %c0_i32 = arith.constant 0 : i32
    %c0_i32_0 = arith.constant 0 : i32
    %c0_i32_1 = arith.constant 0 : i32
    return %c0_i32, %c0_i32_0 : i32, i32
  }
  func.func @transform_4(%arg0: i32) -> (i32, i32) {
    %c0_i32 = arith.constant 0 : i32
    %c0_i32_0 = arith.constant 0 : i32
    return %arg0, %c0_i32 : i32, i32
  }
  func.func @transform_5(%arg0: i32) -> (i32, i32, i32) {
    %c0_i32 = arith.constant 0 : i32
    %c0_i32_0 = arith.constant 0 : i32
    %c0_i32_1 = arith.constant 0 : i32
    return %arg0, %c0_i32, %c0_i32_0 : i32, i32, i32
  }
}

module attributes {stable_mosaic.version = 11 : i64} {
  func.func @conv1x1_bn_kernel(%arg0: i32, %arg1: memref<256x4xf32, #tpu.memory_space<vmem>>, %arg2: memref<4x8xf32, #tpu.memory_space<vmem>>, %arg3: memref<1x4xf32, #tpu.memory_space<vmem>>, %arg4: memref<1x4xf32, #tpu.memory_space<vmem>>, %arg5: memref<256x8xf32, #tpu.memory_space<vmem>>, %arg6: memref<1x2x8xf32, #tpu.memory_space<vmem>>) attributes {dimension_semantics = [#tpu.dimension_semantics<parallel>], iteration_bounds = array<i64: 2>, scalar_prefetch = 0 : i64, scratch_operands = 0 : i64, tpu.core_type = #tpu.core_type<tc>, window_params = [{transform_indices = @transform_0, window_bounds = array<i64: 256, 4>}, {pipeline_mode = #tpu.pipeline_mode<synchronous>, transform_indices = @transform_1, window_bounds = array<i64: 4, 8>}, {pipeline_mode = #tpu.pipeline_mode<synchronous>, transform_indices = @transform_2, window_bounds = array<i64: 1, 4>}, {pipeline_mode = #tpu.pipeline_mode<synchronous>, transform_indices = @transform_3, window_bounds = array<i64: 1, 4>}, {transform_indices = @transform_4, window_bounds = array<i64: 256, 8>}, {transform_indices = @transform_5, window_bounds = array<i64: 1, 2, 8>}]} {
    %c0 = arith.constant 0 : index
    %c0_0 = arith.constant 0 : index
    %0 = vector.load %arg1[%c0, %c0_0] : memref<256x4xf32, #tpu.memory_space<vmem>>, vector<256x4xf32>
    %c0_1 = arith.constant 0 : index
    %c0_2 = arith.constant 0 : index
    %1 = vector.load %arg3[%c0_1, %c0_2] : memref<1x4xf32, #tpu.memory_space<vmem>>, vector<1x4xf32>
    %2 = vector.broadcast %1 : vector<1x4xf32> to vector<256x4xf32>
    %3 = arith.mulf %0, %2 : vector<256x4xf32>
    %c0_3 = arith.constant 0 : index
    %c0_4 = arith.constant 0 : index
    %4 = vector.load %arg4[%c0_3, %c0_4] : memref<1x4xf32, #tpu.memory_space<vmem>>, vector<1x4xf32>
    %5 = vector.broadcast %4 : vector<1x4xf32> to vector<256x4xf32>
    %6 = arith.addf %3, %5 : vector<256x4xf32>
    %c0_5 = arith.constant 0 : index
    %c0_6 = arith.constant 0 : index
    %7 = vector.load %arg2[%c0_5, %c0_6] : memref<4x8xf32, #tpu.memory_space<vmem>>, vector<4x8xf32>
    %cst = arith.constant dense<0.000000e+00> : vector<256x8xf32>
    %8 = tpu.matmul %6, %7, %cst {dimension_numbers = #tpu.dot_dimension_numbers<[1], [0], [0], [1], [0, 0, 1, 1], [], []>} : vector<256x4xf32>, vector<4x8xf32>, vector<256x8xf32> -> vector<256x8xf32>
    %c0_7 = arith.constant 0 : index
    %c0_8 = arith.constant 0 : index
    %9 = vector.load %arg5[%c0_7, %c0_8] : memref<256x8xf32, #tpu.memory_space<vmem>>, vector<256x8xf32>
    tpu.vector_store %arg5[%c0_7, %c0_8], %8 {strides = array<i32>} : memref<256x8xf32, #tpu.memory_space<vmem>>, vector<256x8xf32>,
    %c256_i32 = arith.constant 256 : i32
    %10 = arith.muli %arg0, %c256_i32 : i32
    %11 = tpu.iota {dimensions = array<i32: 0>} : vector<256x1xi32>
    %12 = vector.broadcast %10 : i32 to vector<256x1xi32>
    %13 = arith.addi %12, %11 : vector<256x1xi32>
    %c512_i32 = arith.constant 512 : i32
    %14 = vector.broadcast %c512_i32 : i32 to vector<256x1xi32>
    %15 = arith.cmpi slt, %13, %14 : vector<256x1xi32>
    %cst_9 = arith.constant 0.000000e+00 : f32
    %16 = vector.shape_cast %15 : vector<256x1xi1> to vector<256x1xi1>
    %17 = vector.broadcast %16 : vector<256x1xi1> to vector<256x8xi1>
    %18 = vector.broadcast %cst_9 : f32 to vector<256x8xf32>
    %19 = arith.select %17, %8, %18 : vector<256x8xi1>, vector<256x8xf32>
    %cst_10 = arith.constant dense<0.000000e+00> : vector<8xf32>
    %20 = vector.multi_reduction <add>, %19, %cst_10 [0] : vector<256x8xf32> to vector<8xf32>
    %21 = vector.shape_cast %20 : vector<8xf32> to vector<1x8xf32>
    %22 = arith.mulf %19, %19 : vector<256x8xf32>
    %cst_11 = arith.constant dense<0.000000e+00> : vector<8xf32>
    %23 = vector.multi_reduction <add>, %22, %cst_11 [0] : vector<256x8xf32> to vector<8xf32>
    %24 = vector.shape_cast %23 : vector<8xf32> to vector<1x8xf32>
    %25 = tpu.concatenate %21, %24 in 0 : vector<1x8xf32>, vector<1x8xf32> -> vector<2x8xf32>
    %c0_12 = arith.constant 0 : index
    %c0_13 = arith.constant 0 : index
    %c0_14 = arith.constant 0 : index
    %26 = vector.load %arg6[%c0_12, %c0_13, %c0_14] : memref<1x2x8xf32, #tpu.memory_space<vmem>>, vector<1x2x8xf32>
    %27 = vector.shape_cast %26 : vector<1x2x8xf32> to vector<2x8xf32>
    %28 = vector.shape_cast %25 : vector<2x8xf32> to vector<1x2x8xf32>
    tpu.vector_store %arg6[%c0_12, %c0_13, %c0_14], %28 {strides = array<i32>} : memref<1x2x8xf32, #tpu.memory_space<vmem>>, vector<1x2x8xf32>,
    return
  }
  func.func @transform_0(%arg0: i32) -> (i32, i32) {
    %c0_i32 = arith.constant 0 : i32
    %c0_i32_0 = arith.constant 0 : i32
    return %arg0, %c0_i32 : i32, i32
  }
  func.func @transform_1(%arg0: i32) -> (i32, i32) {
    %c0_i32 = arith.constant 0 : i32
    %c0_i32_0 = arith.constant 0 : i32
    %c0_i32_1 = arith.constant 0 : i32
    return %c0_i32, %c0_i32_0 : i32, i32
  }
  func.func @transform_2(%arg0: i32) -> (i32, i32) {
    %c0_i32 = arith.constant 0 : i32
    %c0_i32_0 = arith.constant 0 : i32
    %c0_i32_1 = arith.constant 0 : i32
    return %c0_i32, %c0_i32_0 : i32, i32
  }
  func.func @transform_3(%arg0: i32) -> (i32, i32) {
    %c0_i32 = arith.constant 0 : i32
    %c0_i32_0 = arith.constant 0 : i32
    %c0_i32_1 = arith.constant 0 : i32
    return %c0_i32, %c0_i32_0 : i32, i32
  }
  func.func @transform_4(%arg0: i32) -> (i32, i32) {
    %c0_i32 = arith.constant 0 : i32
    %c0_i32_0 = arith.constant 0 : i32
    return %arg0, %c0_i32 : i32, i32
  }
  func.func @transform_5(%arg0: i32) -> (i32, i32, i32) {
    %c0_i32 = arith.constant 0 : i32
    %c0_i32_0 = arith.constant 0 : i32
    %c0_i32_1 = arith.constant 0 : i32
    return %arg0, %c0_i32, %c0_i32_0 : i32, i32, i32
  }
}

module attributes {stable_mosaic.version = 11 : i64} {
  func.func @conv3x3_bn_kernel(%arg0: i32, %arg1: memref<1x16x128xf32, #tpu.memory_space<vmem>>, %arg2: memref<3x128x128xf32, #tpu.memory_space<vmem>>, %arg3: memref<128x8xf32, #tpu.memory_space<vmem>>, %arg4: memref<1x128xf32, #tpu.memory_space<vmem>>, %arg5: memref<1x128xf32, #tpu.memory_space<vmem>>, %arg6: memref<1x16x128xf32, #tpu.memory_space<vmem>>, %arg7: memref<1x2x8xf32, #tpu.memory_space<vmem>>, %arg8: memref<18x128xf32, #tpu.memory_space<vmem>>) attributes {dimension_semantics = [#tpu.dimension_semantics<parallel>], iteration_bounds = array<i64: 2>, scalar_prefetch = 0 : i64, scratch_operands = 1 : i64, tpu.core_type = #tpu.core_type<tc>, window_params = [{transform_indices = @transform_0, window_bounds = array<i64: 1, 16, 128>}, {pipeline_mode = #tpu.pipeline_mode<synchronous>, transform_indices = @transform_1, window_bounds = array<i64: 3, 128, 128>}, {pipeline_mode = #tpu.pipeline_mode<synchronous>, transform_indices = @transform_2, window_bounds = array<i64: 128, 8>}, {pipeline_mode = #tpu.pipeline_mode<synchronous>, transform_indices = @transform_3, window_bounds = array<i64: 1, 128>}, {pipeline_mode = #tpu.pipeline_mode<synchronous>, transform_indices = @transform_4, window_bounds = array<i64: 1, 128>}, {transform_indices = @transform_5, window_bounds = array<i64: 1, 16, 128>}, {transform_indices = @transform_6, window_bounds = array<i64: 1, 2, 8>}]} {
    %cst = arith.constant 0.000000e+00 : f32
    %0 = vector.broadcast %cst : f32 to vector<2x128xf32>
    %c0 = arith.constant 0 : index
    %c0_0 = arith.constant 0 : index
    %c0_1 = arith.constant 0 : index
    %1 = vector.load %arg1[%c0, %c0_0, %c0_1] : memref<1x16x128xf32, #tpu.memory_space<vmem>>, vector<1x16x128xf32>
    %2 = vector.shape_cast %1 : vector<1x16x128xf32> to vector<16x128xf32>
    %c0_2 = arith.constant 0 : index
    %c0_3 = arith.constant 0 : index
    %3 = vector.load %arg4[%c0_2, %c0_3] : memref<1x128xf32, #tpu.memory_space<vmem>>, vector<1x128xf32>
    %4 = vector.broadcast %3 : vector<1x128xf32> to vector<16x128xf32>
    %5 = arith.mulf %2, %4 : vector<16x128xf32>
    %c0_4 = arith.constant 0 : index
    %c0_5 = arith.constant 0 : index
    %6 = vector.load %arg5[%c0_4, %c0_5] : memref<1x128xf32, #tpu.memory_space<vmem>>, vector<1x128xf32>
    %7 = vector.broadcast %6 : vector<1x128xf32> to vector<16x128xf32>
    %8 = arith.addf %5, %7 : vector<16x128xf32>
    %cst_6 = arith.constant 0.000000e+00 : f32
    %9 = vector.broadcast %cst_6 : f32 to vector<16x128xf32>
    %10 = arith.maximumf %8, %9 : vector<16x128xf32>
    %cst_7 = arith.constant 0.000000e+00 : f32
    %11 = vector.broadcast %cst_7 : f32 to vector<1x128xf32>
    %c0_8 = arith.constant 0 : index
    %c0_9 = arith.constant 0 : index
    %12 = vector.load %arg8[%c0_8, %c0_9] : memref<18x128xf32, #tpu.memory_space<vmem>>, vector<1x128xf32>
    tpu.vector_store %arg8[%c0_8, %c0_9], %11 {strides = array<i32>} : memref<18x128xf32, #tpu.memory_space<vmem>>, vector<1x128xf32>,
    %cst_10 = arith.constant 0.000000e+00 : f32
    %13 = vector.broadcast %cst_10 : f32 to vector<1x128xf32>
    %c17 = arith.constant 17 : index
    %c0_11 = arith.constant 0 : index
    %14 = vector.load %arg8[%c17, %c0_11] : memref<18x128xf32, #tpu.memory_space<vmem>>, vector<1x128xf32>
    tpu.vector_store %arg8[%c17, %c0_11], %13 {strides = array<i32>} : memref<18x128xf32, #tpu.memory_space<vmem>>, vector<1x128xf32>,
    %c1 = arith.constant 1 : index
    %c0_12 = arith.constant 0 : index
    %15 = vector.load %arg8[%c1, %c0_12] : memref<18x128xf32, #tpu.memory_space<vmem>>, vector<16x128xf32>
    tpu.vector_store %arg8[%c1, %c0_12], %10 {strides = array<i32>} : memref<18x128xf32, #tpu.memory_space<vmem>>, vector<16x128xf32>,
    %cst_13 = arith.constant 0.000000e+00 : f32
    %16 = vector.broadcast %cst_13 : f32 to vector<16x128xf32>
    %c0_14 = arith.constant 0 : index
    %c0_15 = arith.constant 0 : index
    %17 = vector.load %arg8[%c0_14, %c0_15] : memref<18x128xf32, #tpu.memory_space<vmem>>, vector<16x128xf32>
    %c0_16 = arith.constant 0 : index
    %c0_17 = arith.constant 0 : index
    %c0_18 = arith.constant 0 : index
    %18 = vector.load %arg2[%c0_16, %c0_17, %c0_18] : memref<3x128x128xf32, #tpu.memory_space<vmem>>, vector<1x128x128xf32>
    %19 = vector.shape_cast %18 : vector<1x128x128xf32> to vector<128x128xf32>
    %cst_19 = arith.constant dense<0.000000e+00> : vector<16x128xf32>
    %20 = tpu.matmul %17, %19, %cst_19 {dimension_numbers = #tpu.dot_dimension_numbers<[1], [0], [0], [1], [0, 0, 1, 1], [], []>} : vector<16x128xf32>, vector<128x128xf32>, vector<16x128xf32> -> vector<16x128xf32>
    %21 = arith.addf %16, %20 : vector<16x128xf32>
    %c1_20 = arith.constant 1 : index
    %c0_21 = arith.constant 0 : index
    %22 = vector.load %arg8[%c1_20, %c0_21] : memref<18x128xf32, #tpu.memory_space<vmem>>, vector<16x128xf32>
    %c1_22 = arith.constant 1 : index
    %c0_23 = arith.constant 0 : index
    %c0_24 = arith.constant 0 : index
    %23 = vector.load %arg2[%c1_22, %c0_23, %c0_24] : memref<3x128x128xf32, #tpu.memory_space<vmem>>, vector<1x128x128xf32>
    %24 = vector.shape_cast %23 : vector<1x128x128xf32> to vector<128x128xf32>
    %cst_25 = arith.constant dense<0.000000e+00> : vector<16x128xf32>
    %25 = tpu.matmul %22, %24, %cst_25 {dimension_numbers = #tpu.dot_dimension_numbers<[1], [0], [0], [1], [0, 0, 1, 1], [], []>} : vector<16x128xf32>, vector<128x128xf32>, vector<16x128xf32> -> vector<16x128xf32>
    %26 = arith.addf %21, %25 : vector<16x128xf32>
    %c2 = arith.constant 2 : index
    %c0_26 = arith.constant 0 : index
    %27 = vector.load %arg8[%c2, %c0_26] : memref<18x128xf32, #tpu.memory_space<vmem>>, vector<16x128xf32>
    %c2_27 = arith.constant 2 : index
    %c0_28 = arith.constant 0 : index
    %c0_29 = arith.constant 0 : index
    %28 = vector.load %arg2[%c2_27, %c0_28, %c0_29] : memref<3x128x128xf32, #tpu.memory_space<vmem>>, vector<1x128x128xf32>
    %29 = vector.shape_cast %28 : vector<1x128x128xf32> to vector<128x128xf32>
    %cst_30 = arith.constant dense<0.000000e+00> : vector<16x128xf32>
    %30 = tpu.matmul %27, %29, %cst_30 {dimension_numbers = #tpu.dot_dimension_numbers<[1], [0], [0], [1], [0, 0, 1, 1], [], []>} : vector<16x128xf32>, vector<128x128xf32>, vector<16x128xf32> -> vector<16x128xf32>
    %31 = arith.addf %26, %30 : vector<16x128xf32>
    %c0_31 = arith.constant 0 : index
    %c0_32 = arith.constant 0 : index
    %c0_33 = arith.constant 0 : index
    %32 = vector.load %arg6[%c0_31, %c0_32, %c0_33] : memref<1x16x128xf32, #tpu.memory_space<vmem>>, vector<1x16x128xf32>
    %33 = vector.shape_cast %32 : vector<1x16x128xf32> to vector<16x128xf32>
    %34 = vector.shape_cast %31 : vector<16x128xf32> to vector<1x16x128xf32>
    tpu.vector_store %arg6[%c0_31, %c0_32, %c0_33], %34 {strides = array<i32>} : memref<1x16x128xf32, #tpu.memory_space<vmem>>, vector<1x16x128xf32>,
    %cst_34 = arith.constant dense<0.000000e+00> : vector<128xf32>
    %35 = vector.multi_reduction <add>, %31, %cst_34 [0] : vector<16x128xf32> to vector<128xf32>
    %36 = vector.shape_cast %35 : vector<128xf32> to vector<1x128xf32>
    %37 = arith.mulf %31, %31 : vector<16x128xf32>
    %cst_35 = arith.constant dense<0.000000e+00> : vector<128xf32>
    %38 = vector.multi_reduction <add>, %37, %cst_35 [0] : vector<16x128xf32> to vector<128xf32>
    %39 = vector.shape_cast %38 : vector<128xf32> to vector<1x128xf32>
    %40 = tpu.concatenate %36, %39 in 0 : vector<1x128xf32>, vector<1x128xf32> -> vector<2x128xf32>
    %41 = arith.addf %0, %40 : vector<2x128xf32>
    %c0_36 = arith.constant 0 : index
    %c0_37 = arith.constant 0 : index
    %42 = vector.load %arg3[%c0_36, %c0_37] : memref<128x8xf32, #tpu.memory_space<vmem>>, vector<128x8xf32>
    %cst_38 = arith.constant dense<0.000000e+00> : vector<2x8xf32>
    %43 = tpu.matmul %41, %42, %cst_38 {dimension_numbers = #tpu.dot_dimension_numbers<[1], [0], [0], [1], [0, 0, 1, 1], [], []>} : vector<2x128xf32>, vector<128x8xf32>, vector<2x8xf32> -> vector<2x8xf32>
    %c0_39 = arith.constant 0 : index
    %c0_40 = arith.constant 0 : index
    %c0_41 = arith.constant 0 : index
    %44 = vector.load %arg7[%c0_39, %c0_40, %c0_41] : memref<1x2x8xf32, #tpu.memory_space<vmem>>, vector<1x2x8xf32>
    %45 = vector.shape_cast %44 : vector<1x2x8xf32> to vector<2x8xf32>
    %46 = vector.shape_cast %43 : vector<2x8xf32> to vector<1x2x8xf32>
    tpu.vector_store %arg7[%c0_39, %c0_40, %c0_41], %46 {strides = array<i32>} : memref<1x2x8xf32, #tpu.memory_space<vmem>>, vector<1x2x8xf32>,
    return
  }
  func.func @transform_0(%arg0: i32) -> (i32, i32, i32) {
    %c0_i32 = arith.constant 0 : i32
    %c0_i32_0 = arith.constant 0 : i32
    %c0_i32_1 = arith.constant 0 : i32
    return %arg0, %c0_i32, %c0_i32_0 : i32, i32, i32
  }
  func.func @transform_1(%arg0: i32) -> (i32, i32, i32) {
    %c0_i32 = arith.constant 0 : i32
    %c0_i32_0 = arith.constant 0 : i32
    %c0_i32_1 = arith.constant 0 : i32
    %c0_i32_2 = arith.constant 0 : i32
    return %c0_i32, %c0_i32_0, %c0_i32_1 : i32, i32, i32
  }
  func.func @transform_2(%arg0: i32) -> (i32, i32) {
    %c0_i32 = arith.constant 0 : i32
    %c0_i32_0 = arith.constant 0 : i32
    %c0_i32_1 = arith.constant 0 : i32
    return %c0_i32, %c0_i32_0 : i32, i32
  }
  func.func @transform_3(%arg0: i32) -> (i32, i32) {
    %c0_i32 = arith.constant 0 : i32
    %c0_i32_0 = arith.constant 0 : i32
    %c0_i32_1 = arith.constant 0 : i32
    return %c0_i32, %c0_i32_0 : i32, i32
  }
  func.func @transform_4(%arg0: i32) -> (i32, i32) {
    %c0_i32 = arith.constant 0 : i32
    %c0_i32_0 = arith.constant 0 : i32
    %c0_i32_1 = arith.constant 0 : i32
    return %c0_i32, %c0_i32_0 : i32, i32
  }
  func.func @transform_5(%arg0: i32) -> (i32, i32, i32) {
    %c0_i32 = arith.constant 0 : i32
    %c0_i32_0 = arith.constant 0 : i32
    %c0_i32_1 = arith.constant 0 : i32
    return %arg0, %c0_i32, %c0_i32_0 : i32, i32, i32
  }
  func.func @transform_6(%arg0: i32) -> (i32, i32, i32) {
    %c0_i32 = arith.constant 0 : i32
    %c0_i32_0 = arith.constant 0 : i32
    %c0_i32_1 = arith.constant 0 : i32
    return %arg0, %c0_i32, %c0_i32_0 : i32, i32, i32
  }
}

module attributes {stable_mosaic.version = 11 : i64} {
  func.func @conv1x1_bn_kernel(%arg0: i32, %arg1: memref<256x8xf32, #tpu.memory_space<vmem>>, %arg2: memref<8x16xf32, #tpu.memory_space<vmem>>, %arg3: memref<1x8xf32, #tpu.memory_space<vmem>>, %arg4: memref<1x8xf32, #tpu.memory_space<vmem>>, %arg5: memref<256x16xf32, #tpu.memory_space<vmem>>, %arg6: memref<1x2x16xf32, #tpu.memory_space<vmem>>) attributes {dimension_semantics = [#tpu.dimension_semantics<parallel>], iteration_bounds = array<i64: 2>, scalar_prefetch = 0 : i64, scratch_operands = 0 : i64, tpu.core_type = #tpu.core_type<tc>, window_params = [{transform_indices = @transform_0, window_bounds = array<i64: 256, 8>}, {pipeline_mode = #tpu.pipeline_mode<synchronous>, transform_indices = @transform_1, window_bounds = array<i64: 8, 16>}, {pipeline_mode = #tpu.pipeline_mode<synchronous>, transform_indices = @transform_2, window_bounds = array<i64: 1, 8>}, {pipeline_mode = #tpu.pipeline_mode<synchronous>, transform_indices = @transform_3, window_bounds = array<i64: 1, 8>}, {transform_indices = @transform_4, window_bounds = array<i64: 256, 16>}, {transform_indices = @transform_5, window_bounds = array<i64: 1, 2, 16>}]} {
    %c0 = arith.constant 0 : index
    %c0_0 = arith.constant 0 : index
    %0 = vector.load %arg1[%c0, %c0_0] : memref<256x8xf32, #tpu.memory_space<vmem>>, vector<256x8xf32>
    %c0_1 = arith.constant 0 : index
    %c0_2 = arith.constant 0 : index
    %1 = vector.load %arg3[%c0_1, %c0_2] : memref<1x8xf32, #tpu.memory_space<vmem>>, vector<1x8xf32>
    %2 = vector.broadcast %1 : vector<1x8xf32> to vector<256x8xf32>
    %3 = arith.mulf %0, %2 : vector<256x8xf32>
    %c0_3 = arith.constant 0 : index
    %c0_4 = arith.constant 0 : index
    %4 = vector.load %arg4[%c0_3, %c0_4] : memref<1x8xf32, #tpu.memory_space<vmem>>, vector<1x8xf32>
    %5 = vector.broadcast %4 : vector<1x8xf32> to vector<256x8xf32>
    %6 = arith.addf %3, %5 : vector<256x8xf32>
    %cst = arith.constant 0.000000e+00 : f32
    %7 = vector.broadcast %cst : f32 to vector<256x8xf32>
    %8 = arith.maximumf %6, %7 : vector<256x8xf32>
    %c0_5 = arith.constant 0 : index
    %c0_6 = arith.constant 0 : index
    %9 = vector.load %arg2[%c0_5, %c0_6] : memref<8x16xf32, #tpu.memory_space<vmem>>, vector<8x16xf32>
    %cst_7 = arith.constant dense<0.000000e+00> : vector<256x16xf32>
    %10 = tpu.matmul %8, %9, %cst_7 {dimension_numbers = #tpu.dot_dimension_numbers<[1], [0], [0], [1], [0, 0, 1, 1], [], []>} : vector<256x8xf32>, vector<8x16xf32>, vector<256x16xf32> -> vector<256x16xf32>
    %c0_8 = arith.constant 0 : index
    %c0_9 = arith.constant 0 : index
    %11 = vector.load %arg5[%c0_8, %c0_9] : memref<256x16xf32, #tpu.memory_space<vmem>>, vector<256x16xf32>
    tpu.vector_store %arg5[%c0_8, %c0_9], %10 {strides = array<i32>} : memref<256x16xf32, #tpu.memory_space<vmem>>, vector<256x16xf32>,
    %c256_i32 = arith.constant 256 : i32
    %12 = arith.muli %arg0, %c256_i32 : i32
    %13 = tpu.iota {dimensions = array<i32: 0>} : vector<256x1xi32>
    %14 = vector.broadcast %12 : i32 to vector<256x1xi32>
    %15 = arith.addi %14, %13 : vector<256x1xi32>
    %c512_i32 = arith.constant 512 : i32
    %16 = vector.broadcast %c512_i32 : i32 to vector<256x1xi32>
    %17 = arith.cmpi slt, %15, %16 : vector<256x1xi32>
    %cst_10 = arith.constant 0.000000e+00 : f32
    %18 = vector.shape_cast %17 : vector<256x1xi1> to vector<256x1xi1>
    %19 = vector.broadcast %18 : vector<256x1xi1> to vector<256x16xi1>
    %20 = vector.broadcast %cst_10 : f32 to vector<256x16xf32>
    %21 = arith.select %19, %10, %20 : vector<256x16xi1>, vector<256x16xf32>
    %cst_11 = arith.constant dense<0.000000e+00> : vector<16xf32>
    %22 = vector.multi_reduction <add>, %21, %cst_11 [0] : vector<256x16xf32> to vector<16xf32>
    %23 = vector.shape_cast %22 : vector<16xf32> to vector<1x16xf32>
    %24 = arith.mulf %21, %21 : vector<256x16xf32>
    %cst_12 = arith.constant dense<0.000000e+00> : vector<16xf32>
    %25 = vector.multi_reduction <add>, %24, %cst_12 [0] : vector<256x16xf32> to vector<16xf32>
    %26 = vector.shape_cast %25 : vector<16xf32> to vector<1x16xf32>
    %27 = tpu.concatenate %23, %26 in 0 : vector<1x16xf32>, vector<1x16xf32> -> vector<2x16xf32>
    %c0_13 = arith.constant 0 : index
    %c0_14 = arith.constant 0 : index
    %c0_15 = arith.constant 0 : index
    %28 = vector.load %arg6[%c0_13, %c0_14, %c0_15] : memref<1x2x16xf32, #tpu.memory_space<vmem>>, vector<1x2x16xf32>
    %29 = vector.shape_cast %28 : vector<1x2x16xf32> to vector<2x16xf32>
    %30 = vector.shape_cast %27 : vector<2x16xf32> to vector<1x2x16xf32>
    tpu.vector_store %arg6[%c0_13, %c0_14, %c0_15], %30 {strides = array<i32>} : memref<1x2x16xf32, #tpu.memory_space<vmem>>, vector<1x2x16xf32>,
    return
  }
  func.func @transform_0(%arg0: i32) -> (i32, i32) {
    %c0_i32 = arith.constant 0 : i32
    %c0_i32_0 = arith.constant 0 : i32
    return %arg0, %c0_i32 : i32, i32
  }
  func.func @transform_1(%arg0: i32) -> (i32, i32) {
    %c0_i32 = arith.constant 0 : i32
    %c0_i32_0 = arith.constant 0 : i32
    %c0_i32_1 = arith.constant 0 : i32
    return %c0_i32, %c0_i32_0 : i32, i32
  }
  func.func @transform_2(%arg0: i32) -> (i32, i32) {
    %c0_i32 = arith.constant 0 : i32
    %c0_i32_0 = arith.constant 0 : i32
    %c0_i32_1 = arith.constant 0 : i32
    return %c0_i32, %c0_i32_0 : i32, i32
  }
  func.func @transform_3(%arg0: i32) -> (i32, i32) {
    %c0_i32 = arith.constant 0 : i32
    %c0_i32_0 = arith.constant 0 : i32
    %c0_i32_1 = arith.constant 0 : i32
    return %c0_i32, %c0_i32_0 : i32, i32
  }
  func.func @transform_4(%arg0: i32) -> (i32, i32) {
    %c0_i32 = arith.constant 0 : i32
    %c0_i32_0 = arith.constant 0 : i32
    return %arg0, %c0_i32 : i32, i32
  }
  func.func @transform_5(%arg0: i32) -> (i32, i32, i32) {
    %c0_i32 = arith.constant 0 : i32
    %c0_i32_0 = arith.constant 0 : i32
    %c0_i32_1 = arith.constant 0 : i32
    return %arg0, %c0_i32, %c0_i32_0 : i32, i32, i32
  }
}

module attributes {stable_mosaic.version = 11 : i64} {
  func.func @bn_add_relu_kernel(%arg0: i32, %arg1: memref<32x128xf32, #tpu.memory_space<vmem>>, %arg2: memref<32x128xf32, #tpu.memory_space<vmem>>, %arg3: memref<1x128xf32, #tpu.memory_space<vmem>>, %arg4: memref<1x128xf32, #tpu.memory_space<vmem>>, %arg5: memref<1x128xf32, #tpu.memory_space<vmem>>, %arg6: memref<1x128xf32, #tpu.memory_space<vmem>>, %arg7: memref<32x128xf32, #tpu.memory_space<vmem>>) attributes {dimension_semantics = [#tpu.dimension_semantics<parallel>], iteration_bounds = array<i64: 2>, scalar_prefetch = 0 : i64, scratch_operands = 0 : i64, tpu.core_type = #tpu.core_type<tc>, window_params = [{transform_indices = @transform_0, window_bounds = array<i64: 32, 128>}, {transform_indices = @transform_1, window_bounds = array<i64: 32, 128>}, {pipeline_mode = #tpu.pipeline_mode<synchronous>, transform_indices = @transform_2, window_bounds = array<i64: 1, 128>}, {pipeline_mode = #tpu.pipeline_mode<synchronous>, transform_indices = @transform_3, window_bounds = array<i64: 1, 128>}, {pipeline_mode = #tpu.pipeline_mode<synchronous>, transform_indices = @transform_4, window_bounds = array<i64: 1, 128>}, {pipeline_mode = #tpu.pipeline_mode<synchronous>, transform_indices = @transform_5, window_bounds = array<i64: 1, 128>}, {transform_indices = @transform_6, window_bounds = array<i64: 32, 128>}]} {
    %c0 = arith.constant 0 : index
    %c0_0 = arith.constant 0 : index
    %0 = vector.load %arg1[%c0, %c0_0] : memref<32x128xf32, #tpu.memory_space<vmem>>, vector<32x128xf32>
    %c0_1 = arith.constant 0 : index
    %c0_2 = arith.constant 0 : index
    %1 = vector.load %arg2[%c0_1, %c0_2] : memref<32x128xf32, #tpu.memory_space<vmem>>, vector<32x128xf32>
    %c0_3 = arith.constant 0 : index
    %c0_4 = arith.constant 0 : index
    %2 = vector.load %arg3[%c0_3, %c0_4] : memref<1x128xf32, #tpu.memory_space<vmem>>, vector<1x128xf32>
    %3 = vector.broadcast %2 : vector<1x128xf32> to vector<32x128xf32>
    %4 = arith.mulf %0, %3 : vector<32x128xf32>
    %c0_5 = arith.constant 0 : index
    %c0_6 = arith.constant 0 : index
    %5 = vector.load %arg4[%c0_5, %c0_6] : memref<1x128xf32, #tpu.memory_space<vmem>>, vector<1x128xf32>
    %6 = vector.broadcast %5 : vector<1x128xf32> to vector<32x128xf32>
    %7 = arith.addf %4, %6 : vector<32x128xf32>
    %c0_7 = arith.constant 0 : index
    %c0_8 = arith.constant 0 : index
    %8 = vector.load %arg5[%c0_7, %c0_8] : memref<1x128xf32, #tpu.memory_space<vmem>>, vector<1x128xf32>
    %9 = vector.broadcast %8 : vector<1x128xf32> to vector<32x128xf32>
    %10 = arith.mulf %1, %9 : vector<32x128xf32>
    %11 = arith.addf %7, %10 : vector<32x128xf32>
    %c0_9 = arith.constant 0 : index
    %c0_10 = arith.constant 0 : index
    %12 = vector.load %arg6[%c0_9, %c0_10] : memref<1x128xf32, #tpu.memory_space<vmem>>, vector<1x128xf32>
    %13 = vector.broadcast %12 : vector<1x128xf32> to vector<32x128xf32>
    %14 = arith.addf %11, %13 : vector<32x128xf32>
    %cst = arith.constant 0.000000e+00 : f32
    %15 = vector.broadcast %cst : f32 to vector<32x128xf32>
    %16 = arith.maximumf %14, %15 : vector<32x128xf32>
    %c0_11 = arith.constant 0 : index
    %c0_12 = arith.constant 0 : index
    %17 = vector.load %arg7[%c0_11, %c0_12] : memref<32x128xf32, #tpu.memory_space<vmem>>, vector<32x128xf32>
    tpu.vector_store %arg7[%c0_11, %c0_12], %16 {strides = array<i32>} : memref<32x128xf32, #tpu.memory_space<vmem>>, vector<32x128xf32>,
    return
  }
  func.func @transform_0(%arg0: i32) -> (i32, i32) {
    %c0_i32 = arith.constant 0 : i32
    %c0_i32_0 = arith.constant 0 : i32
    return %arg0, %c0_i32 : i32, i32
  }
  func.func @transform_1(%arg0: i32) -> (i32, i32) {
    %c0_i32 = arith.constant 0 : i32
    %c0_i32_0 = arith.constant 0 : i32
    return %arg0, %c0_i32 : i32, i32
  }
  func.func @transform_2(%arg0: i32) -> (i32, i32) {
    %c0_i32 = arith.constant 0 : i32
    %c0_i32_0 = arith.constant 0 : i32
    %c0_i32_1 = arith.constant 0 : i32
    return %c0_i32, %c0_i32_0 : i32, i32
  }
  func.func @transform_3(%arg0: i32) -> (i32, i32) {
    %c0_i32 = arith.constant 0 : i32
    %c0_i32_0 = arith.constant 0 : i32
    %c0_i32_1 = arith.constant 0 : i32
    return %c0_i32, %c0_i32_0 : i32, i32
  }
  func.func @transform_4(%arg0: i32) -> (i32, i32) {
    %c0_i32 = arith.constant 0 : i32
    %c0_i32_0 = arith.constant 0 : i32
    %c0_i32_1 = arith.constant 0 : i32
    return %c0_i32, %c0_i32_0 : i32, i32
  }
  func.func @transform_5(%arg0: i32) -> (i32, i32) {
    %c0_i32 = arith.constant 0 : i32
    %c0_i32_0 = arith.constant 0 : i32
    %c0_i32_1 = arith.constant 0 : i32
    return %c0_i32, %c0_i32_0 : i32, i32
  }
  func.func @transform_6(%arg0: i32) -> (i32, i32) {
    %c0_i32 = arith.constant 0 : i32
    %c0_i32_0 = arith.constant 0 : i32
    return %arg0, %c0_i32 : i32, i32
  }
}

</mosaic_0001>

<llo_original>
// kernel: residual_layer_forward.8
$region0: #{residual_layer_forward.8}
  #allocation0 [shape = 'u32[]', space=smem, size = 0x4, offset = 0x4, fixed_abs, tag = 'smem constant byte address 0x4 - core index']
  #allocation1 [shape = 'u32[144,128]{1,0:T(1,128)}', space=vmem, size = 0x12000, scoped, tag = 'internal scratch']
  %s0 = inlined_call_operand.vmem [shape: f32[512,4], index: 0, kind: input, shape index: {}]
  %s1 = inlined_call_operand.hbm [shape: f32[4,16], index: 1, kind: input, shape index: {}]
  %s2 = inlined_call_operand.vmem [shape: f32[1,4], index: 2, kind: input, shape index: {}]
  %s3 = inlined_call_operand.vmem [shape: f32[1,4], index: 3, kind: input, shape index: {}]
  %s4 = inlined_call_operand.vmem [shape: f32[512,16], index: 4, kind: output, shape index: {0}]
  %s5 = inlined_call_operand.vmem [shape: f32[2,2,16], index: 5, kind: output, shape index: {1}]
  %6 = xla_tuple %s4, %s5
  %s7 = sld [smem:[#allocation0]]
  $region61: #{residual_layer_forward.8} parent=0
    _
  %s9 = ssub.s32 1, %s7
  %s10 = scalar_select 0, %s9, %s7
  $region1: #{residual_layer_forward.8} parent=0
    #allocation2 [shape = 'u8[2048]{0}', space=vmem, size = 0x800, scoped, tag = 'input window, operand 1, single buffered']
    #allocation3 [shape = 's32[2]{0}', space=sflag, size = 0x8, scoped, tag = 'scoped memory for residual_layer_forward.8']
    %11 = vsyncpa [#allocation3], 0
    loop: start=0, step=1, limit=4
    $region2: #{residual_layer_forward.8} parent=1 // loop_pre_header
      _
    $region3: #{residual_layer_forward.8} parent=1 // loop_header
      %s13 = sphi 0, %s17
      %p14 = scmp.ge.s32.totalorder %s13, 4
      %s23 = sphi 0, %s25
      %s26 = sphi 0, %s23
      %s27 = sphi 0, %s26
      %s43 = sphi 0, %s27
      %s47 = sphi 0, %s47
      %s49 = sphi 0, %s47
      %s50 = sphi 0, %s49
      %s64 = sphi 0, %s50
      %s68 = sphi 0, %s68
      %s70 = sphi 0, %s68
      %s71 = sphi 0, %s70
      %s85 = sphi 0, %s71
      %s89 = sphi 0, %s89
      %s91 = sphi 0, %s89
      %s92 = sphi 0, %s91
      %s106 = sphi 0, %s92
      %s112 = sphi 0, %s114
      %s115 = sphi 0, %s112
      %s116 = sphi 0, %s115
      %s132 = sphi 0, %s116
      %s138 = sphi 0, %s140
      %s141 = sphi 0, %s138
      %s142 = sphi 0, %s141
      %s158 = sphi 0, %s142
    $region4: #{residual_layer_forward.8} parent=1 // loop_header_branch
      %16 = sbr.rel (%p14) target = $region8
    $region5: #{residual_layer_forward.8} parent=1 // loop_body
      %s18 = ssub.s32 %s13, 1
      %s19 = ssub.s32 %s13, 2
      %s20 = sadd.s32 %s13, 1
      %s21 = ssub.s32 %s13, %s20
      %p22 = scmp.eq.s32.totalorder %s21, 0
      %s24 = sadd.s32 %s23, 1
      %s25 = scalar_select %p22, %s23, %s24
      %p28 = pneg %p22
      %p29 = scmp.eq.s32.totalorder %s13, 1
      %p30 = por %p28, %p29
      %p31 = scmp.ne.s32.totalorder %s23, %s26
      %p32 = scmp.eq.s32.totalorder %s13, 0
      %p33 = por %p31, %p32
      %p34 = scmp.ne.s32.totalorder %s23, %s26
      %p35 = scmp.eq.s32.totalorder %s18, 1
      %p36 = por %p34, %p35
      %p37 = scmp.ne.s32.totalorder %s26, %s27
      %p38 = scmp.eq.s32.totalorder %s18, 0
      %p39 = por %p37, %p38
      %p40 = scmp.ne.s32.totalorder %s26, %s27
      %p41 = scmp.eq.s32.totalorder %s19, 1
      %p42 = por %p40, %p41
      %p44 = scmp.ne.s32.totalorder %s27, %s43
      %p45 = scmp.eq.s32.totalorder %s19, 0
      %p46 = por %p44, %p45
      %s48 = sadd.s32 %s47, 1
      %p51 = scmp.eq.s32.totalorder %s13, 1
      %p52 = scmp.ne.s32.totalorder %s47, %s49
      %p53 = scmp.eq.s32.totalorder %s13, 0
      %p54 = por %p52, %p53
      %p55 = scmp.ne.s32.totalorder %s47, %s49
      %p56 = scmp.eq.s32.totalorder %s18, 1
      %p57 = por %p55, %p56
      %p58 = scmp.ne.s32.totalorder %s49, %s50
      %p59 = scmp.eq.s32.totalorder %s18, 0
      %p60 = por %p58, %p59
      %p61 = scmp.ne.s32.totalorder %s49, %s50
      %p62 = scmp.eq.s32.totalorder %s19, 1
      %p63 = por %p61, %p62
      %p65 = scmp.ne.s32.totalorder %s50, %s64
      %p66 = scmp.eq.s32.totalorder %s19, 0
      %p67 = por %p65, %p66
      %s69 = sadd.s32 %s68, 1
      %p72 = scmp.eq.s32.totalorder %s13, 1
      %p73 = scmp.ne.s32.totalorder %s68, %s70
      %p74 = scmp.eq.s32.totalorder %s13, 0
      %p75 = por %p73, %p74
      %p76 = scmp.ne.s32.totalorder %s68, %s70
      %p77 = scmp.eq.s32.totalorder %s18, 1
      %p78 = por %p76, %p77
      %p79 = scmp.ne.s32.totalorder %s70, %s71
      %p80 = scmp.eq.s32.totalorder %s18, 0
      %p81 = por %p79, %p80
      %p82 = scmp.ne.s32.totalorder %s70, %s71
      %p83 = scmp.eq.s32.totalorder %s19, 1
      %p84 = por %p82, %p83
      %p86 = scmp.ne.s32.totalorder %s71, %s85
      %p87 = scmp.eq.s32.totalorder %s19, 0
      %p88 = por %p86, %p87
      %s90 = sadd.s32 %s89, 1
      %p93 = scmp.eq.s32.totalorder %s13, 1
      %p94 = scmp.ne.s32.totalorder %s89, %s91
      %p95 = scmp.eq.s32.totalorder %s13, 0
      %p96 = por %p94, %p95
      %p97 = scmp.ne.s32.totalorder %s89, %s91
      %p98 = scmp.eq.s32.totalorder %s18, 1
      %p99 = por %p97, %p98
      %p100 = scmp.ne.s32.totalorder %s91, %s92
      %p101 = scmp.eq.s32.totalorder %s18, 0
      %p102 = por %p100, %p101
      %p103 = scmp.ne.s32.totalorder %s91, %s92
      %p104 = scmp.eq.s32.totalorder %s19, 1
      %p105 = por %p103, %p104
      %p107 = scmp.ne.s32.totalorder %s92, %s106
      %p108 = scmp.eq.s32.totalorder %s19, 0
      %p109 = por %p107, %p108
      %s110 = ssub.s32 %s13, %s20
      %p111 = scmp.eq.s32.totalorder %s110, 0
      %s113 = sadd.s32 %s112, 1
      %s114 = scalar_select %p111, %s112, %s113
      %p117 = pneg %p111
      %p118 = scmp.eq.s32.totalorder %s13, 1
      %p119 = por %p117, %p118
      %p120 = scmp.ne.s32.totalorder %s112, %s115
      %p121 = scmp.eq.s32.totalorder %s13, 0
      %p122 = por %p120, %p121
      %p123 = scmp.ne.s32.totalorder %s112, %s115
      %p124 = scmp.eq.s32.totalorder %s18, 1
      %p125 = por %p123, %p124
      %p126 = scmp.ne.s32.totalorder %s115, %s116
      %p127 = scmp.eq.s32.totalorder %s18, 0
      %p128 = por %p126, %p127
      %p129 = scmp.ne.s32.totalorder %s115, %s116
      %p130 = scmp.eq.s32.totalorder %s19, 1
      %p131 = por %p129, %p130
      %p133 = scmp.ne.s32.totalorder %s116, %s132
      %p134 = scmp.eq.s32.totalorder %s19, 0
      %p135 = por %p133, %p134
      %s136 = ssub.s32 %s13, %s20
      %p137 = scmp.eq.s32.totalorder %s136, 0
      %s139 = sadd.s32 %s138, 1
      %s140 = scalar_select %p137, %s138, %s139
      %p143 = pneg %p137
      %p144 = scmp.eq.s32.totalorder %s13, 1
      %p145 = por %p143, %p144
      %p146 = scmp.ne.s32.totalorder %s138, %s141
      %p147 = scmp.eq.s32.totalorder %s13, 0
      %p148 = por %p146, %p147
      %p149 = scmp.ne.s32.totalorder %s138, %s141
      %p150 = scmp.eq.s32.totalorder %s18, 1
      %p151 = por %p149, %p150
      %p152 = scmp.ne.s32.totalorder %s141, %s142
      %p153 = scmp.eq.s32.totalorder %s18, 0
      %p154 = por %p152, %p153
      %p155 = scmp.ne.s32.totalorder %s141, %s142
      %p156 = scmp.eq.s32.totalorder %s19, 1
      %p157 = por %p155, %p156
      %p159 = scmp.ne.s32.totalorder %s142, %s158
      %p160 = scmp.eq.s32.totalorder %s19, 0
      %p161 = por %p159, %p160
      %p162 = scmp.le.s32.totalorder 1, %s13
      %p163 = scmp.lt.s32.totalorder %s13, 3
      %p164 = pnand %p162, %p163
      %p165 = pneg %p164
      // Predicated region
      $region9: #{residual_layer_forward.8} parent=5 // pred_check
        _
      $region10: #{residual_layer_forward.8} parent=5 // pred_check_branch
        %167 = sbr.rel (%p164) target = $region12
      $region11: #{residual_layer_forward.8} parent=5 // pred_region
        %s168 = ssub.s32 %s13, 1
        // Predicated region
        $region13: #{residual_layer_forward.8} parent=11 // pred_check
          %p169 = pneg %p60
        $region14: #{residual_layer_forward.8} parent=11 // pred_check_branch
          %171 = sbr.rel (%p169) target = $region16
        $region15: #{residual_layer_forward.8} parent=11 // pred_region
          %s173 = ssub.s32 64, 64
          %174 = vsyncadd [#allocation3], %s173
          %s176 = sshll.u32 [#allocation2], 4
          %s177 = int_to_ptr.vmem [resolvable:$true] %s176
          %179 = dma.hbm_to_vmem [thread:$0]  %s1, 64, %s177, [#allocation3]
        $region16: #{residual_layer_forward.8} parent=11 // pred_fallthru
          _
        // Predicated region
        $region17: #{residual_layer_forward.8} parent=11 // pred_check
          %p180 = pneg %p81
        $region18: #{residual_layer_forward.8} parent=11 // pred_check_branch
          %182 = sbr.rel (%p180) target = $region20
        $region19: #{residual_layer_forward.8} parent=11 // pred_region
          _
        $region20: #{residual_layer_forward.8} parent=11 // pred_fallthru
          _
        // Predicated region
        $region21: #{residual_layer_forward.8} parent=11 // pred_check
          %p183 = pneg %p102
        $region22: #{residual_layer_forward.8} parent=11 // pred_check_branch
          %185 = sbr.rel (%p183) target = $region24
        $region23: #{residual_layer_forward.8} parent=11 // pred_region
          _
        $region24: #{residual_layer_forward.8} parent=11 // pred_fallthru
          _
      $region12: #{residual_layer_forward.8} parent=5 // pred_fallthru
        _
      %p186 = scmp.lt.s32.totalorder %s13, 2
      // Predicated region
      $region25: #{residual_layer_forward.8} parent=5 // pred_check
        %p187 = pneg %p186
      $region26: #{residual_layer_forward.8} parent=5 // pred_check_branch
        %189 = sbr.rel (%p187) target = $region28
      $region27: #{residual_layer_forward.8} parent=5 // pred_region
        // Predicated region
        $region29: #{residual_layer_forward.8} parent=27 // pred_check
          %p190 = pneg %p33
        $region30: #{residual_layer_forward.8} parent=27 // pred_check_branch
          %192 = sbr.rel (%p190) target = $region32
        $region31: #{residual_layer_forward.8} parent=27 // pred_region
          %s193 = smul.u32 32, %s13
          %p194 = scmp.lt.s32.totalorder %s193, 63
          %s195 = scalar_select %p194, %s193, 63
          %s196 = smul.addr %s195, 8
          %s197 = scalar_lea.vmem %s0, %s196
          %s198 = smul.u32 32, %s13
        $region32: #{residual_layer_forward.8} parent=27 // pred_fallthru
          _
      $region28: #{residual_layer_forward.8} parent=5 // pred_fallthru
        _
      %p199 = scmp.le.s32.totalorder 1, %s13
      %p200 = scmp.lt.s32.totalorder %s13, 3
      %p201 = pnand %p199, %p200
      %p202 = pneg %p201
      // Predicated region
      $region33: #{residual_layer_forward.8} parent=5 // pred_check
        _
      $region34: #{residual_layer_forward.8} parent=5 // pred_check_branch
        %204 = sbr.rel (%p201) target = $region36
      $region35: #{residual_layer_forward.8} parent=5 // pred_region
        %s205 = ssub.s32 %s13, 1
        // Predicated region
        $region37: #{residual_layer_forward.8} parent=35 // pred_check
          %p206 = pneg %p60
        $region38: #{residual_layer_forward.8} parent=35 // pred_check_branch
          %208 = sbr.rel (%p206) target = $region40
        $region39: #{residual_layer_forward.8} parent=35 // pred_region
          %209 = dma.done [#allocation3], 64
        $region40: #{residual_layer_forward.8} parent=35 // pred_fallthru
          _
        %s210 = smul.u32 32, %s18
        %p211 = scmp.lt.s32.totalorder %s210, 63
        %s212 = scalar_select %p211, %s210, 63
        %s213 = smul.addr %s212, 8
        %s214 = scalar_lea.vmem %s0, %s213
        %p215 = pneg %p39
        %p216 = pneg %p36
        %p217 = pneg %p60
        %p218 = pneg %p57
        %p219 = pneg %p81
        %p220 = pneg %p78
        %p221 = pneg %p102
        %p222 = pneg %p99
        %p223 = pneg %p128
        %p224 = pneg %p125
        %s225 = smul.u32 32, %s18
        %p226 = scmp.lt.s32.totalorder %s225, 63
        %s227 = scalar_select %p226, %s225, 63
        %s228 = smul.addr %s227, 8
        %s229 = scalar_lea.vmem %s4, %s228
        %p230 = pneg %p154
        %p231 = pneg %p151
        %p232 = scmp.lt.s32.totalorder %s18, 1
        %s233 = scalar_select %p232, %s18, 1
        %s234 = smul.addr %s233, 2
        %s235 = scalar_lea.vmem %s5, %s234
        %s236 = smul.u32 32, %s18
        %p237 = scmp.lt.s32.totalorder %s236, 63
        %s238 = scalar_select %p237, %s236, 63
        %s239 = smul.addr %s238, 8
        %s240 = scalar_lea.vmem %s0, %s239
        %s241 = smul.u32 32, %s18
        %s242 = smul.u32 32, %s18
        %p243 = scmp.lt.s32.totalorder %s242, 63
        %s244 = scalar_select %p243, %s242, 63
        %s245 = smul.addr %s244, 8
        %s246 = scalar_lea.vmem %s4, %s245
        %s247 = smul.u32 32, %s18
        %p248 = scmp.lt.s32.totalorder %s18, 1
        %s249 = scalar_select %p248, %s18, 1
        %s250 = smul.addr %s249, 2
        %s251 = scalar_lea.vmem %s5, %s250
        %v252 = vld [vmem:[%s240] sm:$0xff]
        %v253 = vld [vmem:[%s240 + $0x8] sm:$0xff]
        %v254 = vld [vmem:[%s240 + $0x10] sm:$0xff]
        %v255 = vld [vmem:[%s240 + $0x18] sm:$0xff]
        %v256 = vld [vmem:[%s240 + $0x20] sm:$0xff]
        %v257 = vld [vmem:[%s240 + $0x28] sm:$0xff]
        %v258 = vld [vmem:[%s240 + $0x30] sm:$0xff]
        %v259 = vld [vmem:[%s240 + $0x38] sm:$0xff]
        %v260 = vld [vmem:[%s240 + $0x40] sm:$0xff]
        %v261 = vld [vmem:[%s240 + $0x48] sm:$0xff]
        %v262 = vld [vmem:[%s240 + $0x50] sm:$0xff]
        %v263 = vld [vmem:[%s240 + $0x58] sm:$0xff]
        %v264 = vld [vmem:[%s240 + $0x60] sm:$0xff]
        %v265 = vld [vmem:[%s240 + $0x68] sm:$0xff]
        %v266 = vld [vmem:[%s240 + $0x70] sm:$0xff]
        %v267 = vld [vmem:[%s240 + $0x78] sm:$0xff]
        %v268 = vld [vmem:[%s240 + $0x80] sm:$0xff]
        %v269 = vld [vmem:[%s240 + $0x88] sm:$0xff]
        %v270 = vld [vmem:[%s240 + $0x90] sm:$0xff]
        %v271 = vld [vmem:[%s240 + $0x98] sm:$0xff]
        %v272 = vld [vmem:[%s240 + $0xa0] sm:$0xff]
        %v273 = vld [vmem:[%s240 + $0xa8] sm:$0xff]
        %v274 = vld [vmem:[%s240 + $0xb0] sm:$0xff]
        %v275 = vld [vmem:[%s240 + $0xb8] sm:$0xff]
        %v276 = vld [vmem:[%s240 + $0xc0] sm:$0xff]
        %v277 = vld [vmem:[%s240 + $0xc8] sm:$0xff]
        %v278 = vld [vmem:[%s240 + $0xd0] sm:$0xff]
        %v279 = vld [vmem:[%s240 + $0xd8] sm:$0xff]
        %v280 = vld [vmem:[%s240 + $0xe0] sm:$0xff]
        %v281 = vld [vmem:[%s240 + $0xe8] sm:$0xff]
        %v282 = vld [vmem:[%s240 + $0xf0] sm:$0xff]
        %v283 = vld [vmem:[%s240 + $0xf8] sm:$0xff]
        %v284 = vld [vmem:[%s2] sm:$0x1]
        %v286 = vlaneseq
        %v287 = vshrl.u32 %v286, 7
        %v288 = vsub.s32 0, %v287
        %v289 = vrot.slane %v284, %v288
        %v291 = vmul.f32 %v252, %v289
        %v292 = vmul.f32 %v253, %v289
        %v293 = vmul.f32 %v254, %v289
        %v294 = vmul.f32 %v255, %v289
        %v295 = vmul.f32 %v256, %v289
        %v296 = vmul.f32 %v257, %v289
        %v297 = vmul.f32 %v258, %v289
        %v298 = vmul.f32 %v259, %v289
        %v299 = vmul.f32 %v260, %v289
        %v300 = vmul.f32 %v261, %v289
        %v301 = vmul.f32 %v262, %v289
        %v302 = vmul.f32 %v263, %v289
        %v303 = vmul.f32 %v264, %v289
        %v304 = vmul.f32 %v265, %v289
        %v305 = vmul.f32 %v266, %v289
        %v306 = vmul.f32 %v267, %v289
        %v307 = vmul.f32 %v268, %v289
        %v308 = vmul.f32 %v269, %v289
        %v309 = vmul.f32 %v270, %v289
        %v310 = vmul.f32 %v271, %v289
        %v311 = vmul.f32 %v272, %v289
        %v312 = vmul.f32 %v273, %v289
        %v313 = vmul.f32 %v274, %v289
        %v314 = vmul.f32 %v275, %v289
        %v315 = vmul.f32 %v276, %v289
        %v316 = vmul.f32 %v277, %v289
        %v317 = vmul.f32 %v278, %v289
        %v318 = vmul.f32 %v279, %v289
        %v319 = vmul.f32 %v280, %v289
        %v320 = vmul.f32 %v281, %v289
        %v321 = vmul.f32 %v282, %v289
        %v322 = vmul.f32 %v283, %v289
        %v323 = vld [vmem:[%s3] sm:$0x1]
        %v325 = vlaneseq
        %v326 = vshrl.u32 %v325, 7
        %v327 = vsub.s32 0, %v326
        %v328 = vrot.slane %v323, %v327
        %v330 = vadd.f32 %v291, %v328
        %v331 = vadd.f32 %v292, %v328
        %v332 = vadd.f32 %v293, %v328
        %v333 = vadd.f32 %v294, %v328
        %v334 = vadd.f32 %v295, %v328
        %v335 = vadd.f32 %v296, %v328
        %v336 = vadd.f32 %v297, %v328
        %v337 = vadd.f32 %v298, %v328
        %v338 = vadd.f32 %v299, %v328
        %v339 = vadd.f32 %v300, %v328
        %v340 = vadd.f32 %v301, %v328
        %v341 = vadd.f32 %v302, %v328
        %v342 = vadd.f32 %v303, %v328
        %v343 = vadd.f32 %v304, %v328
        %v344 = vadd.f32 %v305, %v328
        %v345 = vadd.f32 %v306, %v328
        %v346 = vadd.f32 %v307, %v328
        %v347 = vadd.f32 %v308, %v328
        %v348 = vadd.f32 %v309, %v328
        %v349 = vadd.f32 %v310, %v328
        %v350 = vadd.f32 %v311, %v328
        %v351 = vadd.f32 %v312, %v328
        %v352 = vadd.f32 %v313, %v328
        %v353 = vadd.f32 %v314, %v328
        %v354 = vadd.f32 %v315, %v328
        %v355 = vadd.f32 %v316, %v328
        %v356 = vadd.f32 %v317, %v328
        %v357 = vadd.f32 %v318, %v328
        %v358 = vadd.f32 %v319, %v328
        %v359 = vadd.f32 %v320, %v328
        %v360 = vadd.f32 %v321, %v328
        %v361 = vadd.f32 %v322, %v328
        %v362 = vld [vmem:[#allocation2] sm:$0xf]
        %vm363 = vcmask 31744
        %v365 = vsel %vm363, %v330, 0
        %v368 = vsel %vm363, %v331, 0
        %v371 = vsel %vm363, %v332, 0
        %v374 = vsel %vm363, %v333, 0
        %v377 = vsel %vm363, %v334, 0
        %v380 = vsel %vm363, %v335, 0
        %v383 = vsel %vm363, %v336, 0
        %v386 = vsel %vm363, %v337, 0
        %v389 = vsel %vm363, %v338, 0
        %v392 = vsel %vm363, %v339, 0
        %v395 = vsel %vm363, %v340, 0
        %v398 = vsel %vm363, %v341, 0
        %v401 = vsel %vm363, %v342, 0
        %v404 = vsel %vm363, %v343, 0
        %v407 = vsel %vm363, %v344, 0
        %v410 = vsel %vm363, %v345, 0
        %v413 = vsel %vm363, %v346, 0
        %v416 = vsel %vm363, %v347, 0
        %v419 = vsel %vm363, %v348, 0
        %v422 = vsel %vm363, %v349, 0
        %v425 = vsel %vm363, %v350, 0
        %v428 = vsel %vm363, %v351, 0
        %v431 = vsel %vm363, %v352, 0
        %v434 = vsel %vm363, %v353, 0
        %v437 = vsel %vm363, %v354, 0
        %v440 = vsel %vm363, %v355, 0
        %v443 = vsel %vm363, %v356, 0
        %v446 = vsel %vm363, %v357, 0
        %v449 = vsel %vm363, %v358, 0
        %v452 = vsel %vm363, %v359, 0
        %v455 = vsel %vm363, %v360, 0
        %v458 = vsel %vm363, %v361, 0
        %vm460 = vcmask 1043456
        %v462 = vsel %vm460, %v362, 0
        %464 = vmatprep.subr.mxu0 0.0
        %465 = vmatpush1.msra.mxu0 0.0
        %466 = vmatprep.subr.mxu0 0.0
        %467 = vmatpush1.msra.mxu0 0.0
        %468 = vmatprep.subr.mxu0 0.0
        %469 = vmatpush1.msra.mxu0 0.0
        %470 = vmatprep.subr.mxu0 0.0
        %471 = vmatpush1.msra.mxu0 0.0
        %472 = vmatprep.subr.mxu0 0.0
        %473 = vmatpush1.msra.mxu0 0.0
        %474 = vmatprep.subr.mxu0 0.0
        %475 = vmatpush1.msra.mxu0 0.0
        %476 = vmatprep.subr.mxu0 0.0
        %477 = vmatpush1.msra.mxu0 0.0
        %478 = vmatprep.subr.mxu0 0.0
        %479 = vmatpush1.msra.mxu0 0.0
        %480 = vmatprep.subr.mxu0 0.0
        %481 = vmatpush1.msra.mxu0 0.0
        %482 = vmatprep.subr.mxu0 0.0
        %483 = vmatpush1.msra.mxu0 0.0
        %484 = vmatprep.subr.mxu0 0.0
        %485 = vmatpush1.msra.mxu0 0.0
        %486 = vmatprep.subr.mxu0 0.0
        %487 = vmatpush1.msra.mxu0 0.0
        %488 = vmatprep.subr.mxu0 0.0
        %489 = vmatpush1.msra.mxu0 0.0
        %490 = vmatprep.subr.mxu0 0.0
        %491 = vmatpush1.msra.mxu0 0.0
        %492 = vmatprep.subr.mxu0 0.0
        %493 = vmatpush1.msra.mxu0 0.0
        %494 = vmatprep.subr.mxu0 0.0
        %495 = vmatpush1.msra.mxu0 %v462
        %496 = vmatprep.subr.mxu0 0.0
        %497 = vmatpush2.msra.mxu0 0.0
        %498 = vmatprep.subr.mxu0 0.0
        %499 = vmatpush2.msra.mxu0 0.0
        %500 = vmatprep.subr.mxu0 0.0
        %501 = vmatpush2.msra.mxu0 0.0
        %502 = vmatprep.subr.mxu0 0.0
        %503 = vmatpush2.msra.mxu0 0.0
        %504 = vmatprep.subr.mxu0 0.0
        %505 = vmatpush2.msra.mxu0 0.0
        %506 = vmatprep.subr.mxu0 0.0
        %507 = vmatpush2.msra.mxu0 0.0
        %508 = vmatprep.subr.mxu0 0.0
        %509 = vmatpush2.msra.mxu0 0.0
        %510 = vmatprep.subr.mxu0 0.0
        %511 = vmatpush2.msra.mxu0 0.0
        %512 = vmatprep.subr.mxu0 0.0
        %513 = vmatpush2.msra.mxu0 0.0
        %514 = vmatprep.subr.mxu0 0.0
        %515 = vmatpush2.msra.mxu0 0.0
        %516 = vmatprep.subr.mxu0 0.0
        %517 = vmatpush2.msra.mxu0 0.0
        %518 = vmatprep.subr.mxu0 0.0
        %519 = vmatpush2.msra.mxu0 0.0
        %520 = vmatprep.subr.mxu0 0.0
        %521 = vmatpush2.msra.mxu0 0.0
        %522 = vmatprep.subr.mxu0 0.0
        %523 = vmatpush2.msra.mxu0 0.0
        %524 = vmatprep.subr.mxu0 0.0
        %525 = vmatpush2.msra.mxu0 0.0
        %526 = vmatprep.subr.mxu0 0.0
        %527 = vmatpush2.msra.mxu0 0.0
        %528 = vmatprep.mubr.f32.mxu0 0.0
        %529 = vmatmul.mubr.f32.gmra.mxu0 %v365
        %v530 = vpop.f32.mrf.mxu0
        %v531 = vadd.f32 0.0, %v530
        %v532 = vpop.f32.mrf.mxu0
        %533 = vmatprep.mubr.f32.mxu0 0.0
        %534 = vmatmul.mubr.f32.gmra.mxu0 %v368
        %v535 = vpop.f32.mrf.mxu0
        %v536 = vadd.f32 0.0, %v535
        %v537 = vpop.f32.mrf.mxu0
        %538 = vmatprep.mubr.f32.mxu0 0.0
        %539 = vmatmul.mubr.f32.gmra.mxu0 %v371
        %v540 = vpop.f32.mrf.mxu0
        %v541 = vadd.f32 0.0, %v540
        %v542 = vpop.f32.mrf.mxu0
        %543 = vmatprep.mubr.f32.mxu0 0.0
        %544 = vmatmul.mubr.f32.gmra.mxu0 %v374
        %v545 = vpop.f32.mrf.mxu0
        %v546 = vadd.f32 0.0, %v545
        %v547 = vpop.f32.mrf.mxu0
        %548 = vmatprep.mubr.f32.mxu0 0.0
        %549 = vmatmul.mubr.f32.gmra.mxu0 %v377
        %v550 = vpop.f32.mrf.mxu0
        %v551 = vadd.f32 0.0, %v550
        %v552 = vpop.f32.mrf.mxu0
        %553 = vmatprep.mubr.f32.mxu0 0.0
        %554 = vmatmul.mubr.f32.gmra.mxu0 %v380
        %v555 = vpop.f32.mrf.mxu0
        %v556 = vadd.f32 0.0, %v555
        %v557 = vpop.f32.mrf.mxu0
        %558 = vmatprep.mubr.f32.mxu0 0.0
        %559 = vmatmul.mubr.f32.gmra.mxu0 %v383
        %v560 = vpop.f32.mrf.mxu0
        %v561 = vadd.f32 0.0, %v560
        %v562 = vpop.f32.mrf.mxu0
        %563 = vmatprep.mubr.f32.mxu0 0.0
        %564 = vmatmul.mubr.f32.gmra.mxu0 %v386
        %v565 = vpop.f32.mrf.mxu0
        %v566 = vadd.f32 0.0, %v565
        %v567 = vpop.f32.mrf.mxu0
        %568 = vmatprep.mubr.f32.mxu0 0.0
        %569 = vmatmul.mubr.f32.gmra.mxu0 %v389
        %v570 = vpop.f32.mrf.mxu0
        %v571 = vadd.f32 0.0, %v570
        %v572 = vpop.f32.mrf.mxu0
        %573 = vmatprep.mubr.f32.mxu0 0.0
        %574 = vmatmul.mubr.f32.gmra.mxu0 %v392
        %v575 = vpop.f32.mrf.mxu0
        %v576 = vadd.f32 0.0, %v575
        %v577 = vpop.f32.mrf.mxu0
        %578 = vmatprep.mubr.f32.mxu0 0.0
        %579 = vmatmul.mubr.f32.gmra.mxu0 %v395
        %v580 = vpop.f32.mrf.mxu0
        %v581 = vadd.f32 0.0, %v580
        %v582 = vpop.f32.mrf.mxu0
        %583 = vmatprep.mubr.f32.mxu0 0.0
        %584 = vmatmul.mubr.f32.gmra.mxu0 %v398
        %v585 = vpop.f32.mrf.mxu0
        %v586 = vadd.f32 0.0, %v585
        %v587 = vpop.f32.mrf.mxu0
        %588 = vmatprep.mubr.f32.mxu0 0.0
        %589 = vmatmul.mubr.f32.gmra.mxu0 %v401
        %v590 = vpop.f32.mrf.mxu0
        %v591 = vadd.f32 0.0, %v590
        %v592 = vpop.f32.mrf.mxu0
        %593 = vmatprep.mubr.f32.mxu0 0.0
        %594 = vmatmul.mubr.f32.gmra.mxu0 %v404
        %v595 = vpop.f32.mrf.mxu0
        %v596 = vadd.f32 0.0, %v595
        %v597 = vpop.f32.mrf.mxu0
        %598 = vmatprep.mubr.f32.mxu0 0.0
        %599 = vmatmul.mubr.f32.gmra.mxu0 %v407
        %v600 = vpop.f32.mrf.mxu0
        %v601 = vadd.f32 0.0, %v600
        %v602 = vpop.f32.mrf.mxu0
        %603 = vmatprep.mubr.f32.mxu0 0.0
        %604 = vmatmul.mubr.f32.gmra.mxu0 %v410
        %v605 = vpop.f32.mrf.mxu0
        %v606 = vadd.f32 0.0, %v605
        %v607 = vpop.f32.mrf.mxu0
        %608 = vmatprep.mubr.f32.mxu0 0.0
        %609 = vmatmul.mubr.f32.gmra.mxu0 %v413
        %v610 = vpop.f32.mrf.mxu0
        %v611 = vadd.f32 0.0, %v610
        %v612 = vpop.f32.mrf.mxu0
        %613 = vmatprep.mubr.f32.mxu0 0.0
        %614 = vmatmul.mubr.f32.gmra.mxu0 %v416
        %v615 = vpop.f32.mrf.mxu0
        %v616 = vadd.f32 0.0, %v615
        %v617 = vpop.f32.mrf.mxu0
        %618 = vmatprep.mubr.f32.mxu0 0.0
        %619 = vmatmul.mubr.f32.gmra.mxu0 %v419
        %v620 = vpop.f32.mrf.mxu0
        %v621 = vadd.f32 0.0, %v620
        %v622 = vpop.f32.mrf.mxu0
        %623 = vmatprep.mubr.f32.mxu0 0.0
        %624 = vmatmul.mubr.f32.gmra.mxu0 %v422
        %v625 = vpop.f32.mrf.mxu0
        %v626 = vadd.f32 0.0, %v625
        %v627 = vpop.f32.mrf.mxu0
        %628 = vmatprep.mubr.f32.mxu0 0.0
        %629 = vmatmul.mubr.f32.gmra.mxu0 %v425
        %v630 = vpop.f32.mrf.mxu0
        %v631 = vadd.f32 0.0, %v630
        %v632 = vpop.f32.mrf.mxu0
        %633 = vmatprep.mubr.f32.mxu0 0.0
        %634 = vmatmul.mubr.f32.gmra.mxu0 %v428
        %v635 = vpop.f32.mrf.mxu0
        %v636 = vadd.f32 0.0, %v635
        %v637 = vpop.f32.mrf.mxu0
        %638 = vmatprep.mubr.f32.mxu0 0.0
        %639 = vmatmul.mubr.f32.gmra.mxu0 %v431
        %v640 = vpop.f32.mrf.mxu0
        %v641 = vadd.f32 0.0, %v640
        %v642 = vpop.f32.mrf.mxu0
        %643 = vmatprep.mubr.f32.mxu0 0.0
        %644 = vmatmul.mubr.f32.gmra.mxu0 %v434
        %v645 = vpop.f32.mrf.mxu0
        %v646 = vadd.f32 0.0, %v645
        %v647 = vpop.f32.mrf.mxu0
        %648 = vmatprep.mubr.f32.mxu0 0.0
        %649 = vmatmul.mubr.f32.gmra.mxu0 %v437
        %v650 = vpop.f32.mrf.mxu0
        %v651 = vadd.f32 0.0, %v650
        %v652 = vpop.f32.mrf.mxu0
        %653 = vmatprep.mubr.f32.mxu0 0.0
        %654 = vmatmul.mubr.f32.gmra.mxu0 %v440
        %v655 = vpop.f32.mrf.mxu0
        %v656 = vadd.f32 0.0, %v655
        %v657 = vpop.f32.mrf.mxu0
        %658 = vmatprep.mubr.f32.mxu0 0.0
        %659 = vmatmul.mubr.f32.gmra.mxu0 %v443
        %v660 = vpop.f32.mrf.mxu0
        %v661 = vadd.f32 0.0, %v660
        %v662 = vpop.f32.mrf.mxu0
        %663 = vmatprep.mubr.f32.mxu0 0.0
        %664 = vmatmul.mubr.f32.gmra.mxu0 %v446
        %v665 = vpop.f32.mrf.mxu0
        %v666 = vadd.f32 0.0, %v665
        %v667 = vpop.f32.mrf.mxu0
        %668 = vmatprep.mubr.f32.mxu0 0.0
        %669 = vmatmul.mubr.f32.gmra.mxu0 %v449
        %v670 = vpop.f32.mrf.mxu0
        %v671 = vadd.f32 0.0, %v670
        %v672 = vpop.f32.mrf.mxu0
        %673 = vmatprep.mubr.f32.mxu0 0.0
        %674 = vmatmul.mubr.f32.gmra.mxu0 %v452
        %v675 = vpop.f32.mrf.mxu0
        %v676 = vadd.f32 0.0, %v675
        %v677 = vpop.f32.mrf.mxu0
        %678 = vmatprep.mubr.f32.mxu0 0.0
        %679 = vmatmul.mubr.f32.gmra.mxu0 %v455
        %v680 = vpop.f32.mrf.mxu0
        %v681 = vadd.f32 0.0, %v680
        %v682 = vpop.f32.mrf.mxu0
        %683 = vmatprep.mubr.f32.mxu0 0.0
        %684 = vmatmul.mubr.f32.gmra.mxu0 %v458
        %v685 = vpop.f32.mrf.mxu0
        %v686 = vadd.f32 0.0, %v685
        %v687 = vpop.f32.mrf.mxu0
        %688 = vdwg.mxu0
        %vm689 = vcmask 130048
        %690 = vst.msk [vmem:[%s246] sm:$0xff] %vm689, %v531
        %691 = vst.msk [vmem:[%s246 + $0x8] sm:$0xff] %vm689, %v536
        %692 = vst.msk [vmem:[%s246 + $0x10] sm:$0xff] %vm689, %v541
        %693 = vst.msk [vmem:[%s246 + $0x18] sm:$0xff] %vm689, %v546
        %694 = vst.msk [vmem:[%s246 + $0x20] sm:$0xff] %vm689, %v551
        %695 = vst.msk [vmem:[%s246 + $0x28] sm:$0xff] %vm689, %v556
        %696 = vst.msk [vmem:[%s246 + $0x30] sm:$0xff] %vm689, %v561
        %697 = vst.msk [vmem:[%s246 + $0x38] sm:$0xff] %vm689, %v566
        %698 = vst.msk [vmem:[%s246 + $0x40] sm:$0xff] %vm689, %v571
        %699 = vst.msk [vmem:[%s246 + $0x48] sm:$0xff] %vm689, %v576
        %700 = vst.msk [vmem:[%s246 + $0x50] sm:$0xff] %vm689, %v581
        %701 = vst.msk [vmem:[%s246 + $0x58] sm:$0xff] %vm689, %v586
        %702 = vst.msk [vmem:[%s246 + $0x60] sm:$0xff] %vm689, %v591
        %703 = vst.msk [vmem:[%s246 + $0x68] sm:$0xff] %vm689, %v596
        %704 = vst.msk [vmem:[%s246 + $0x70] sm:$0xff] %vm689, %v601
        %705 = vst.msk [vmem:[%s246 + $0x78] sm:$0xff] %vm689, %v606
        %706 = vst.msk [vmem:[%s246 + $0x80] sm:$0xff] %vm689, %v611
        %707 = vst.msk [vmem:[%s246 + $0x88] sm:$0xff] %vm689, %v616
        %708 = vst.msk [vmem:[%s246 + $0x90] sm:$0xff] %vm689, %v621
        %709 = vst.msk [vmem:[%s246 + $0x98] sm:$0xff] %vm689, %v626
        %710 = vst.msk [vmem:[%s246 + $0xa0] sm:$0xff] %vm689, %v631
        %711 = vst.msk [vmem:[%s246 + $0xa8] sm:$0xff] %vm689, %v636
        %712 = vst.msk [vmem:[%s246 + $0xb0] sm:$0xff] %vm689, %v641
        %713 = vst.msk [vmem:[%s246 + $0xb8] sm:$0xff] %vm689, %v646
        %714 = vst.msk [vmem:[%s246 + $0xc0] sm:$0xff] %vm689, %v651
        %715 = vst.msk [vmem:[%s246 + $0xc8] sm:$0xff] %vm689, %v656
        %716 = vst.msk [vmem:[%s246 + $0xd0] sm:$0xff] %vm689, %v661
        %717 = vst.msk [vmem:[%s246 + $0xd8] sm:$0xff] %vm689, %v666
        %718 = vst.msk [vmem:[%s246 + $0xe0] sm:$0xff] %vm689, %v671
        %719 = vst.msk [vmem:[%s246 + $0xe8] sm:$0xff] %vm689, %v676
        %720 = vst.msk [vmem:[%s246 + $0xf0] sm:$0xff] %vm689, %v681
        %721 = vst.msk [vmem:[%s246 + $0xf8] sm:$0xff] %vm689, %v686
        %s722 = smul.u32 %s18, 256
        %v723 = vlaneseq
        %v724 = vshrl.u32 %v723, 7
        %v725 = vadd.s32 %v724, 8
        %v726 = vadd.s32 %v724, 16
        %v727 = vadd.s32 %v724, 24
        %v728 = vadd.s32 %v724, 32
        %v729 = vadd.s32 %v724, 40
        %v730 = vadd.s32 %v724, 48
        %v731 = vadd.s32 %v724, 56
        %v732 = vadd.s32 %v724, 64
        %v733 = vadd.s32 %v724, 72
        %v734 = vadd.s32 %v724, 80
        %v735 = vadd.s32 %v724, 88
        %v736 = vadd.s32 %v724, 96
        %v737 = vadd.s32 %v724, 104
        %v738 = vadd.s32 %v724, 112
        %v739 = vadd.s32 %v724, 120
        %v740 = vadd.s32 %v724, 128
        %v741 = vadd.s32 %v724, 136
        %v742 = vadd.s32 %v724, 144
        %v743 = vadd.s32 %v724, 152
        %v744 = vadd.s32 %v724, 160
        %v745 = vadd.s32 %v724, 168
        %v746 = vadd.s32 %v724, 176
        %v747 = vadd.s32 %v724, 184
        %v748 = vadd.s32 %v724, 192
        %v749 = vadd.s32 %v724, 200
        %v750 = vadd.s32 %v724, 208
        %v751 = vadd.s32 %v724, 216
        %v752 = vadd.s32 %v724, 224
        %v753 = vadd.s32 %v724, 232
        %v754 = vadd.s32 %v724, 240
        %v755 = vadd.s32 %v724, 248
        %v756 = vstv %s722
        %v757 = vadd.s32 %v756, %v724
        %v758 = vadd.s32 %v756, %v725
        %v759 = vadd.s32 %v756, %v726
        %v760 = vadd.s32 %v756, %v727
        %v761 = vadd.s32 %v756, %v728
        %v762 = vadd.s32 %v756, %v729
        %v763 = vadd.s32 %v756, %v730
        %v764 = vadd.s32 %v756, %v731
        %v765 = vadd.s32 %v756, %v732
        %v766 = vadd.s32 %v756, %v733
        %v767 = vadd.s32 %v756, %v734
        %v768 = vadd.s32 %v756, %v735
        %v769 = vadd.s32 %v756, %v736
        %v770 = vadd.s32 %v756, %v737
        %v771 = vadd.s32 %v756, %v738
        %v772 = vadd.s32 %v756, %v739
        %v773 = vadd.s32 %v756, %v740
        %v774 = vadd.s32 %v756, %v741
        %v775 = vadd.s32 %v756, %v742
        %v776 = vadd.s32 %v756, %v743
        %v777 = vadd.s32 %v756, %v744
        %v778 = vadd.s32 %v756, %v745
        %v779 = vadd.s32 %v756, %v746
        %v780 = vadd.s32 %v756, %v747
        %v781 = vadd.s32 %v756, %v748
        %v782 = vadd.s32 %v756, %v749
        %v783 = vadd.s32 %v756, %v750
        %v784 = vadd.s32 %v756, %v751
        %v785 = vadd.s32 %v756, %v752
        %v786 = vadd.s32 %v756, %v753
        %v787 = vadd.s32 %v756, %v754
        %v788 = vadd.s32 %v756, %v755
        %vm789 = vcmp.lt.s32.totalorder %v757, 512
        %vm790 = vcmp.lt.s32.totalorder %v758, 512
        %vm791 = vcmp.lt.s32.totalorder %v759, 512
        %vm792 = vcmp.lt.s32.totalorder %v760, 512
        %vm793 = vcmp.lt.s32.totalorder %v761, 512
        %vm794 = vcmp.lt.s32.totalorder %v762, 512
        %vm795 = vcmp.lt.s32.totalorder %v763, 512
        %vm796 = vcmp.lt.s32.totalorder %v764, 512
        %vm797 = vcmp.lt.s32.totalorder %v765, 512
        %vm798 = vcmp.lt.s32.totalorder %v766, 512
        %vm799 = vcmp.lt.s32.totalorder %v767, 512
        %vm800 = vcmp.lt.s32.totalorder %v768, 512
        %vm801 = vcmp.lt.s32.totalorder %v769, 512
        %vm802 = vcmp.lt.s32.totalorder %v770, 512
        %vm803 = vcmp.lt.s32.totalorder %v771, 512
        %vm804 = vcmp.lt.s32.totalorder %v772, 512
        %vm805 = vcmp.lt.s32.totalorder %v773, 512
        %vm806 = vcmp.lt.s32.totalorder %v774, 512
        %vm807 = vcmp.lt.s32.totalorder %v775, 512
        %vm808 = vcmp.lt.s32.totalorder %v776, 512
        %vm809 = vcmp.lt.s32.totalorder %v777, 512
        %vm810 = vcmp.lt.s32.totalorder %v778, 512
        %vm811 = vcmp.lt.s32.totalorder %v779, 512
        %vm812 = vcmp.lt.s32.totalorder %v780, 512
        %vm813 = vcmp.lt.s32.totalorder %v781, 512
        %vm814 = vcmp.lt.s32.totalorder %v782, 512
        %vm815 = vcmp.lt.s32.totalorder %v783, 512
        %vm816 = vcmp.lt.s32.totalorder %v784, 512
        %vm817 = vcmp.lt.s32.totalorder %v785, 512
        %vm818 = vcmp.lt.s32.totalorder %v786, 512
        %vm819 = vcmp.lt.s32.totalorder %v787, 512
        %vm820 = vcmp.lt.s32.totalorder %v788, 512
        %v821 = vsel %vm789, 1, 0
        %v822 = vsel %vm790, 1, 0
        %v823 = vsel %vm791, 1, 0
        %v824 = vsel %vm792, 1, 0
        %v825 = vsel %vm793, 1, 0
        %v826 = vsel %vm794, 1, 0
        %v827 = vsel %vm795, 1, 0
        %v828 = vsel %vm796, 1, 0
        %v829 = vsel %vm797, 1, 0
        %v830 = vsel %vm798, 1, 0
        %v831 = vsel %vm799, 1, 0
        %v832 = vsel %vm800, 1, 0
        %v833 = vsel %vm801, 1, 0
        %v834 = vsel %vm802, 1, 0
        %v835 = vsel %vm803, 1, 0
        %v836 = vsel %vm804, 1, 0
        %v837 = vsel %vm805, 1, 0
        %v838 = vsel %vm806, 1, 0
        %v839 = vsel %vm807, 1, 0
        %v840 = vsel %vm808, 1, 0
        %v841 = vsel %vm809, 1, 0
        %v842 = vsel %vm810, 1, 0
        %v843 = vsel %vm811, 1, 0
        %v844 = vsel %vm812, 1, 0
        %v845 = vsel %vm813, 1, 0
        %v846 = vsel %vm814, 1, 0
        %v847 = vsel %vm815, 1, 0
        %v848 = vsel %vm816, 1, 0
        %v849 = vsel %vm817, 1, 0
        %v850 = vsel %vm818, 1, 0
        %v851 = vsel %vm819, 1, 0
        %v852 = vsel %vm820, 1, 0
        %vm853 = vcmp.eq.s32.totalorder %v821, 1
        %vm854 = vcmp.eq.s32.totalorder %v822, 1
        %vm855 = vcmp.eq.s32.totalorder %v823, 1
        %vm856 = vcmp.eq.s32.totalorder %v824, 1
        %vm857 = vcmp.eq.s32.totalorder %v825, 1
        %vm858 = vcmp.eq.s32.totalorder %v826, 1
        %vm859 = vcmp.eq.s32.totalorder %v827, 1
        %vm860 = vcmp.eq.s32.totalorder %v828, 1
        %vm861 = vcmp.eq.s32.totalorder %v829, 1
        %vm862 = vcmp.eq.s32.totalorder %v830, 1
        %vm863 = vcmp.eq.s32.totalorder %v831, 1
        %vm864 = vcmp.eq.s32.totalorder %v832, 1
        %vm865 = vcmp.eq.s32.totalorder %v833, 1
        %vm866 = vcmp.eq.s32.totalorder %v834, 1
        %vm867 = vcmp.eq.s32.totalorder %v835, 1
        %vm868 = vcmp.eq.s32.totalorder %v836, 1
        %vm869 = vcmp.eq.s32.totalorder %v837, 1
        %vm870 = vcmp.eq.s32.totalorder %v838, 1
        %vm871 = vcmp.eq.s32.totalorder %v839, 1
        %vm872 = vcmp.eq.s32.totalorder %v840, 1
        %vm873 = vcmp.eq.s32.totalorder %v841, 1
        %vm874 = vcmp.eq.s32.totalorder %v842, 1
        %vm875 = vcmp.eq.s32.totalorder %v843, 1
        %vm876 = vcmp.eq.s32.totalorder %v844, 1
        %vm877 = vcmp.eq.s32.totalorder %v845, 1
        %vm878 = vcmp.eq.s32.totalorder %v846, 1
        %vm879 = vcmp.eq.s32.totalorder %v847, 1
        %vm880 = vcmp.eq.s32.totalorder %v848, 1
        %vm881 = vcmp.eq.s32.totalorder %v849, 1
        %vm882 = vcmp.eq.s32.totalorder %v850, 1
        %vm883 = vcmp.eq.s32.totalorder %v851, 1
        %vm884 = vcmp.eq.s32.totalorder %v852, 1
        %v885 = vsel %vm853, %v531, 0.0
        %v886 = vsel %vm854, %v536, 0.0
        %v887 = vsel %vm855, %v541, 0.0
        %v888 = vsel %vm856, %v546, 0.0
        %v889 = vsel %vm857, %v551, 0.0
        %v890 = vsel %vm858, %v556, 0.0
        %v891 = vsel %vm859, %v561, 0.0
        %v892 = vsel %vm860, %v566, 0.0
        %v893 = vsel %vm861, %v571, 0.0
        %v894 = vsel %vm862, %v576, 0.0
        %v895 = vsel %vm863, %v581, 0.0
        %v896 = vsel %vm864, %v586, 0.0
        %v897 = vsel %vm865, %v591, 0.0
        %v898 = vsel %vm866, %v596, 0.0
        %v899 = vsel %vm867, %v601, 0.0
        %v900 = vsel %vm868, %v606, 0.0
        %v901 = vsel %vm869, %v611, 0.0
        %v902 = vsel %vm870, %v616, 0.0
        %v903 = vsel %vm871, %v621, 0.0
        %v904 = vsel %vm872, %v626, 0.0
        %v905 = vsel %vm873, %v631, 0.0
        %v906 = vsel %vm874, %v636, 0.0
        %v907 = vsel %vm875, %v641, 0.0
        %v908 = vsel %vm876, %v646, 0.0
        %v909 = vsel %vm877, %v651, 0.0
        %v910 = vsel %vm878, %v656, 0.0
        %v911 = vsel %vm879, %v661, 0.0
        %v912 = vsel %vm880, %v666, 0.0
        %v913 = vsel %vm881, %v671, 0.0
        %v914 = vsel %vm882, %v676, 0.0
        %v915 = vsel %vm883, %v681, 0.0
        %v916 = vsel %vm884, %v686, 0.0
        %v917 = vsel %vm689, %v885, 0.0
        %v918 = vsel %vm689, %v886, 0.0
        %v919 = vadd.f32 %v917, %v918
        %v920 = vsel %vm689, %v887, 0.0
        %v921 = vadd.f32 %v919, %v920
        %v922 = vsel %vm689, %v888, 0.0
        %v923 = vadd.f32 %v921, %v922
        %v924 = vsel %vm689, %v889, 0.0
        %v925 = vadd.f32 %v923, %v924
        %v926 = vsel %vm689, %v890, 0.0
        %v927 = vadd.f32 %v925, %v926
        %v928 = vsel %vm689, %v891, 0.0
        %v929 = vadd.f32 %v927, %v928
        %v930 = vsel %vm689, %v892, 0.0
        %v931 = vadd.f32 %v929, %v930
        %v932 = vsel %vm689, %v893, 0.0
        %v933 = vadd.f32 %v931, %v932
        %v934 = vsel %vm689, %v894, 0.0
        %v935 = vadd.f32 %v933, %v934
        %v936 = vsel %vm689, %v895, 0.0
        %v937 = vadd.f32 %v935, %v936
        %v938 = vsel %vm689, %v896, 0.0
        %v939 = vadd.f32 %v937, %v938
        %v940 = vsel %vm689, %v897, 0.0
        %v941 = vadd.f32 %v939, %v940
        %v942 = vsel %vm689, %v898, 0.0
        %v943 = vadd.f32 %v941, %v942
        %v944 = vsel %vm689, %v899, 0.0
        %v945 = vadd.f32 %v943, %v944
        %v946 = vsel %vm689, %v900, 0.0
        %v947 = vadd.f32 %v945, %v946
        %v948 = vsel %vm689, %v901, 0.0
        %v949 = vadd.f32 %v947, %v948
        %v950 = vsel %vm689, %v902, 0.0
        %v951 = vadd.f32 %v949, %v950
        %v952 = vsel %vm689, %v903, 0.0
        %v953 = vadd.f32 %v951, %v952
        %v954 = vsel %vm689, %v904, 0.0
        %v955 = vadd.f32 %v953, %v954
        %v956 = vsel %vm689, %v905, 0.0
        %v957 = vadd.f32 %v955, %v956
        %v958 = vsel %vm689, %v906, 0.0
        %v959 = vadd.f32 %v957, %v958
        %v960 = vsel %vm689, %v907, 0.0
        %v961 = vadd.f32 %v959, %v960
        %v962 = vsel %vm689, %v908, 0.0
        %v963 = vadd.f32 %v961, %v962
        %v964 = vsel %vm689, %v909, 0.0
        %v965 = vadd.f32 %v963, %v964
        %v966 = vsel %vm689, %v910, 0.0
        %v967 = vadd.f32 %v965, %v966
        %v968 = vsel %vm689, %v911, 0.0
        %v969 = vadd.f32 %v967, %v968
        %v970 = vsel %vm689, %v912, 0.0
        %v971 = vadd.f32 %v969, %v970
        %v972 = vsel %vm689, %v913, 0.0
        %v973 = vadd.f32 %v971, %v972
        %v974 = vsel %vm689, %v914, 0.0
        %v975 = vadd.f32 %v973, %v974
        %v976 = vsel %vm689, %v915, 0.0
        %v977 = vadd.f32 %v975, %v976
        %v978 = vsel %vm689, %v916, 0.0
        %v979 = vadd.f32 %v977, %v978
        %v980 = vrot.slane %v979, 4
        %v981 = vadd.f32 %v979, %v980
        %v982 = vrot.slane %v981, 2
        %v983 = vadd.f32 %v981, %v982
        %v984 = vrot.slane %v983, 1
        %v985 = vadd.f32 %v983, %v984
        %v986 = vmul.f32 %v885, %v885
        %v987 = vmul.f32 %v886, %v886
        %v988 = vmul.f32 %v887, %v887
        %v989 = vmul.f32 %v888, %v888
        %v990 = vmul.f32 %v889, %v889
        %v991 = vmul.f32 %v890, %v890
        %v992 = vmul.f32 %v891, %v891
        %v993 = vmul.f32 %v892, %v892
        %v994 = vmul.f32 %v893, %v893
        %v995 = vmul.f32 %v894, %v894
        %v996 = vmul.f32 %v895, %v895
        %v997 = vmul.f32 %v896, %v896
        %v998 = vmul.f32 %v897, %v897
        %v999 = vmul.f32 %v898, %v898
        %v1000 = vmul.f32 %v899, %v899
        %v1001 = vmul.f32 %v900, %v900
        %v1002 = vmul.f32 %v901, %v901
        %v1003 = vmul.f32 %v902, %v902
        %v1004 = vmul.f32 %v903, %v903
        %v1005 = vmul.f32 %v904, %v904
        %v1006 = vmul.f32 %v905, %v905
        %v1007 = vmul.f32 %v906, %v906
        %v1008 = vmul.f32 %v907, %v907
        %v1009 = vmul.f32 %v908, %v908
        %v1010 = vmul.f32 %v909, %v909
        %v1011 = vmul.f32 %v910, %v910
        %v1012 = vmul.f32 %v911, %v911
        %v1013 = vmul.f32 %v912, %v912
        %v1014 = vmul.f32 %v913, %v913
        %v1015 = vmul.f32 %v914, %v914
        %v1016 = vmul.f32 %v915, %v915
        %v1017 = vmul.f32 %v916, %v916
        %v1018 = vsel %vm689, %v986, 0.0
        %v1019 = vsel %vm689, %v987, 0.0
        %v1020 = vadd.f32 %v1018, %v1019
        %v1021 = vsel %vm689, %v988, 0.0
        %v1022 = vadd.f32 %v1020, %v1021
        %v1023 = vsel %vm689, %v989, 0.0
        %v1024 = vadd.f32 %v1022, %v1023
        %v1025 = vsel %vm689, %v990, 0.0
        %v1026 = vadd.f32 %v1024, %v1025
        %v1027 = vsel %vm689, %v991, 0.0
        %v1028 = vadd.f32 %v1026, %v1027
        %v1029 = vsel %vm689, %v992, 0.0
        %v1030 = vadd.f32 %v1028, %v1029
        %v1031 = vsel %vm689, %v993, 0.0
        %v1032 = vadd.f32 %v1030, %v1031
        %v1033 = vsel %vm689, %v994, 0.0
        %v1034 = vadd.f32 %v1032, %v1033
        %v1035 = vsel %vm689, %v995, 0.0
        %v1036 = vadd.f32 %v1034, %v1035
        %v1037 = vsel %vm689, %v996, 0.0
        %v1038 = vadd.f32 %v1036, %v1037
        %v1039 = vsel %vm689, %v997, 0.0
        %v1040 = vadd.f32 %v1038, %v1039
        %v1041 = vsel %vm689, %v998, 0.0
        %v1042 = vadd.f32 %v1040, %v1041
        %v1043 = vsel %vm689, %v999, 0.0
        %v1044 = vadd.f32 %v1042, %v1043
        %v1045 = vsel %vm689, %v1000, 0.0
        %v1046 = vadd.f32 %v1044, %v1045
        %v1047 = vsel %vm689, %v1001, 0.0
        %v1048 = vadd.f32 %v1046, %v1047
        %v1049 = vsel %vm689, %v1002, 0.0
        %v1050 = vadd.f32 %v1048, %v1049
        %v1051 = vsel %vm689, %v1003, 0.0
        %v1052 = vadd.f32 %v1050, %v1051
        %v1053 = vsel %vm689, %v1004, 0.0
        %v1054 = vadd.f32 %v1052, %v1053
        %v1055 = vsel %vm689, %v1005, 0.0
        %v1056 = vadd.f32 %v1054, %v1055
        %v1057 = vsel %vm689, %v1006, 0.0
        %v1058 = vadd.f32 %v1056, %v1057
        %v1059 = vsel %vm689, %v1007, 0.0
        %v1060 = vadd.f32 %v1058, %v1059
        %v1061 = vsel %vm689, %v1008, 0.0
        %v1062 = vadd.f32 %v1060, %v1061
        %v1063 = vsel %vm689, %v1009, 0.0
        %v1064 = vadd.f32 %v1062, %v1063
        %v1065 = vsel %vm689, %v1010, 0.0
        %v1066 = vadd.f32 %v1064, %v1065
        %v1067 = vsel %vm689, %v1011, 0.0
        %v1068 = vadd.f32 %v1066, %v1067
        %v1069 = vsel %vm689, %v1012, 0.0
        %v1070 = vadd.f32 %v1068, %v1069
        %v1071 = vsel %vm689, %v1013, 0.0
        %v1072 = vadd.f32 %v1070, %v1071
        %v1073 = vsel %vm689, %v1014, 0.0
        %v1074 = vadd.f32 %v1072, %v1073
        %v1075 = vsel %vm689, %v1015, 0.0
        %v1076 = vadd.f32 %v1074, %v1075
        %v1077 = vsel %vm689, %v1016, 0.0
        %v1078 = vadd.f32 %v1076, %v1077
        %v1079 = vsel %vm689, %v1017, 0.0
        %v1080 = vadd.f32 %v1078, %v1079
        %v1081 = vrot.slane %v1080, 4
        %v1082 = vadd.f32 %v1080, %v1081
        %v1083 = vrot.slane %v1082, 2
        %v1084 = vadd.f32 %v1082, %v1083
        %v1085 = vrot.slane %v1084, 1
        %v1086 = vadd.f32 %v1084, %v1085
        %vm1087 = vcmask 1040384
        %v1088 = vsel %vm1087, %v985, %v1086
        %vm1089 = vcmask 123904
        %1090 = vst.msk [vmem:[%s251] sm:$0x3] %vm1089, %v1088
        %s1091 = smul.u32 32, %s18
        %p1092 = scmp.lt.s32.totalorder %s1091, 63
        %s1093 = scalar_select %p1092, %s1091, 63
        %s1094 = smul.addr %s1093, 8
        %s1095 = scalar_lea.vmem %s4, %s1094
        %p1096 = scmp.lt.s32.totalorder %s18, 1
        %s1097 = scalar_select %p1096, %s18, 1
        %s1098 = smul.addr %s1097, 2
        %s1099 = scalar_lea.vmem %s5, %s1098
        // Predicated region
        $region41: #{residual_layer_forward.8} parent=35 // pred_check
          %p1100 = pneg %p125
        $region42: #{residual_layer_forward.8} parent=35 // pred_check_branch
          %1102 = sbr.rel (%p1100) target = $region44
        $region43: #{residual_layer_forward.8} parent=35 // pred_region
          %s1103 = smul.u32 32, %s18
        $region44: #{residual_layer_forward.8} parent=35 // pred_fallthru
          _
        // Predicated region
        $region45: #{residual_layer_forward.8} parent=35 // pred_check
          %p1104 = pneg %p151
        $region46: #{residual_layer_forward.8} parent=35 // pred_check_branch
          %1106 = sbr.rel (%p1104) target = $region48
        $region47: #{residual_layer_forward.8} parent=35 // pred_region
          _
        $region48: #{residual_layer_forward.8} parent=35 // pred_fallthru
          _
      $region36: #{residual_layer_forward.8} parent=5 // pred_fallthru
        _
      %p1107 = scmp.le.s32.totalorder 2, %s13
      // Predicated region
      $region49: #{residual_layer_forward.8} parent=5 // pred_check
        %p1108 = pneg %p1107
      $region50: #{residual_layer_forward.8} parent=5 // pred_check_branch
        %1110 = sbr.rel (%p1108) target = $region52
      $region51: #{residual_layer_forward.8} parent=5 // pred_region
        %s1111 = ssub.s32 %s13, 2
        // Predicated region
        $region53: #{residual_layer_forward.8} parent=51 // pred_check
          %p1112 = pneg %p131
        $region54: #{residual_layer_forward.8} parent=51 // pred_check_branch
          %1114 = sbr.rel (%p1112) target = $region56
        $region55: #{residual_layer_forward.8} parent=51 // pred_region
          %s1115 = smul.u32 32, %s19
          %p1116 = scmp.lt.s32.totalorder %s1115, 63
          %s1117 = scalar_select %p1116, %s1115, 63
          %s1118 = smul.addr %s1117, 8
          %s1119 = scalar_lea.vmem %s4, %s1118
        $region56: #{residual_layer_forward.8} parent=51 // pred_fallthru
          _
        // Predicated region
        $region57: #{residual_layer_forward.8} parent=51 // pred_check
          %p1120 = pneg %p157
        $region58: #{residual_layer_forward.8} parent=51 // pred_check_branch
          %1122 = sbr.rel (%p1120) target = $region60
        $region59: #{residual_layer_forward.8} parent=51 // pred_region
          %p1123 = scmp.lt.s32.totalorder %s19, 1
          %s1124 = scalar_select %p1123, %s19, 1
          %s1125 = smul.addr %s1124, 2
          %s1126 = scalar_lea.vmem %s5, %s1125
        $region60: #{residual_layer_forward.8} parent=51 // pred_fallthru
          _
      $region52: #{residual_layer_forward.8} parent=5 // pred_fallthru
        _
    $region6: #{residual_layer_forward.8} parent=1 // loop_footer
      %s17 = sadd.s32 1, %s13
    $region7: #{residual_layer_forward.8} parent=1 // loop_footer_branch
      %12 = sbr.rel target = $region3
    $region8: #{residual_layer_forward.8} parent=1 // loop_exit
      _
    %1127 = vsyncpa [#allocation3], 1
    %s1128 = scalar_lea.sflag [#allocation3], 1
    %1129 = vsyncpa %s1128, 1

// kernel: residual_layer_forward.5
$region0: #{residual_layer_forward.5}
  #allocation0 [shape = 'u32[]', space=smem, size = 0x4, offset = 0x4, fixed_abs, tag = 'smem constant byte address 0x4 - core index']
  #allocation1 [shape = 'u32[144,128]{1,0:T(1,128)}', space=vmem, size = 0x12000, scoped, tag = 'internal scratch']
  %s0 = inlined_call_operand.vmem [shape: f32[512,4], index: 0, kind: input, shape index: {}]
  %s1 = inlined_call_operand.hbm [shape: f32[4,8], index: 1, kind: input, shape index: {}]
  %s2 = inlined_call_operand.vmem [shape: f32[1,4], index: 2, kind: input, shape index: {}]
  %s3 = inlined_call_operand.vmem [shape: f32[1,4], index: 3, kind: input, shape index: {}]
  %s4 = inlined_call_operand.vmem [shape: f32[512,8], index: 4, kind: output, shape index: {0}]
  %s5 = inlined_call_operand.vmem [shape: f32[2,2,8], index: 5, kind: output, shape index: {1}]
  %6 = xla_tuple %s4, %s5
  %s7 = sld [smem:[#allocation0]]
  $region61: #{residual_layer_forward.5} parent=0
    _
  %s9 = ssub.s32 1, %s7
  %s10 = scalar_select 0, %s9, %s7
  $region1: #{residual_layer_forward.5} parent=0
    #allocation2 [shape = 'u8[2048]{0}', space=vmem, size = 0x800, scoped, tag = 'input window, operand 1, single buffered']
    #allocation3 [shape = 's32[2]{0}', space=sflag, size = 0x8, scoped, tag = 'scoped memory for residual_layer_forward.5']
    %11 = vsyncpa [#allocation3], 0
    loop: start=0, step=1, limit=4
    $region2: #{residual_layer_forward.5} parent=1 // loop_pre_header
      _
    $region3: #{residual_layer_forward.5} parent=1 // loop_header
      %s13 = sphi 0, %s17
      %p14 = scmp.ge.s32.totalorder %s13, 4
      %s23 = sphi 0, %s25
      %s26 = sphi 0, %s23
      %s27 = sphi 0, %s26
      %s43 = sphi 0, %s27
      %s47 = sphi 0, %s47
      %s49 = sphi 0, %s47
      %s50 = sphi 0, %s49
      %s64 = sphi 0, %s50
      %s68 = sphi 0, %s68
      %s70 = sphi 0, %s68
      %s71 = sphi 0, %s70
      %s85 = sphi 0, %s71
      %s89 = sphi 0, %s89
      %s91 = sphi 0, %s89
      %s92 = sphi 0, %s91
      %s106 = sphi 0, %s92
      %s112 = sphi 0, %s114
      %s115 = sphi 0, %s112
      %s116 = sphi 0, %s115
      %s132 = sphi 0, %s116
      %s138 = sphi 0, %s140
      %s141 = sphi 0, %s138
      %s142 = sphi 0, %s141
      %s158 = sphi 0, %s142
    $region4: #{residual_layer_forward.5} parent=1 // loop_header_branch
      %16 = sbr.rel (%p14) target = $region8
    $region5: #{residual_layer_forward.5} parent=1 // loop_body
      %s18 = ssub.s32 %s13, 1
      %s19 = ssub.s32 %s13, 2
      %s20 = sadd.s32 %s13, 1
      %s21 = ssub.s32 %s13, %s20
      %p22 = scmp.eq.s32.totalorder %s21, 0
      %s24 = sadd.s32 %s23, 1
      %s25 = scalar_select %p22, %s23, %s24
      %p28 = pneg %p22
      %p29 = scmp.eq.s32.totalorder %s13, 1
      %p30 = por %p28, %p29
      %p31 = scmp.ne.s32.totalorder %s23, %s26
      %p32 = scmp.eq.s32.totalorder %s13, 0
      %p33 = por %p31, %p32
      %p34 = scmp.ne.s32.totalorder %s23, %s26
      %p35 = scmp.eq.s32.totalorder %s18, 1
      %p36 = por %p34, %p35
      %p37 = scmp.ne.s32.totalorder %s26, %s27
      %p38 = scmp.eq.s32.totalorder %s18, 0
      %p39 = por %p37, %p38
      %p40 = scmp.ne.s32.totalorder %s26, %s27
      %p41 = scmp.eq.s32.totalorder %s19, 1
      %p42 = por %p40, %p41
      %p44 = scmp.ne.s32.totalorder %s27, %s43
      %p45 = scmp.eq.s32.totalorder %s19, 0
      %p46 = por %p44, %p45
      %s48 = sadd.s32 %s47, 1
      %p51 = scmp.eq.s32.totalorder %s13, 1
      %p52 = scmp.ne.s32.totalorder %s47, %s49
      %p53 = scmp.eq.s32.totalorder %s13, 0
      %p54 = por %p52, %p53
      %p55 = scmp.ne.s32.totalorder %s47, %s49
      %p56 = scmp.eq.s32.totalorder %s18, 1
      %p57 = por %p55, %p56
      %p58 = scmp.ne.s32.totalorder %s49, %s50
      %p59 = scmp.eq.s32.totalorder %s18, 0
      %p60 = por %p58, %p59
      %p61 = scmp.ne.s32.totalorder %s49, %s50
      %p62 = scmp.eq.s32.totalorder %s19, 1
      %p63 = por %p61, %p62
      %p65 = scmp.ne.s32.totalorder %s50, %s64
      %p66 = scmp.eq.s32.totalorder %s19, 0
      %p67 = por %p65, %p66
      %s69 = sadd.s32 %s68, 1
      %p72 = scmp.eq.s32.totalorder %s13, 1
      %p73 = scmp.ne.s32.totalorder %s68, %s70
      %p74 = scmp.eq.s32.totalorder %s13, 0
      %p75 = por %p73, %p74
      %p76 = scmp.ne.s32.totalorder %s68, %s70
      %p77 = scmp.eq.s32.totalorder %s18, 1
      %p78 = por %p76, %p77
      %p79 = scmp.ne.s32.totalorder %s70, %s71
      %p80 = scmp.eq.s32.totalorder %s18, 0
      %p81 = por %p79, %p80
      %p82 = scmp.ne.s32.totalorder %s70, %s71
      %p83 = scmp.eq.s32.totalorder %s19, 1
      %p84 = por %p82, %p83
      %p86 = scmp.ne.s32.totalorder %s71, %s85
      %p87 = scmp.eq.s32.totalorder %s19, 0
      %p88 = por %p86, %p87
      %s90 = sadd.s32 %s89, 1
      %p93 = scmp.eq.s32.totalorder %s13, 1
      %p94 = scmp.ne.s32.totalorder %s89, %s91
      %p95 = scmp.eq.s32.totalorder %s13, 0
      %p96 = por %p94, %p95
      %p97 = scmp.ne.s32.totalorder %s89, %s91
      %p98 = scmp.eq.s32.totalorder %s18, 1
      %p99 = por %p97, %p98
      %p100 = scmp.ne.s32.totalorder %s91, %s92
      %p101 = scmp.eq.s32.totalorder %s18, 0
      %p102 = por %p100, %p101
      %p103 = scmp.ne.s32.totalorder %s91, %s92
      %p104 = scmp.eq.s32.totalorder %s19, 1
      %p105 = por %p103, %p104
      %p107 = scmp.ne.s32.totalorder %s92, %s106
      %p108 = scmp.eq.s32.totalorder %s19, 0
      %p109 = por %p107, %p108
      %s110 = ssub.s32 %s13, %s20
      %p111 = scmp.eq.s32.totalorder %s110, 0
      %s113 = sadd.s32 %s112, 1
      %s114 = scalar_select %p111, %s112, %s113
      %p117 = pneg %p111
      %p118 = scmp.eq.s32.totalorder %s13, 1
      %p119 = por %p117, %p118
      %p120 = scmp.ne.s32.totalorder %s112, %s115
      %p121 = scmp.eq.s32.totalorder %s13, 0
      %p122 = por %p120, %p121
      %p123 = scmp.ne.s32.totalorder %s112, %s115
      %p124 = scmp.eq.s32.totalorder %s18, 1
      %p125 = por %p123, %p124
      %p126 = scmp.ne.s32.totalorder %s115, %s116
      %p127 = scmp.eq.s32.totalorder %s18, 0
      %p128 = por %p126, %p127
      %p129 = scmp.ne.s32.totalorder %s115, %s116
      %p130 = scmp.eq.s32.totalorder %s19, 1
      %p131 = por %p129, %p130
      %p133 = scmp.ne.s32.totalorder %s116, %s132
      %p134 = scmp.eq.s32.totalorder %s19, 0
      %p135 = por %p133, %p134
      %s136 = ssub.s32 %s13, %s20
      %p137 = scmp.eq.s32.totalorder %s136, 0
      %s139 = sadd.s32 %s138, 1
      %s140 = scalar_select %p137, %s138, %s139
      %p143 = pneg %p137
      %p144 = scmp.eq.s32.totalorder %s13, 1
      %p145 = por %p143, %p144
      %p146 = scmp.ne.s32.totalorder %s138, %s141
      %p147 = scmp.eq.s32.totalorder %s13, 0
      %p148 = por %p146, %p147
      %p149 = scmp.ne.s32.totalorder %s138, %s141
      %p150 = scmp.eq.s32.totalorder %s18, 1
      %p151 = por %p149, %p150
      %p152 = scmp.ne.s32.totalorder %s141, %s142
      %p153 = scmp.eq.s32.totalorder %s18, 0
      %p154 = por %p152, %p153
      %p155 = scmp.ne.s32.totalorder %s141, %s142
      %p156 = scmp.eq.s32.totalorder %s19, 1
      %p157 = por %p155, %p156
      %p159 = scmp.ne.s32.totalorder %s142, %s158
      %p160 = scmp.eq.s32.totalorder %s19, 0
      %p161 = por %p159, %p160
      %p162 = scmp.le.s32.totalorder 1, %s13
      %p163 = scmp.lt.s32.totalorder %s13, 3
      %p164 = pnand %p162, %p163
      %p165 = pneg %p164
      // Predicated region
      $region9: #{residual_layer_forward.5} parent=5 // pred_check
        _
      $region10: #{residual_layer_forward.5} parent=5 // pred_check_branch
        %167 = sbr.rel (%p164) target = $region12
      $region11: #{residual_layer_forward.5} parent=5 // pred_region
        %s168 = ssub.s32 %s13, 1
        // Predicated region
        $region13: #{residual_layer_forward.5} parent=11 // pred_check
          %p169 = pneg %p60
        $region14: #{residual_layer_forward.5} parent=11 // pred_check_branch
          %171 = sbr.rel (%p169) target = $region16
        $region15: #{residual_layer_forward.5} parent=11 // pred_region
          %s173 = ssub.s32 64, 64
          %174 = vsyncadd [#allocation3], %s173
          %s176 = sshll.u32 [#allocation2], 4
          %s177 = int_to_ptr.vmem [resolvable:$true] %s176
          %179 = dma.hbm_to_vmem [thread:$0]  %s1, 64, %s177, [#allocation3]
        $region16: #{residual_layer_forward.5} parent=11 // pred_fallthru
          _
        // Predicated region
        $region17: #{residual_layer_forward.5} parent=11 // pred_check
          %p180 = pneg %p81
        $region18: #{residual_layer_forward.5} parent=11 // pred_check_branch
          %182 = sbr.rel (%p180) target = $region20
        $region19: #{residual_layer_forward.5} parent=11 // pred_region
          _
        $region20: #{residual_layer_forward.5} parent=11 // pred_fallthru
          _
        // Predicated region
        $region21: #{residual_layer_forward.5} parent=11 // pred_check
          %p183 = pneg %p102
        $region22: #{residual_layer_forward.5} parent=11 // pred_check_branch
          %185 = sbr.rel (%p183) target = $region24
        $region23: #{residual_layer_forward.5} parent=11 // pred_region
          _
        $region24: #{residual_layer_forward.5} parent=11 // pred_fallthru
          _
      $region12: #{residual_layer_forward.5} parent=5 // pred_fallthru
        _
      %p186 = scmp.lt.s32.totalorder %s13, 2
      // Predicated region
      $region25: #{residual_layer_forward.5} parent=5 // pred_check
        %p187 = pneg %p186
      $region26: #{residual_layer_forward.5} parent=5 // pred_check_branch
        %189 = sbr.rel (%p187) target = $region28
      $region27: #{residual_layer_forward.5} parent=5 // pred_region
        // Predicated region
        $region29: #{residual_layer_forward.5} parent=27 // pred_check
          %p190 = pneg %p33
        $region30: #{residual_layer_forward.5} parent=27 // pred_check_branch
          %192 = sbr.rel (%p190) target = $region32
        $region31: #{residual_layer_forward.5} parent=27 // pred_region
          %s193 = smul.u32 32, %s13
          %p194 = scmp.lt.s32.totalorder %s193, 63
          %s195 = scalar_select %p194, %s193, 63
          %s196 = smul.addr %s195, 8
          %s197 = scalar_lea.vmem %s0, %s196
          %s198 = smul.u32 32, %s13
        $region32: #{residual_layer_forward.5} parent=27 // pred_fallthru
          _
      $region28: #{residual_layer_forward.5} parent=5 // pred_fallthru
        _
      %p199 = scmp.le.s32.totalorder 1, %s13
      %p200 = scmp.lt.s32.totalorder %s13, 3
      %p201 = pnand %p199, %p200
      %p202 = pneg %p201
      // Predicated region
      $region33: #{residual_layer_forward.5} parent=5 // pred_check
        _
      $region34: #{residual_layer_forward.5} parent=5 // pred_check_branch
        %204 = sbr.rel (%p201) target = $region36
      $region35: #{residual_layer_forward.5} parent=5 // pred_region
        %s205 = ssub.s32 %s13, 1
        // Predicated region
        $region37: #{residual_layer_forward.5} parent=35 // pred_check
          %p206 = pneg %p60
        $region38: #{residual_layer_forward.5} parent=35 // pred_check_branch
          %208 = sbr.rel (%p206) target = $region40
        $region39: #{residual_layer_forward.5} parent=35 // pred_region
          %209 = dma.done [#allocation3], 64
        $region40: #{residual_layer_forward.5} parent=35 // pred_fallthru
          _
        %s210 = smul.u32 32, %s18
        %p211 = scmp.lt.s32.totalorder %s210, 63
        %s212 = scalar_select %p211, %s210, 63
        %s213 = smul.addr %s212, 8
        %s214 = scalar_lea.vmem %s0, %s213
        %p215 = pneg %p39
        %p216 = pneg %p36
        %p217 = pneg %p60
        %p218 = pneg %p57
        %p219 = pneg %p81
        %p220 = pneg %p78
        %p221 = pneg %p102
        %p222 = pneg %p99
        %p223 = pneg %p128
        %p224 = pneg %p125
        %s225 = smul.u32 32, %s18
        %p226 = scmp.lt.s32.totalorder %s225, 63
        %s227 = scalar_select %p226, %s225, 63
        %s228 = smul.addr %s227, 8
        %s229 = scalar_lea.vmem %s4, %s228
        %p230 = pneg %p154
        %p231 = pneg %p151
        %p232 = scmp.lt.s32.totalorder %s18, 1
        %s233 = scalar_select %p232, %s18, 1
        %s234 = smul.addr %s233, 2
        %s235 = scalar_lea.vmem %s5, %s234
        %s236 = smul.u32 32, %s18
        %p237 = scmp.lt.s32.totalorder %s236, 63
        %s238 = scalar_select %p237, %s236, 63
        %s239 = smul.addr %s238, 8
        %s240 = scalar_lea.vmem %s0, %s239
        %s241 = smul.u32 32, %s18
        %s242 = smul.u32 32, %s18
        %p243 = scmp.lt.s32.totalorder %s242, 63
        %s244 = scalar_select %p243, %s242, 63
        %s245 = smul.addr %s244, 8
        %s246 = scalar_lea.vmem %s4, %s245
        %s247 = smul.u32 32, %s18
        %p248 = scmp.lt.s32.totalorder %s18, 1
        %s249 = scalar_select %p248, %s18, 1
        %s250 = smul.addr %s249, 2
        %s251 = scalar_lea.vmem %s5, %s250
        %v252 = vld [vmem:[%s240] sm:$0xff]
        %v253 = vld [vmem:[%s240 + $0x8] sm:$0xff]
        %v254 = vld [vmem:[%s240 + $0x10] sm:$0xff]
        %v255 = vld [vmem:[%s240 + $0x18] sm:$0xff]
        %v256 = vld [vmem:[%s240 + $0x20] sm:$0xff]
        %v257 = vld [vmem:[%s240 + $0x28] sm:$0xff]
        %v258 = vld [vmem:[%s240 + $0x30] sm:$0xff]
        %v259 = vld [vmem:[%s240 + $0x38] sm:$0xff]
        %v260 = vld [vmem:[%s240 + $0x40] sm:$0xff]
        %v261 = vld [vmem:[%s240 + $0x48] sm:$0xff]
        %v262 = vld [vmem:[%s240 + $0x50] sm:$0xff]
        %v263 = vld [vmem:[%s240 + $0x58] sm:$0xff]
        %v264 = vld [vmem:[%s240 + $0x60] sm:$0xff]
        %v265 = vld [vmem:[%s240 + $0x68] sm:$0xff]
        %v266 = vld [vmem:[%s240 + $0x70] sm:$0xff]
        %v267 = vld [vmem:[%s240 + $0x78] sm:$0xff]
        %v268 = vld [vmem:[%s240 + $0x80] sm:$0xff]
        %v269 = vld [vmem:[%s240 + $0x88] sm:$0xff]
        %v270 = vld [vmem:[%s240 + $0x90] sm:$0xff]
        %v271 = vld [vmem:[%s240 + $0x98] sm:$0xff]
        %v272 = vld [vmem:[%s240 + $0xa0] sm:$0xff]
        %v273 = vld [vmem:[%s240 + $0xa8] sm:$0xff]
        %v274 = vld [vmem:[%s240 + $0xb0] sm:$0xff]
        %v275 = vld [vmem:[%s240 + $0xb8] sm:$0xff]
        %v276 = vld [vmem:[%s240 + $0xc0] sm:$0xff]
        %v277 = vld [vmem:[%s240 + $0xc8] sm:$0xff]
        %v278 = vld [vmem:[%s240 + $0xd0] sm:$0xff]
        %v279 = vld [vmem:[%s240 + $0xd8] sm:$0xff]
        %v280 = vld [vmem:[%s240 + $0xe0] sm:$0xff]
        %v281 = vld [vmem:[%s240 + $0xe8] sm:$0xff]
        %v282 = vld [vmem:[%s240 + $0xf0] sm:$0xff]
        %v283 = vld [vmem:[%s240 + $0xf8] sm:$0xff]
        %v284 = vld [vmem:[%s2] sm:$0x1]
        %v286 = vlaneseq
        %v287 = vshrl.u32 %v286, 7
        %v288 = vsub.s32 0, %v287
        %v289 = vrot.slane %v284, %v288
        %v291 = vmul.f32 %v252, %v289
        %v292 = vmul.f32 %v253, %v289
        %v293 = vmul.f32 %v254, %v289
        %v294 = vmul.f32 %v255, %v289
        %v295 = vmul.f32 %v256, %v289
        %v296 = vmul.f32 %v257, %v289
        %v297 = vmul.f32 %v258, %v289
        %v298 = vmul.f32 %v259, %v289
        %v299 = vmul.f32 %v260, %v289
        %v300 = vmul.f32 %v261, %v289
        %v301 = vmul.f32 %v262, %v289
        %v302 = vmul.f32 %v263, %v289
        %v303 = vmul.f32 %v264, %v289
        %v304 = vmul.f32 %v265, %v289
        %v305 = vmul.f32 %v266, %v289
        %v306 = vmul.f32 %v267, %v289
        %v307 = vmul.f32 %v268, %v289
        %v308 = vmul.f32 %v269, %v289
        %v309 = vmul.f32 %v270, %v289
        %v310 = vmul.f32 %v271, %v289
        %v311 = vmul.f32 %v272, %v289
        %v312 = vmul.f32 %v273, %v289
        %v313 = vmul.f32 %v274, %v289
        %v314 = vmul.f32 %v275, %v289
        %v315 = vmul.f32 %v276, %v289
        %v316 = vmul.f32 %v277, %v289
        %v317 = vmul.f32 %v278, %v289
        %v318 = vmul.f32 %v279, %v289
        %v319 = vmul.f32 %v280, %v289
        %v320 = vmul.f32 %v281, %v289
        %v321 = vmul.f32 %v282, %v289
        %v322 = vmul.f32 %v283, %v289
        %v323 = vld [vmem:[%s3] sm:$0x1]
        %v325 = vlaneseq
        %v326 = vshrl.u32 %v325, 7
        %v327 = vsub.s32 0, %v326
        %v328 = vrot.slane %v323, %v327
        %v330 = vadd.f32 %v291, %v328
        %v331 = vadd.f32 %v292, %v328
        %v332 = vadd.f32 %v293, %v328
        %v333 = vadd.f32 %v294, %v328
        %v334 = vadd.f32 %v295, %v328
        %v335 = vadd.f32 %v296, %v328
        %v336 = vadd.f32 %v297, %v328
        %v337 = vadd.f32 %v298, %v328
        %v338 = vadd.f32 %v299, %v328
        %v339 = vadd.f32 %v300, %v328
        %v340 = vadd.f32 %v301, %v328
        %v341 = vadd.f32 %v302, %v328
        %v342 = vadd.f32 %v303, %v328
        %v343 = vadd.f32 %v304, %v328
        %v344 = vadd.f32 %v305, %v328
        %v345 = vadd.f32 %v306, %v328
        %v346 = vadd.f32 %v307, %v328
        %v347 = vadd.f32 %v308, %v328
        %v348 = vadd.f32 %v309, %v328
        %v349 = vadd.f32 %v310, %v328
        %v350 = vadd.f32 %v311, %v328
        %v351 = vadd.f32 %v312, %v328
        %v352 = vadd.f32 %v313, %v328
        %v353 = vadd.f32 %v314, %v328
        %v354 = vadd.f32 %v315, %v328
        %v355 = vadd.f32 %v316, %v328
        %v356 = vadd.f32 %v317, %v328
        %v357 = vadd.f32 %v318, %v328
        %v358 = vadd.f32 %v319, %v328
        %v359 = vadd.f32 %v320, %v328
        %v360 = vadd.f32 %v321, %v328
        %v361 = vadd.f32 %v322, %v328
        %v362 = vld [vmem:[#allocation2] sm:$0xf]
        %vm363 = vcmask 31744
        %v365 = vsel %vm363, %v330, 0
        %v368 = vsel %vm363, %v331, 0
        %v371 = vsel %vm363, %v332, 0
        %v374 = vsel %vm363, %v333, 0
        %v377 = vsel %vm363, %v334, 0
        %v380 = vsel %vm363, %v335, 0
        %v383 = vsel %vm363, %v336, 0
        %v386 = vsel %vm363, %v337, 0
        %v389 = vsel %vm363, %v338, 0
        %v392 = vsel %vm363, %v339, 0
        %v395 = vsel %vm363, %v340, 0
        %v398 = vsel %vm363, %v341, 0
        %v401 = vsel %vm363, %v342, 0
        %v404 = vsel %vm363, %v343, 0
        %v407 = vsel %vm363, %v344, 0
        %v410 = vsel %vm363, %v345, 0
        %v413 = vsel %vm363, %v346, 0
        %v416 = vsel %vm363, %v347, 0
        %v419 = vsel %vm363, %v348, 0
        %v422 = vsel %vm363, %v349, 0
        %v425 = vsel %vm363, %v350, 0
        %v428 = vsel %vm363, %v351, 0
        %v431 = vsel %vm363, %v352, 0
        %v434 = vsel %vm363, %v353, 0
        %v437 = vsel %vm363, %v354, 0
        %v440 = vsel %vm363, %v355, 0
        %v443 = vsel %vm363, %v356, 0
        %v446 = vsel %vm363, %v357, 0
        %v449 = vsel %vm363, %v358, 0
        %v452 = vsel %vm363, %v359, 0
        %v455 = vsel %vm363, %v360, 0
        %v458 = vsel %vm363, %v361, 0
        %vm460 = vcmask 1043456
        %v462 = vsel %vm460, %v362, 0
        %464 = vmatprep.subr.mxu0 0.0
        %465 = vmatpush1.msra.mxu0 0.0
        %466 = vmatprep.subr.mxu0 0.0
        %467 = vmatpush1.msra.mxu0 0.0
        %468 = vmatprep.subr.mxu0 0.0
        %469 = vmatpush1.msra.mxu0 0.0
        %470 = vmatprep.subr.mxu0 0.0
        %471 = vmatpush1.msra.mxu0 0.0
        %472 = vmatprep.subr.mxu0 0.0
        %473 = vmatpush1.msra.mxu0 0.0
        %474 = vmatprep.subr.mxu0 0.0
        %475 = vmatpush1.msra.mxu0 0.0
        %476 = vmatprep.subr.mxu0 0.0
        %477 = vmatpush1.msra.mxu0 0.0
        %478 = vmatprep.subr.mxu0 0.0
        %479 = vmatpush1.msra.mxu0 0.0
        %480 = vmatprep.subr.mxu0 0.0
        %481 = vmatpush1.msra.mxu0 0.0
        %482 = vmatprep.subr.mxu0 0.0
        %483 = vmatpush1.msra.mxu0 0.0
        %484 = vmatprep.subr.mxu0 0.0
        %485 = vmatpush1.msra.mxu0 0.0
        %486 = vmatprep.subr.mxu0 0.0
        %487 = vmatpush1.msra.mxu0 0.0
        %488 = vmatprep.subr.mxu0 0.0
        %489 = vmatpush1.msra.mxu0 0.0
        %490 = vmatprep.subr.mxu0 0.0
        %491 = vmatpush1.msra.mxu0 0.0
        %492 = vmatprep.subr.mxu0 0.0
        %493 = vmatpush1.msra.mxu0 0.0
        %494 = vmatprep.subr.mxu0 0.0
        %495 = vmatpush1.msra.mxu0 %v462
        %496 = vmatprep.subr.mxu0 0.0
        %497 = vmatpush2.msra.mxu0 0.0
        %498 = vmatprep.subr.mxu0 0.0
        %499 = vmatpush2.msra.mxu0 0.0
        %500 = vmatprep.subr.mxu0 0.0
        %501 = vmatpush2.msra.mxu0 0.0
        %502 = vmatprep.subr.mxu0 0.0
        %503 = vmatpush2.msra.mxu0 0.0
        %504 = vmatprep.subr.mxu0 0.0
        %505 = vmatpush2.msra.mxu0 0.0
        %506 = vmatprep.subr.mxu0 0.0
        %507 = vmatpush2.msra.mxu0 0.0
        %508 = vmatprep.subr.mxu0 0.0
        %509 = vmatpush2.msra.mxu0 0.0
        %510 = vmatprep.subr.mxu0 0.0
        %511 = vmatpush2.msra.mxu0 0.0
        %512 = vmatprep.subr.mxu0 0.0
        %513 = vmatpush2.msra.mxu0 0.0
        %514 = vmatprep.subr.mxu0 0.0
        %515 = vmatpush2.msra.mxu0 0.0
        %516 = vmatprep.subr.mxu0 0.0
        %517 = vmatpush2.msra.mxu0 0.0
        %518 = vmatprep.subr.mxu0 0.0
        %519 = vmatpush2.msra.mxu0 0.0
        %520 = vmatprep.subr.mxu0 0.0
        %521 = vmatpush2.msra.mxu0 0.0
        %522 = vmatprep.subr.mxu0 0.0
        %523 = vmatpush2.msra.mxu0 0.0
        %524 = vmatprep.subr.mxu0 0.0
        %525 = vmatpush2.msra.mxu0 0.0
        %526 = vmatprep.subr.mxu0 0.0
        %527 = vmatpush2.msra.mxu0 0.0
        %528 = vmatprep.mubr.f32.mxu0 0.0
        %529 = vmatmul.mubr.f32.gmra.mxu0 %v365
        %v530 = vpop.f32.mrf.mxu0
        %v531 = vadd.f32 0.0, %v530
        %v532 = vpop.f32.mrf.mxu0
        %533 = vmatprep.mubr.f32.mxu0 0.0
        %534 = vmatmul.mubr.f32.gmra.mxu0 %v368
        %v535 = vpop.f32.mrf.mxu0
        %v536 = vadd.f32 0.0, %v535
        %v537 = vpop.f32.mrf.mxu0
        %538 = vmatprep.mubr.f32.mxu0 0.0
        %539 = vmatmul.mubr.f32.gmra.mxu0 %v371
        %v540 = vpop.f32.mrf.mxu0
        %v541 = vadd.f32 0.0, %v540
        %v542 = vpop.f32.mrf.mxu0
        %543 = vmatprep.mubr.f32.mxu0 0.0
        %544 = vmatmul.mubr.f32.gmra.mxu0 %v374
        %v545 = vpop.f32.mrf.mxu0
        %v546 = vadd.f32 0.0, %v545
        %v547 = vpop.f32.mrf.mxu0
        %548 = vmatprep.mubr.f32.mxu0 0.0
        %549 = vmatmul.mubr.f32.gmra.mxu0 %v377
        %v550 = vpop.f32.mrf.mxu0
        %v551 = vadd.f32 0.0, %v550
        %v552 = vpop.f32.mrf.mxu0
        %553 = vmatprep.mubr.f32.mxu0 0.0
        %554 = vmatmul.mubr.f32.gmra.mxu0 %v380
        %v555 = vpop.f32.mrf.mxu0
        %v556 = vadd.f32 0.0, %v555
        %v557 = vpop.f32.mrf.mxu0
        %558 = vmatprep.mubr.f32.mxu0 0.0
        %559 = vmatmul.mubr.f32.gmra.mxu0 %v383
        %v560 = vpop.f32.mrf.mxu0
        %v561 = vadd.f32 0.0, %v560
        %v562 = vpop.f32.mrf.mxu0
        %563 = vmatprep.mubr.f32.mxu0 0.0
        %564 = vmatmul.mubr.f32.gmra.mxu0 %v386
        %v565 = vpop.f32.mrf.mxu0
        %v566 = vadd.f32 0.0, %v565
        %v567 = vpop.f32.mrf.mxu0
        %568 = vmatprep.mubr.f32.mxu0 0.0
        %569 = vmatmul.mubr.f32.gmra.mxu0 %v389
        %v570 = vpop.f32.mrf.mxu0
        %v571 = vadd.f32 0.0, %v570
        %v572 = vpop.f32.mrf.mxu0
        %573 = vmatprep.mubr.f32.mxu0 0.0
        %574 = vmatmul.mubr.f32.gmra.mxu0 %v392
        %v575 = vpop.f32.mrf.mxu0
        %v576 = vadd.f32 0.0, %v575
        %v577 = vpop.f32.mrf.mxu0
        %578 = vmatprep.mubr.f32.mxu0 0.0
        %579 = vmatmul.mubr.f32.gmra.mxu0 %v395
        %v580 = vpop.f32.mrf.mxu0
        %v581 = vadd.f32 0.0, %v580
        %v582 = vpop.f32.mrf.mxu0
        %583 = vmatprep.mubr.f32.mxu0 0.0
        %584 = vmatmul.mubr.f32.gmra.mxu0 %v398
        %v585 = vpop.f32.mrf.mxu0
        %v586 = vadd.f32 0.0, %v585
        %v587 = vpop.f32.mrf.mxu0
        %588 = vmatprep.mubr.f32.mxu0 0.0
        %589 = vmatmul.mubr.f32.gmra.mxu0 %v401
        %v590 = vpop.f32.mrf.mxu0
        %v591 = vadd.f32 0.0, %v590
        %v592 = vpop.f32.mrf.mxu0
        %593 = vmatprep.mubr.f32.mxu0 0.0
        %594 = vmatmul.mubr.f32.gmra.mxu0 %v404
        %v595 = vpop.f32.mrf.mxu0
        %v596 = vadd.f32 0.0, %v595
        %v597 = vpop.f32.mrf.mxu0
        %598 = vmatprep.mubr.f32.mxu0 0.0
        %599 = vmatmul.mubr.f32.gmra.mxu0 %v407
        %v600 = vpop.f32.mrf.mxu0
        %v601 = vadd.f32 0.0, %v600
        %v602 = vpop.f32.mrf.mxu0
        %603 = vmatprep.mubr.f32.mxu0 0.0
        %604 = vmatmul.mubr.f32.gmra.mxu0 %v410
        %v605 = vpop.f32.mrf.mxu0
        %v606 = vadd.f32 0.0, %v605
        %v607 = vpop.f32.mrf.mxu0
        %608 = vmatprep.mubr.f32.mxu0 0.0
        %609 = vmatmul.mubr.f32.gmra.mxu0 %v413
        %v610 = vpop.f32.mrf.mxu0
        %v611 = vadd.f32 0.0, %v610
        %v612 = vpop.f32.mrf.mxu0
        %613 = vmatprep.mubr.f32.mxu0 0.0
        %614 = vmatmul.mubr.f32.gmra.mxu0 %v416
        %v615 = vpop.f32.mrf.mxu0
        %v616 = vadd.f32 0.0, %v615
        %v617 = vpop.f32.mrf.mxu0
        %618 = vmatprep.mubr.f32.mxu0 0.0
        %619 = vmatmul.mubr.f32.gmra.mxu0 %v419
        %v620 = vpop.f32.mrf.mxu0
        %v621 = vadd.f32 0.0, %v620
        %v622 = vpop.f32.mrf.mxu0
        %623 = vmatprep.mubr.f32.mxu0 0.0
        %624 = vmatmul.mubr.f32.gmra.mxu0 %v422
        %v625 = vpop.f32.mrf.mxu0
        %v626 = vadd.f32 0.0, %v625
        %v627 = vpop.f32.mrf.mxu0
        %628 = vmatprep.mubr.f32.mxu0 0.0
        %629 = vmatmul.mubr.f32.gmra.mxu0 %v425
        %v630 = vpop.f32.mrf.mxu0
        %v631 = vadd.f32 0.0, %v630
        %v632 = vpop.f32.mrf.mxu0
        %633 = vmatprep.mubr.f32.mxu0 0.0
        %634 = vmatmul.mubr.f32.gmra.mxu0 %v428
        %v635 = vpop.f32.mrf.mxu0
        %v636 = vadd.f32 0.0, %v635
        %v637 = vpop.f32.mrf.mxu0
        %638 = vmatprep.mubr.f32.mxu0 0.0
        %639 = vmatmul.mubr.f32.gmra.mxu0 %v431
        %v640 = vpop.f32.mrf.mxu0
        %v641 = vadd.f32 0.0, %v640
        %v642 = vpop.f32.mrf.mxu0
        %643 = vmatprep.mubr.f32.mxu0 0.0
        %644 = vmatmul.mubr.f32.gmra.mxu0 %v434
        %v645 = vpop.f32.mrf.mxu0
        %v646 = vadd.f32 0.0, %v645
        %v647 = vpop.f32.mrf.mxu0
        %648 = vmatprep.mubr.f32.mxu0 0.0
        %649 = vmatmul.mubr.f32.gmra.mxu0 %v437
        %v650 = vpop.f32.mrf.mxu0
        %v651 = vadd.f32 0.0, %v650
        %v652 = vpop.f32.mrf.mxu0
        %653 = vmatprep.mubr.f32.mxu0 0.0
        %654 = vmatmul.mubr.f32.gmra.mxu0 %v440
        %v655 = vpop.f32.mrf.mxu0
        %v656 = vadd.f32 0.0, %v655
        %v657 = vpop.f32.mrf.mxu0
        %658 = vmatprep.mubr.f32.mxu0 0.0
        %659 = vmatmul.mubr.f32.gmra.mxu0 %v443
        %v660 = vpop.f32.mrf.mxu0
        %v661 = vadd.f32 0.0, %v660
        %v662 = vpop.f32.mrf.mxu0
        %663 = vmatprep.mubr.f32.mxu0 0.0
        %664 = vmatmul.mubr.f32.gmra.mxu0 %v446
        %v665 = vpop.f32.mrf.mxu0
        %v666 = vadd.f32 0.0, %v665
        %v667 = vpop.f32.mrf.mxu0
        %668 = vmatprep.mubr.f32.mxu0 0.0
        %669 = vmatmul.mubr.f32.gmra.mxu0 %v449
        %v670 = vpop.f32.mrf.mxu0
        %v671 = vadd.f32 0.0, %v670
        %v672 = vpop.f32.mrf.mxu0
        %673 = vmatprep.mubr.f32.mxu0 0.0
        %674 = vmatmul.mubr.f32.gmra.mxu0 %v452
        %v675 = vpop.f32.mrf.mxu0
        %v676 = vadd.f32 0.0, %v675
        %v677 = vpop.f32.mrf.mxu0
        %678 = vmatprep.mubr.f32.mxu0 0.0
        %679 = vmatmul.mubr.f32.gmra.mxu0 %v455
        %v680 = vpop.f32.mrf.mxu0
        %v681 = vadd.f32 0.0, %v680
        %v682 = vpop.f32.mrf.mxu0
        %683 = vmatprep.mubr.f32.mxu0 0.0
        %684 = vmatmul.mubr.f32.gmra.mxu0 %v458
        %v685 = vpop.f32.mrf.mxu0
        %v686 = vadd.f32 0.0, %v685
        %v687 = vpop.f32.mrf.mxu0
        %688 = vdwg.mxu0
        %vm689 = vcmask 64512
        %690 = vst.msk [vmem:[%s246] sm:$0xff] %vm689, %v531
        %691 = vst.msk [vmem:[%s246 + $0x8] sm:$0xff] %vm689, %v536
        %692 = vst.msk [vmem:[%s246 + $0x10] sm:$0xff] %vm689, %v541
        %693 = vst.msk [vmem:[%s246 + $0x18] sm:$0xff] %vm689, %v546
        %694 = vst.msk [vmem:[%s246 + $0x20] sm:$0xff] %vm689, %v551
        %695 = vst.msk [vmem:[%s246 + $0x28] sm:$0xff] %vm689, %v556
        %696 = vst.msk [vmem:[%s246 + $0x30] sm:$0xff] %vm689, %v561
        %697 = vst.msk [vmem:[%s246 + $0x38] sm:$0xff] %vm689, %v566
        %698 = vst.msk [vmem:[%s246 + $0x40] sm:$0xff] %vm689, %v571
        %699 = vst.msk [vmem:[%s246 + $0x48] sm:$0xff] %vm689, %v576
        %700 = vst.msk [vmem:[%s246 + $0x50] sm:$0xff] %vm689, %v581
        %701 = vst.msk [vmem:[%s246 + $0x58] sm:$0xff] %vm689, %v586
        %702 = vst.msk [vmem:[%s246 + $0x60] sm:$0xff] %vm689, %v591
        %703 = vst.msk [vmem:[%s246 + $0x68] sm:$0xff] %vm689, %v596
        %704 = vst.msk [vmem:[%s246 + $0x70] sm:$0xff] %vm689, %v601
        %705 = vst.msk [vmem:[%s246 + $0x78] sm:$0xff] %vm689, %v606
        %706 = vst.msk [vmem:[%s246 + $0x80] sm:$0xff] %vm689, %v611
        %707 = vst.msk [vmem:[%s246 + $0x88] sm:$0xff] %vm689, %v616
        %708 = vst.msk [vmem:[%s246 + $0x90] sm:$0xff] %vm689, %v621
        %709 = vst.msk [vmem:[%s246 + $0x98] sm:$0xff] %vm689, %v626
        %710 = vst.msk [vmem:[%s246 + $0xa0] sm:$0xff] %vm689, %v631
        %711 = vst.msk [vmem:[%s246 + $0xa8] sm:$0xff] %vm689, %v636
        %712 = vst.msk [vmem:[%s246 + $0xb0] sm:$0xff] %vm689, %v641
        %713 = vst.msk [vmem:[%s246 + $0xb8] sm:$0xff] %vm689, %v646
        %714 = vst.msk [vmem:[%s246 + $0xc0] sm:$0xff] %vm689, %v651
        %715 = vst.msk [vmem:[%s246 + $0xc8] sm:$0xff] %vm689, %v656
        %716 = vst.msk [vmem:[%s246 + $0xd0] sm:$0xff] %vm689, %v661
        %717 = vst.msk [vmem:[%s246 + $0xd8] sm:$0xff] %vm689, %v666
        %718 = vst.msk [vmem:[%s246 + $0xe0] sm:$0xff] %vm689, %v671
        %719 = vst.msk [vmem:[%s246 + $0xe8] sm:$0xff] %vm689, %v676
        %720 = vst.msk [vmem:[%s246 + $0xf0] sm:$0xff] %vm689, %v681
        %721 = vst.msk [vmem:[%s246 + $0xf8] sm:$0xff] %vm689, %v686
        %s722 = smul.u32 %s18, 256
        %v723 = vlaneseq
        %v724 = vshrl.u32 %v723, 7
        %v725 = vadd.s32 %v724, 8
        %v726 = vadd.s32 %v724, 16
        %v727 = vadd.s32 %v724, 24
        %v728 = vadd.s32 %v724, 32
        %v729 = vadd.s32 %v724, 40
        %v730 = vadd.s32 %v724, 48
        %v731 = vadd.s32 %v724, 56
        %v732 = vadd.s32 %v724, 64
        %v733 = vadd.s32 %v724, 72
        %v734 = vadd.s32 %v724, 80
        %v735 = vadd.s32 %v724, 88
        %v736 = vadd.s32 %v724, 96
        %v737 = vadd.s32 %v724, 104
        %v738 = vadd.s32 %v724, 112
        %v739 = vadd.s32 %v724, 120
        %v740 = vadd.s32 %v724, 128
        %v741 = vadd.s32 %v724, 136
        %v742 = vadd.s32 %v724, 144
        %v743 = vadd.s32 %v724, 152
        %v744 = vadd.s32 %v724, 160
        %v745 = vadd.s32 %v724, 168
        %v746 = vadd.s32 %v724, 176
        %v747 = vadd.s32 %v724, 184
        %v748 = vadd.s32 %v724, 192
        %v749 = vadd.s32 %v724, 200
        %v750 = vadd.s32 %v724, 208
        %v751 = vadd.s32 %v724, 216
        %v752 = vadd.s32 %v724, 224
        %v753 = vadd.s32 %v724, 232
        %v754 = vadd.s32 %v724, 240
        %v755 = vadd.s32 %v724, 248
        %v756 = vstv %s722
        %v757 = vadd.s32 %v756, %v724
        %v758 = vadd.s32 %v756, %v725
        %v759 = vadd.s32 %v756, %v726
        %v760 = vadd.s32 %v756, %v727
        %v761 = vadd.s32 %v756, %v728
        %v762 = vadd.s32 %v756, %v729
        %v763 = vadd.s32 %v756, %v730
        %v764 = vadd.s32 %v756, %v731
        %v765 = vadd.s32 %v756, %v732
        %v766 = vadd.s32 %v756, %v733
        %v767 = vadd.s32 %v756, %v734
        %v768 = vadd.s32 %v756, %v735
        %v769 = vadd.s32 %v756, %v736
        %v770 = vadd.s32 %v756, %v737
        %v771 = vadd.s32 %v756, %v738
        %v772 = vadd.s32 %v756, %v739
        %v773 = vadd.s32 %v756, %v740
        %v774 = vadd.s32 %v756, %v741
        %v775 = vadd.s32 %v756, %v742
        %v776 = vadd.s32 %v756, %v743
        %v777 = vadd.s32 %v756, %v744
        %v778 = vadd.s32 %v756, %v745
        %v779 = vadd.s32 %v756, %v746
        %v780 = vadd.s32 %v756, %v747
        %v781 = vadd.s32 %v756, %v748
        %v782 = vadd.s32 %v756, %v749
        %v783 = vadd.s32 %v756, %v750
        %v784 = vadd.s32 %v756, %v751
        %v785 = vadd.s32 %v756, %v752
        %v786 = vadd.s32 %v756, %v753
        %v787 = vadd.s32 %v756, %v754
        %v788 = vadd.s32 %v756, %v755
        %vm789 = vcmp.lt.s32.totalorder %v757, 512
        %vm790 = vcmp.lt.s32.totalorder %v758, 512
        %vm791 = vcmp.lt.s32.totalorder %v759, 512
        %vm792 = vcmp.lt.s32.totalorder %v760, 512
        %vm793 = vcmp.lt.s32.totalorder %v761, 512
        %vm794 = vcmp.lt.s32.totalorder %v762, 512
        %vm795 = vcmp.lt.s32.totalorder %v763, 512
        %vm796 = vcmp.lt.s32.totalorder %v764, 512
        %vm797 = vcmp.lt.s32.totalorder %v765, 512
        %vm798 = vcmp.lt.s32.totalorder %v766, 512
        %vm799 = vcmp.lt.s32.totalorder %v767, 512
        %vm800 = vcmp.lt.s32.totalorder %v768, 512
        %vm801 = vcmp.lt.s32.totalorder %v769, 512
        %vm802 = vcmp.lt.s32.totalorder %v770, 512
        %vm803 = vcmp.lt.s32.totalorder %v771, 512
        %vm804 = vcmp.lt.s32.totalorder %v772, 512
        %vm805 = vcmp.lt.s32.totalorder %v773, 512
        %vm806 = vcmp.lt.s32.totalorder %v774, 512
        %vm807 = vcmp.lt.s32.totalorder %v775, 512
        %vm808 = vcmp.lt.s32.totalorder %v776, 512
        %vm809 = vcmp.lt.s32.totalorder %v777, 512
        %vm810 = vcmp.lt.s32.totalorder %v778, 512
        %vm811 = vcmp.lt.s32.totalorder %v779, 512
        %vm812 = vcmp.lt.s32.totalorder %v780, 512
        %vm813 = vcmp.lt.s32.totalorder %v781, 512
        %vm814 = vcmp.lt.s32.totalorder %v782, 512
        %vm815 = vcmp.lt.s32.totalorder %v783, 512
        %vm816 = vcmp.lt.s32.totalorder %v784, 512
        %vm817 = vcmp.lt.s32.totalorder %v785, 512
        %vm818 = vcmp.lt.s32.totalorder %v786, 512
        %vm819 = vcmp.lt.s32.totalorder %v787, 512
        %vm820 = vcmp.lt.s32.totalorder %v788, 512
        %v821 = vsel %vm789, 1, 0
        %v822 = vsel %vm790, 1, 0
        %v823 = vsel %vm791, 1, 0
        %v824 = vsel %vm792, 1, 0
        %v825 = vsel %vm793, 1, 0
        %v826 = vsel %vm794, 1, 0
        %v827 = vsel %vm795, 1, 0
        %v828 = vsel %vm796, 1, 0
        %v829 = vsel %vm797, 1, 0
        %v830 = vsel %vm798, 1, 0
        %v831 = vsel %vm799, 1, 0
        %v832 = vsel %vm800, 1, 0
        %v833 = vsel %vm801, 1, 0
        %v834 = vsel %vm802, 1, 0
        %v835 = vsel %vm803, 1, 0
        %v836 = vsel %vm804, 1, 0
        %v837 = vsel %vm805, 1, 0
        %v838 = vsel %vm806, 1, 0
        %v839 = vsel %vm807, 1, 0
        %v840 = vsel %vm808, 1, 0
        %v841 = vsel %vm809, 1, 0
        %v842 = vsel %vm810, 1, 0
        %v843 = vsel %vm811, 1, 0
        %v844 = vsel %vm812, 1, 0
        %v845 = vsel %vm813, 1, 0
        %v846 = vsel %vm814, 1, 0
        %v847 = vsel %vm815, 1, 0
        %v848 = vsel %vm816, 1, 0
        %v849 = vsel %vm817, 1, 0
        %v850 = vsel %vm818, 1, 0
        %v851 = vsel %vm819, 1, 0
        %v852 = vsel %vm820, 1, 0
        %vm853 = vcmp.eq.s32.totalorder %v821, 1
        %vm854 = vcmp.eq.s32.totalorder %v822, 1
        %vm855 = vcmp.eq.s32.totalorder %v823, 1
        %vm856 = vcmp.eq.s32.totalorder %v824, 1
        %vm857 = vcmp.eq.s32.totalorder %v825, 1
        %vm858 = vcmp.eq.s32.totalorder %v826, 1
        %vm859 = vcmp.eq.s32.totalorder %v827, 1
        %vm860 = vcmp.eq.s32.totalorder %v828, 1
        %vm861 = vcmp.eq.s32.totalorder %v829, 1
        %vm862 = vcmp.eq.s32.totalorder %v830, 1
        %vm863 = vcmp.eq.s32.totalorder %v831, 1
        %vm864 = vcmp.eq.s32.totalorder %v832, 1
        %vm865 = vcmp.eq.s32.totalorder %v833, 1
        %vm866 = vcmp.eq.s32.totalorder %v834, 1
        %vm867 = vcmp.eq.s32.totalorder %v835, 1
        %vm868 = vcmp.eq.s32.totalorder %v836, 1
        %vm869 = vcmp.eq.s32.totalorder %v837, 1
        %vm870 = vcmp.eq.s32.totalorder %v838, 1
        %vm871 = vcmp.eq.s32.totalorder %v839, 1
        %vm872 = vcmp.eq.s32.totalorder %v840, 1
        %vm873 = vcmp.eq.s32.totalorder %v841, 1
        %vm874 = vcmp.eq.s32.totalorder %v842, 1
        %vm875 = vcmp.eq.s32.totalorder %v843, 1
        %vm876 = vcmp.eq.s32.totalorder %v844, 1
        %vm877 = vcmp.eq.s32.totalorder %v845, 1
        %vm878 = vcmp.eq.s32.totalorder %v846, 1
        %vm879 = vcmp.eq.s32.totalorder %v847, 1
        %vm880 = vcmp.eq.s32.totalorder %v848, 1
        %vm881 = vcmp.eq.s32.totalorder %v849, 1
        %vm882 = vcmp.eq.s32.totalorder %v850, 1
        %vm883 = vcmp.eq.s32.totalorder %v851, 1
        %vm884 = vcmp.eq.s32.totalorder %v852, 1
        %v885 = vsel %vm853, %v531, 0.0
        %v886 = vsel %vm854, %v536, 0.0
        %v887 = vsel %vm855, %v541, 0.0
        %v888 = vsel %vm856, %v546, 0.0
        %v889 = vsel %vm857, %v551, 0.0
        %v890 = vsel %vm858, %v556, 0.0
        %v891 = vsel %vm859, %v561, 0.0
        %v892 = vsel %vm860, %v566, 0.0
        %v893 = vsel %vm861, %v571, 0.0
        %v894 = vsel %vm862, %v576, 0.0
        %v895 = vsel %vm863, %v581, 0.0
        %v896 = vsel %vm864, %v586, 0.0
        %v897 = vsel %vm865, %v591, 0.0
        %v898 = vsel %vm866, %v596, 0.0
        %v899 = vsel %vm867, %v601, 0.0
        %v900 = vsel %vm868, %v606, 0.0
        %v901 = vsel %vm869, %v611, 0.0
        %v902 = vsel %vm870, %v616, 0.0
        %v903 = vsel %vm871, %v621, 0.0
        %v904 = vsel %vm872, %v626, 0.0
        %v905 = vsel %vm873, %v631, 0.0
        %v906 = vsel %vm874, %v636, 0.0
        %v907 = vsel %vm875, %v641, 0.0
        %v908 = vsel %vm876, %v646, 0.0
        %v909 = vsel %vm877, %v651, 0.0
        %v910 = vsel %vm878, %v656, 0.0
        %v911 = vsel %vm879, %v661, 0.0
        %v912 = vsel %vm880, %v666, 0.0
        %v913 = vsel %vm881, %v671, 0.0
        %v914 = vsel %vm882, %v676, 0.0
        %v915 = vsel %vm883, %v681, 0.0
        %v916 = vsel %vm884, %v686, 0.0
        %v917 = vsel %vm689, %v885, 0.0
        %v918 = vsel %vm689, %v886, 0.0
        %v919 = vadd.f32 %v917, %v918
        %v920 = vsel %vm689, %v887, 0.0
        %v921 = vadd.f32 %v919, %v920
        %v922 = vsel %vm689, %v888, 0.0
        %v923 = vadd.f32 %v921, %v922
        %v924 = vsel %vm689, %v889, 0.0
        %v925 = vadd.f32 %v923, %v924
        %v926 = vsel %vm689, %v890, 0.0
        %v927 = vadd.f32 %v925, %v926
        %v928 = vsel %vm689, %v891, 0.0
        %v929 = vadd.f32 %v927, %v928
        %v930 = vsel %vm689, %v892, 0.0
        %v931 = vadd.f32 %v929, %v930
        %v932 = vsel %vm689, %v893, 0.0
        %v933 = vadd.f32 %v931, %v932
        %v934 = vsel %vm689, %v894, 0.0
        %v935 = vadd.f32 %v933, %v934
        %v936 = vsel %vm689, %v895, 0.0
        %v937 = vadd.f32 %v935, %v936
        %v938 = vsel %vm689, %v896, 0.0
        %v939 = vadd.f32 %v937, %v938
        %v940 = vsel %vm689, %v897, 0.0
        %v941 = vadd.f32 %v939, %v940
        %v942 = vsel %vm689, %v898, 0.0
        %v943 = vadd.f32 %v941, %v942
        %v944 = vsel %vm689, %v899, 0.0
        %v945 = vadd.f32 %v943, %v944
        %v946 = vsel %vm689, %v900, 0.0
        %v947 = vadd.f32 %v945, %v946
        %v948 = vsel %vm689, %v901, 0.0
        %v949 = vadd.f32 %v947, %v948
        %v950 = vsel %vm689, %v902, 0.0
        %v951 = vadd.f32 %v949, %v950
        %v952 = vsel %vm689, %v903, 0.0
        %v953 = vadd.f32 %v951, %v952
        %v954 = vsel %vm689, %v904, 0.0
        %v955 = vadd.f32 %v953, %v954
        %v956 = vsel %vm689, %v905, 0.0
        %v957 = vadd.f32 %v955, %v956
        %v958 = vsel %vm689, %v906, 0.0
        %v959 = vadd.f32 %v957, %v958
        %v960 = vsel %vm689, %v907, 0.0
        %v961 = vadd.f32 %v959, %v960
        %v962 = vsel %vm689, %v908, 0.0
        %v963 = vadd.f32 %v961, %v962
        %v964 = vsel %vm689, %v909, 0.0
        %v965 = vadd.f32 %v963, %v964
        %v966 = vsel %vm689, %v910, 0.0
        %v967 = vadd.f32 %v965, %v966
        %v968 = vsel %vm689, %v911, 0.0
        %v969 = vadd.f32 %v967, %v968
        %v970 = vsel %vm689, %v912, 0.0
        %v971 = vadd.f32 %v969, %v970
        %v972 = vsel %vm689, %v913, 0.0
        %v973 = vadd.f32 %v971, %v972
        %v974 = vsel %vm689, %v914, 0.0
        %v975 = vadd.f32 %v973, %v974
        %v976 = vsel %vm689, %v915, 0.0
        %v977 = vadd.f32 %v975, %v976
        %v978 = vsel %vm689, %v916, 0.0
        %v979 = vadd.f32 %v977, %v978
        %v980 = vrot.slane %v979, 4
        %v981 = vadd.f32 %v979, %v980
        %v982 = vrot.slane %v981, 2
        %v983 = vadd.f32 %v981, %v982
        %v984 = vrot.slane %v983, 1
        %v985 = vadd.f32 %v983, %v984
        %v986 = vmul.f32 %v885, %v885
        %v987 = vmul.f32 %v886, %v886
        %v988 = vmul.f32 %v887, %v887
        %v989 = vmul.f32 %v888, %v888
        %v990 = vmul.f32 %v889, %v889
        %v991 = vmul.f32 %v890, %v890
        %v992 = vmul.f32 %v891, %v891
        %v993 = vmul.f32 %v892, %v892
        %v994 = vmul.f32 %v893, %v893
        %v995 = vmul.f32 %v894, %v894
        %v996 = vmul.f32 %v895, %v895
        %v997 = vmul.f32 %v896, %v896
        %v998 = vmul.f32 %v897, %v897
        %v999 = vmul.f32 %v898, %v898
        %v1000 = vmul.f32 %v899, %v899
        %v1001 = vmul.f32 %v900, %v900
        %v1002 = vmul.f32 %v901, %v901
        %v1003 = vmul.f32 %v902, %v902
        %v1004 = vmul.f32 %v903, %v903
        %v1005 = vmul.f32 %v904, %v904
        %v1006 = vmul.f32 %v905, %v905
        %v1007 = vmul.f32 %v906, %v906
        %v1008 = vmul.f32 %v907, %v907
        %v1009 = vmul.f32 %v908, %v908
        %v1010 = vmul.f32 %v909, %v909
        %v1011 = vmul.f32 %v910, %v910
        %v1012 = vmul.f32 %v911, %v911
        %v1013 = vmul.f32 %v912, %v912
        %v1014 = vmul.f32 %v913, %v913
        %v1015 = vmul.f32 %v914, %v914
        %v1016 = vmul.f32 %v915, %v915
        %v1017 = vmul.f32 %v916, %v916
        %v1018 = vsel %vm689, %v986, 0.0
        %v1019 = vsel %vm689, %v987, 0.0
        %v1020 = vadd.f32 %v1018, %v1019
        %v1021 = vsel %vm689, %v988, 0.0
        %v1022 = vadd.f32 %v1020, %v1021
        %v1023 = vsel %vm689, %v989, 0.0
        %v1024 = vadd.f32 %v1022, %v1023
        %v1025 = vsel %vm689, %v990, 0.0
        %v1026 = vadd.f32 %v1024, %v1025
        %v1027 = vsel %vm689, %v991, 0.0
        %v1028 = vadd.f32 %v1026, %v1027
        %v1029 = vsel %vm689, %v992, 0.0
        %v1030 = vadd.f32 %v1028, %v1029
        %v1031 = vsel %vm689, %v993, 0.0
        %v1032 = vadd.f32 %v1030, %v1031
        %v1033 = vsel %vm689, %v994, 0.0
        %v1034 = vadd.f32 %v1032, %v1033
        %v1035 = vsel %vm689, %v995, 0.0
        %v1036 = vadd.f32 %v1034, %v1035
        %v1037 = vsel %vm689, %v996, 0.0
        %v1038 = vadd.f32 %v1036, %v1037
        %v1039 = vsel %vm689, %v997, 0.0
        %v1040 = vadd.f32 %v1038, %v1039
        %v1041 = vsel %vm689, %v998, 0.0
        %v1042 = vadd.f32 %v1040, %v1041
        %v1043 = vsel %vm689, %v999, 0.0
        %v1044 = vadd.f32 %v1042, %v1043
        %v1045 = vsel %vm689, %v1000, 0.0
        %v1046 = vadd.f32 %v1044, %v1045
        %v1047 = vsel %vm689, %v1001, 0.0
        %v1048 = vadd.f32 %v1046, %v1047
        %v1049 = vsel %vm689, %v1002, 0.0
        %v1050 = vadd.f32 %v1048, %v1049
        %v1051 = vsel %vm689, %v1003, 0.0
        %v1052 = vadd.f32 %v1050, %v1051
        %v1053 = vsel %vm689, %v1004, 0.0
        %v1054 = vadd.f32 %v1052, %v1053
        %v1055 = vsel %vm689, %v1005, 0.0
        %v1056 = vadd.f32 %v1054, %v1055
        %v1057 = vsel %vm689, %v1006, 0.0
        %v1058 = vadd.f32 %v1056, %v1057
        %v1059 = vsel %vm689, %v1007, 0.0
        %v1060 = vadd.f32 %v1058, %v1059
        %v1061 = vsel %vm689, %v1008, 0.0
        %v1062 = vadd.f32 %v1060, %v1061
        %v1063 = vsel %vm689, %v1009, 0.0
        %v1064 = vadd.f32 %v1062, %v1063
        %v1065 = vsel %vm689, %v1010, 0.0
        %v1066 = vadd.f32 %v1064, %v1065
        %v1067 = vsel %vm689, %v1011, 0.0
        %v1068 = vadd.f32 %v1066, %v1067
        %v1069 = vsel %vm689, %v1012, 0.0
        %v1070 = vadd.f32 %v1068, %v1069
        %v1071 = vsel %vm689, %v1013, 0.0
        %v1072 = vadd.f32 %v1070, %v1071
        %v1073 = vsel %vm689, %v1014, 0.0
        %v1074 = vadd.f32 %v1072, %v1073
        %v1075 = vsel %vm689, %v1015, 0.0
        %v1076 = vadd.f32 %v1074, %v1075
        %v1077 = vsel %vm689, %v1016, 0.0
        %v1078 = vadd.f32 %v1076, %v1077
        %v1079 = vsel %vm689, %v1017, 0.0
        %v1080 = vadd.f32 %v1078, %v1079
        %v1081 = vrot.slane %v1080, 4
        %v1082 = vadd.f32 %v1080, %v1081
        %v1083 = vrot.slane %v1082, 2
        %v1084 = vadd.f32 %v1082, %v1083
        %v1085 = vrot.slane %v1084, 1
        %v1086 = vadd.f32 %v1084, %v1085
        %vm1087 = vcmask 1040384
        %v1088 = vsel %vm1087, %v985, %v1086
        %vm1089 = vcmask 58368
        %1090 = vst.msk [vmem:[%s251] sm:$0x3] %vm1089, %v1088
        %s1091 = smul.u32 32, %s18
        %p1092 = scmp.lt.s32.totalorder %s1091, 63
        %s1093 = scalar_select %p1092, %s1091, 63
        %s1094 = smul.addr %s1093, 8
        %s1095 = scalar_lea.vmem %s4, %s1094
        %p1096 = scmp.lt.s32.totalorder %s18, 1
        %s1097 = scalar_select %p1096, %s18, 1
        %s1098 = smul.addr %s1097, 2
        %s1099 = scalar_lea.vmem %s5, %s1098
        // Predicated region
        $region41: #{residual_layer_forward.5} parent=35 // pred_check
          %p1100 = pneg %p125
        $region42: #{residual_layer_forward.5} parent=35 // pred_check_branch
          %1102 = sbr.rel (%p1100) target = $region44
        $region43: #{residual_layer_forward.5} parent=35 // pred_region
          %s1103 = smul.u32 32, %s18
        $region44: #{residual_layer_forward.5} parent=35 // pred_fallthru
          _
        // Predicated region
        $region45: #{residual_layer_forward.5} parent=35 // pred_check
          %p1104 = pneg %p151
        $region46: #{residual_layer_forward.5} parent=35 // pred_check_branch
          %1106 = sbr.rel (%p1104) target = $region48
        $region47: #{residual_layer_forward.5} parent=35 // pred_region
          _
        $region48: #{residual_layer_forward.5} parent=35 // pred_fallthru
          _
      $region36: #{residual_layer_forward.5} parent=5 // pred_fallthru
        _
      %p1107 = scmp.le.s32.totalorder 2, %s13
      // Predicated region
      $region49: #{residual_layer_forward.5} parent=5 // pred_check
        %p1108 = pneg %p1107
      $region50: #{residual_layer_forward.5} parent=5 // pred_check_branch
        %1110 = sbr.rel (%p1108) target = $region52
      $region51: #{residual_layer_forward.5} parent=5 // pred_region
        %s1111 = ssub.s32 %s13, 2
        // Predicated region
        $region53: #{residual_layer_forward.5} parent=51 // pred_check
          %p1112 = pneg %p131
        $region54: #{residual_layer_forward.5} parent=51 // pred_check_branch
          %1114 = sbr.rel (%p1112) target = $region56
        $region55: #{residual_layer_forward.5} parent=51 // pred_region
          %s1115 = smul.u32 32, %s19
          %p1116 = scmp.lt.s32.totalorder %s1115, 63
          %s1117 = scalar_select %p1116, %s1115, 63
          %s1118 = smul.addr %s1117, 8
          %s1119 = scalar_lea.vmem %s4, %s1118
        $region56: #{residual_layer_forward.5} parent=51 // pred_fallthru
          _
        // Predicated region
        $region57: #{residual_layer_forward.5} parent=51 // pred_check
          %p1120 = pneg %p157
        $region58: #{residual_layer_forward.5} parent=51 // pred_check_branch
          %1122 = sbr.rel (%p1120) target = $region60
        $region59: #{residual_layer_forward.5} parent=51 // pred_region
          %p1123 = scmp.lt.s32.totalorder %s19, 1
          %s1124 = scalar_select %p1123, %s19, 1
          %s1125 = smul.addr %s1124, 2
          %s1126 = scalar_lea.vmem %s5, %s1125
        $region60: #{residual_layer_forward.5} parent=51 // pred_fallthru
          _
      $region52: #{residual_layer_forward.5} parent=5 // pred_fallthru
        _
    $region6: #{residual_layer_forward.5} parent=1 // loop_footer
      %s17 = sadd.s32 1, %s13
    $region7: #{residual_layer_forward.5} parent=1 // loop_footer_branch
      %12 = sbr.rel target = $region3
    $region8: #{residual_layer_forward.5} parent=1 // loop_exit
      _
    %1127 = vsyncpa [#allocation3], 1
    %s1128 = scalar_lea.sflag [#allocation3], 1
    %1129 = vsyncpa %s1128, 1

// kernel: residual_layer_forward.6
$region0: #{residual_layer_forward.6}
  #allocation0 [shape = 'u32[]', space=smem, size = 0x4, offset = 0x4, fixed_abs, tag = 'smem constant byte address 0x4 - core index']
  #allocation1 [shape = 'u32[144,128]{1,0:T(1,128)}', space=vmem, size = 0x12000, scoped, tag = 'internal scratch']
  #allocation2 [shape = 'f32[18,128]{1,0:T(8,128)}', space=vmem, size = 0x3000, scoped, tag = 'scratch operand']
  %s0 = inlined_call_operand.vmem [shape: f32[2,16,128], index: 0, kind: input, shape index: {}]
  %s1 = inlined_call_operand.vmem [shape: f32[3,128,128], index: 1, kind: input, shape index: {}]
  %s2 = inlined_call_operand.vmem [shape: f32[128,8], index: 2, kind: input, shape index: {}]
  %s3 = inlined_call_operand.vmem [shape: f32[1,128], index: 3, kind: input, shape index: {}]
  %s4 = inlined_call_operand.vmem [shape: f32[1,128], index: 4, kind: input, shape index: {}]
  %s5 = inlined_call_operand.vmem [shape: f32[2,16,128], index: 5, kind: output, shape index: {0}]
  %s6 = inlined_call_operand.vmem [shape: f32[2,2,8], index: 6, kind: output, shape index: {1}]
  %7 = xla_tuple %s5, %s6
  %s8 = sld [smem:[#allocation0]]
  $region61: #{residual_layer_forward.6} parent=0
    _
  %s10 = ssub.s32 1, %s8
  %s11 = scalar_select 0, %s10, %s8
  loop: start=0, step=1, limit=4
  $region2: #{residual_layer_forward.6} parent=0 // loop_pre_header
    _
  $region3: #{residual_layer_forward.6} parent=0 // loop_header
    %s13 = sphi 0, %s17
    %p14 = scmp.ge.s32.totalorder %s13, 4
    %s23 = sphi 0, %s25
    %s26 = sphi 0, %s23
    %s27 = sphi 0, %s26
    %s43 = sphi 0, %s27
    %s47 = sphi 0, %s47
    %s49 = sphi 0, %s47
    %s50 = sphi 0, %s49
    %s64 = sphi 0, %s50
    %s68 = sphi 0, %s68
    %s70 = sphi 0, %s68
    %s71 = sphi 0, %s70
    %s85 = sphi 0, %s71
    %s89 = sphi 0, %s89
    %s91 = sphi 0, %s89
    %s92 = sphi 0, %s91
    %s106 = sphi 0, %s92
    %s110 = sphi 0, %s110
    %s112 = sphi 0, %s110
    %s113 = sphi 0, %s112
    %s127 = sphi 0, %s113
    %s133 = sphi 0, %s135
    %s136 = sphi 0, %s133
    %s137 = sphi 0, %s136
    %s153 = sphi 0, %s137
    %s159 = sphi 0, %s161
    %s162 = sphi 0, %s159
    %s163 = sphi 0, %s162
    %s179 = sphi 0, %s163
  $region4: #{residual_layer_forward.6} parent=0 // loop_header_branch
    %16 = sbr.rel (%p14) target = $region8
  $region5: #{residual_layer_forward.6} parent=0 // loop_body
    %s18 = ssub.s32 %s13, 1
    %s19 = ssub.s32 %s13, 2
    %s20 = sadd.s32 %s13, 1
    %s21 = ssub.s32 %s13, %s20
    %p22 = scmp.eq.s32.totalorder %s21, 0
    %s24 = sadd.s32 %s23, 1
    %s25 = scalar_select %p22, %s23, %s24
    %p28 = pneg %p22
    %p29 = scmp.eq.s32.totalorder %s13, 1
    %p30 = por %p28, %p29
    %p31 = scmp.ne.s32.totalorder %s23, %s26
    %p32 = scmp.eq.s32.totalorder %s13, 0
    %p33 = por %p31, %p32
    %p34 = scmp.ne.s32.totalorder %s23, %s26
    %p35 = scmp.eq.s32.totalorder %s18, 1
    %p36 = por %p34, %p35
    %p37 = scmp.ne.s32.totalorder %s26, %s27
    %p38 = scmp.eq.s32.totalorder %s18, 0
    %p39 = por %p37, %p38
    %p40 = scmp.ne.s32.totalorder %s26, %s27
    %p41 = scmp.eq.s32.totalorder %s19, 1
    %p42 = por %p40, %p41
    %p44 = scmp.ne.s32.totalorder %s27, %s43
    %p45 = scmp.eq.s32.totalorder %s19, 0
    %p46 = por %p44, %p45
    %s48 = sadd.s32 %s47, 1
    %p51 = scmp.eq.s32.totalorder %s13, 1
    %p52 = scmp.ne.s32.totalorder %s47, %s49
    %p53 = scmp.eq.s32.totalorder %s13, 0
    %p54 = por %p52, %p53
    %p55 = scmp.ne.s32.totalorder %s47, %s49
    %p56 = scmp.eq.s32.totalorder %s18, 1
    %p57 = por %p55, %p56
    %p58 = scmp.ne.s32.totalorder %s49, %s50
    %p59 = scmp.eq.s32.totalorder %s18, 0
    %p60 = por %p58, %p59
    %p61 = scmp.ne.s32.totalorder %s49, %s50
    %p62 = scmp.eq.s32.totalorder %s19, 1
    %p63 = por %p61, %p62
    %p65 = scmp.ne.s32.totalorder %s50, %s64
    %p66 = scmp.eq.s32.totalorder %s19, 0
    %p67 = por %p65, %p66
    %s69 = sadd.s32 %s68, 1
    %p72 = scmp.eq.s32.totalorder %s13, 1
    %p73 = scmp.ne.s32.totalorder %s68, %s70
    %p74 = scmp.eq.s32.totalorder %s13, 0
    %p75 = por %p73, %p74
    %p76 = scmp.ne.s32.totalorder %s68, %s70
    %p77 = scmp.eq.s32.totalorder %s18, 1
    %p78 = por %p76, %p77
    %p79 = scmp.ne.s32.totalorder %s70, %s71
    %p80 = scmp.eq.s32.totalorder %s18, 0
    %p81 = por %p79, %p80
    %p82 = scmp.ne.s32.totalorder %s70, %s71
    %p83 = scmp.eq.s32.totalorder %s19, 1
    %p84 = por %p82, %p83
    %p86 = scmp.ne.s32.totalorder %s71, %s85
    %p87 = scmp.eq.s32.totalorder %s19, 0
    %p88 = por %p86, %p87
    %s90 = sadd.s32 %s89, 1
    %p93 = scmp.eq.s32.totalorder %s13, 1
    %p94 = scmp.ne.s32.totalorder %s89, %s91
    %p95 = scmp.eq.s32.totalorder %s13, 0
    %p96 = por %p94, %p95
    %p97 = scmp.ne.s32.totalorder %s89, %s91
    %p98 = scmp.eq.s32.totalorder %s18, 1
    %p99 = por %p97, %p98
    %p100 = scmp.ne.s32.totalorder %s91, %s92
    %p101 = scmp.eq.s32.totalorder %s18, 0
    %p102 = por %p100, %p101
    %p103 = scmp.ne.s32.totalorder %s91, %s92
    %p104 = scmp.eq.s32.totalorder %s19, 1
    %p105 = por %p103, %p104
    %p107 = scmp.ne.s32.totalorder %s92, %s106
    %p108 = scmp.eq.s32.totalorder %s19, 0
    %p109 = por %p107, %p108
    %s111 = sadd.s32 %s110, 1
    %p114 = scmp.eq.s32.totalorder %s13, 1
    %p115 = scmp.ne.s32.totalorder %s110, %s112
    %p116 = scmp.eq.s32.totalorder %s13, 0
    %p117 = por %p115, %p116
    %p118 = scmp.ne.s32.totalorder %s110, %s112
    %p119 = scmp.eq.s32.totalorder %s18, 1
    %p120 = por %p118, %p119
    %p121 = scmp.ne.s32.totalorder %s112, %s113
    %p122 = scmp.eq.s32.totalorder %s18, 0
    %p123 = por %p121, %p122
    %p124 = scmp.ne.s32.totalorder %s112, %s113
    %p125 = scmp.eq.s32.totalorder %s19, 1
    %p126 = por %p124, %p125
    %p128 = scmp.ne.s32.totalorder %s113, %s127
    %p129 = scmp.eq.s32.totalorder %s19, 0
    %p130 = por %p128, %p129
    %s131 = ssub.s32 %s13, %s20
    %p132 = scmp.eq.s32.totalorder %s131, 0
    %s134 = sadd.s32 %s133, 1
    %s135 = scalar_select %p132, %s133, %s134
    %p138 = pneg %p132
    %p139 = scmp.eq.s32.totalorder %s13, 1
    %p140 = por %p138, %p139
    %p141 = scmp.ne.s32.totalorder %s133, %s136
    %p142 = scmp.eq.s32.totalorder %s13, 0
    %p143 = por %p141, %p142
    %p144 = scmp.ne.s32.totalorder %s133, %s136
    %p145 = scmp.eq.s32.totalorder %s18, 1
    %p146 = por %p144, %p145
    %p147 = scmp.ne.s32.totalorder %s136, %s137
    %p148 = scmp.eq.s32.totalorder %s18, 0
    %p149 = por %p147, %p148
    %p150 = scmp.ne.s32.totalorder %s136, %s137
    %p151 = scmp.eq.s32.totalorder %s19, 1
    %p152 = por %p150, %p151
    %p154 = scmp.ne.s32.totalorder %s137, %s153
    %p155 = scmp.eq.s32.totalorder %s19, 0
    %p156 = por %p154, %p155
    %s157 = ssub.s32 %s13, %s20
    %p158 = scmp.eq.s32.totalorder %s157, 0
    %s160 = sadd.s32 %s159, 1
    %s161 = scalar_select %p158, %s159, %s160
    %p164 = pneg %p158
    %p165 = scmp.eq.s32.totalorder %s13, 1
    %p166 = por %p164, %p165
    %p167 = scmp.ne.s32.totalorder %s159, %s162
    %p168 = scmp.eq.s32.totalorder %s13, 0
    %p169 = por %p167, %p168
    %p170 = scmp.ne.s32.totalorder %s159, %s162
    %p171 = scmp.eq.s32.totalorder %s18, 1
    %p172 = por %p170, %p171
    %p173 = scmp.ne.s32.totalorder %s162, %s163
    %p174 = scmp.eq.s32.totalorder %s18, 0
    %p175 = por %p173, %p174
    %p176 = scmp.ne.s32.totalorder %s162, %s163
    %p177 = scmp.eq.s32.totalorder %s19, 1
    %p178 = por %p176, %p177
    %p180 = scmp.ne.s32.totalorder %s163, %s179
    %p181 = scmp.eq.s32.totalorder %s19, 0
    %p182 = por %p180, %p181
    %p183 = scmp.le.s32.totalorder 1, %s13
    %p184 = scmp.lt.s32.totalorder %s13, 3
    %p185 = pnand %p183, %p184
    %p186 = pneg %p185
    // Predicated region
    $region9: #{residual_layer_forward.6} parent=5 // pred_check
      _
    $region10: #{residual_layer_forward.6} parent=5 // pred_check_branch
      %188 = sbr.rel (%p185) target = $region12
    $region11: #{residual_layer_forward.6} parent=5 // pred_region
      %s189 = ssub.s32 %s13, 1
      // Predicated region
      $region13: #{residual_layer_forward.6} parent=11 // pred_check
        %p190 = pneg %p60
      $region14: #{residual_layer_forward.6} parent=11 // pred_check_branch
        %192 = sbr.rel (%p190) target = $region16
      $region15: #{residual_layer_forward.6} parent=11 // pred_region
        _
      $region16: #{residual_layer_forward.6} parent=11 // pred_fallthru
        _
      // Predicated region
      $region17: #{residual_layer_forward.6} parent=11 // pred_check
        %p193 = pneg %p81
      $region18: #{residual_layer_forward.6} parent=11 // pred_check_branch
        %195 = sbr.rel (%p193) target = $region20
      $region19: #{residual_layer_forward.6} parent=11 // pred_region
        _
      $region20: #{residual_layer_forward.6} parent=11 // pred_fallthru
        _
      // Predicated region
      $region21: #{residual_layer_forward.6} parent=11 // pred_check
        %p196 = pneg %p102
      $region22: #{residual_layer_forward.6} parent=11 // pred_check_branch
        %198 = sbr.rel (%p196) target = $region24
      $region23: #{residual_layer_forward.6} parent=11 // pred_region
        _
      $region24: #{residual_layer_forward.6} parent=11 // pred_fallthru
        _
      // Predicated region
      $region25: #{residual_layer_forward.6} parent=11 // pred_check
        %p199 = pneg %p123
      $region26: #{residual_layer_forward.6} parent=11 // pred_check_branch
        %201 = sbr.rel (%p199) target = $region28
      $region27: #{residual_layer_forward.6} parent=11 // pred_region
        _
      $region28: #{residual_layer_forward.6} parent=11 // pred_fallthru
        _
    $region12: #{residual_layer_forward.6} parent=5 // pred_fallthru
      _
    %p202 = scmp.lt.s32.totalorder %s13, 2
    // Predicated region
    $region29: #{residual_layer_forward.6} parent=5 // pred_check
      %p203 = pneg %p202
    $region30: #{residual_layer_forward.6} parent=5 // pred_check_branch
      %205 = sbr.rel (%p203) target = $region32
    $region31: #{residual_layer_forward.6} parent=5 // pred_region
      // Predicated region
      $region33: #{residual_layer_forward.6} parent=31 // pred_check
        %p206 = pneg %p33
      $region34: #{residual_layer_forward.6} parent=31 // pred_check_branch
        %208 = sbr.rel (%p206) target = $region36
      $region35: #{residual_layer_forward.6} parent=31 // pred_region
        %p209 = scmp.lt.s32.totalorder %s13, 1
        %s210 = scalar_select %p209, %s13, 1
        %s211 = smul.addr %s210, 2
        %s212 = smul.addr %s211, 8
        %s213 = scalar_lea.vmem %s0, %s212
      $region36: #{residual_layer_forward.6} parent=31 // pred_fallthru
        _
    $region32: #{residual_layer_forward.6} parent=5 // pred_fallthru
      _
    %p214 = scmp.le.s32.totalorder 1, %s13
    %p215 = scmp.lt.s32.totalorder %s13, 3
    %p216 = pnand %p214, %p215
    %p217 = pneg %p216
    // Predicated region
    $region37: #{residual_layer_forward.6} parent=5 // pred_check
      _
    $region38: #{residual_layer_forward.6} parent=5 // pred_check_branch
      %219 = sbr.rel (%p216) target = $region40
    $region39: #{residual_layer_forward.6} parent=5 // pred_region
      %s220 = ssub.s32 %s13, 1
      %p221 = scmp.lt.s32.totalorder %s18, 1
      %s222 = scalar_select %p221, %s18, 1
      %s223 = smul.addr %s222, 2
      %s224 = smul.addr %s223, 8
      %s225 = scalar_lea.vmem %s0, %s224
      %p226 = pneg %p39
      %p227 = pneg %p36
      %p228 = pneg %p60
      %p229 = pneg %p57
      %p230 = pneg %p81
      %p231 = pneg %p78
      %p232 = pneg %p102
      %p233 = pneg %p99
      %p234 = pneg %p123
      %p235 = pneg %p120
      %p236 = pneg %p149
      %p237 = pneg %p146
      %p238 = scmp.lt.s32.totalorder %s18, 1
      %s239 = scalar_select %p238, %s18, 1
      %s240 = smul.addr %s239, 2
      %s241 = smul.addr %s240, 8
      %s242 = scalar_lea.vmem %s5, %s241
      %p243 = pneg %p175
      %p244 = pneg %p172
      %p245 = scmp.lt.s32.totalorder %s18, 1
      %s246 = scalar_select %p245, %s18, 1
      %s247 = smul.addr %s246, 2
      %s248 = scalar_lea.vmem %s6, %s247
      %p249 = scmp.lt.s32.totalorder %s18, 1
      %s250 = scalar_select %p249, %s18, 1
      %s251 = smul.addr %s250, 2
      %s252 = smul.addr %s251, 8
      %s253 = scalar_lea.vmem %s0, %s252
      %p254 = scmp.lt.s32.totalorder %s18, 1
      %s255 = scalar_select %p254, %s18, 1
      %s256 = smul.addr %s255, 2
      %s257 = smul.addr %s256, 8
      %s258 = scalar_lea.vmem %s5, %s257
      %p259 = scmp.lt.s32.totalorder %s18, 1
      %s260 = scalar_select %p259, %s18, 1
      %s261 = smul.addr %s260, 2
      %s262 = scalar_lea.vmem %s6, %s261
      %v263 = vld [vmem:[%s253] sm:$0xff]
      %v264 = vld [vmem:[%s253 + $0x8] sm:$0xff]
      %v265 = vld [vmem:[%s3] sm:$0x1]
      %v267 = vlaneseq
      %v268 = vshrl.u32 %v267, 7
      %v269 = vsub.s32 0, %v268
      %v270 = vrot.slane %v265, %v269
      %v272 = vmul.f32 %v263, %v270
      %v273 = vmul.f32 %v264, %v270
      %v274 = vld [vmem:[%s4] sm:$0x1]
      %v276 = vlaneseq
      %v277 = vshrl.u32 %v276, 7
      %v278 = vsub.s32 0, %v277
      %v279 = vrot.slane %v274, %v278
      %v281 = vadd.f32 %v272, %v279
      %v282 = vadd.f32 %v273, %v279
      %v283 = vmax.f32 %v281, 0.0
      %v284 = vmax.f32 %v282, 0.0
      %285 = vst [vmem:[#allocation2] sm:$0x1] 0.0
      %286 = vst [vmem:[#allocation2 + $0x11] sm:$0x1] 0.0
      %287 = vst [vmem:[#allocation2 + $0x1] sm:$0xff] %v283
      %288 = vst [vmem:[#allocation2 + $0x9] sm:$0xff] %v284
      %v289 = vld [vmem:[#allocation2] sm:$0xff]
      %v290 = vld [vmem:[#allocation2 + $0x8] sm:$0xff]
      %v291 = vld [vmem:[%s1] sm:$0xff]
      %v292 = vld [vmem:[%s1 + $0x8] sm:$0xff]
      %v293 = vld [vmem:[%s1 + $0x10] sm:$0xff]
      %v294 = vld [vmem:[%s1 + $0x18] sm:$0xff]
      %v295 = vld [vmem:[%s1 + $0x20] sm:$0xff]
      %v296 = vld [vmem:[%s1 + $0x28] sm:$0xff]
      %v297 = vld [vmem:[%s1 + $0x30] sm:$0xff]
      %v298 = vld [vmem:[%s1 + $0x38] sm:$0xff]
      %v299 = vld [vmem:[%s1 + $0x40] sm:$0xff]
      %v300 = vld [vmem:[%s1 + $0x48] sm:$0xff]
      %v301 = vld [vmem:[%s1 + $0x50] sm:$0xff]
      %v302 = vld [vmem:[%s1 + $0x58] sm:$0xff]
      %v303 = vld [vmem:[%s1 + $0x60] sm:$0xff]
      %v304 = vld [vmem:[%s1 + $0x68] sm:$0xff]
      %v305 = vld [vmem:[%s1 + $0x70] sm:$0xff]
      %v306 = vld [vmem:[%s1 + $0x78] sm:$0xff]
      %v307 = vld [vmem:[#allocation2 + $0x1] sm:$0xff]
      %v308 = vld [vmem:[#allocation2 + $0x9] sm:$0xff]
      %s309 = scalar_lea.vmem %s1, 128
      %v310 = vld [vmem:[%s309] sm:$0xff]
      %v311 = vld [vmem:[%s309 + $0x8] sm:$0xff]
      %v312 = vld [vmem:[%s309 + $0x10] sm:$0xff]
      %v313 = vld [vmem:[%s309 + $0x18] sm:$0xff]
      %v314 = vld [vmem:[%s309 + $0x20] sm:$0xff]
      %v315 = vld [vmem:[%s309 + $0x28] sm:$0xff]
      %v316 = vld [vmem:[%s309 + $0x30] sm:$0xff]
      %v317 = vld [vmem:[%s309 + $0x38] sm:$0xff]
      %v318 = vld [vmem:[%s309 + $0x40] sm:$0xff]
      %v319 = vld [vmem:[%s309 + $0x48] sm:$0xff]
      %v320 = vld [vmem:[%s309 + $0x50] sm:$0xff]
      %v321 = vld [vmem:[%s309 + $0x58] sm:$0xff]
      %v322 = vld [vmem:[%s309 + $0x60] sm:$0xff]
      %v323 = vld [vmem:[%s309 + $0x68] sm:$0xff]
      %v324 = vld [vmem:[%s309 + $0x70] sm:$0xff]
      %v325 = vld [vmem:[%s309 + $0x78] sm:$0xff]
      %326 = vmatprep.subr.mxu0 0.0
      %327 = vmatpush1.msra.mxu0 %v325
      %328 = vmatprep.subr.mxu0 0.0
      %329 = vmatpush1.msra.mxu0 %v324
      %330 = vmatprep.subr.mxu0 0.0
      %331 = vmatpush1.msra.mxu0 %v323
      %332 = vmatprep.subr.mxu0 0.0
      %333 = vmatpush1.msra.mxu0 %v322
      %334 = vmatprep.subr.mxu0 0.0
      %335 = vmatpush1.msra.mxu0 %v321
      %336 = vmatprep.subr.mxu0 0.0
      %337 = vmatpush1.msra.mxu0 %v320
      %338 = vmatprep.subr.mxu0 0.0
      %339 = vmatpush1.msra.mxu0 %v319
      %340 = vmatprep.subr.mxu0 0.0
      %341 = vmatpush1.msra.mxu0 %v318
      %342 = vmatprep.subr.mxu0 0.0
      %343 = vmatpush1.msra.mxu0 %v317
      %344 = vmatprep.subr.mxu0 0.0
      %345 = vmatpush1.msra.mxu0 %v316
      %346 = vmatprep.subr.mxu0 0.0
      %347 = vmatpush1.msra.mxu0 %v315
      %348 = vmatprep.subr.mxu0 0.0
      %349 = vmatpush1.msra.mxu0 %v314
      %350 = vmatprep.subr.mxu0 0.0
      %351 = vmatpush1.msra.mxu0 %v313
      %352 = vmatprep.subr.mxu0 0.0
      %353 = vmatpush1.msra.mxu0 %v312
      %354 = vmatprep.subr.mxu0 0.0
      %355 = vmatpush1.msra.mxu0 %v311
      %356 = vmatprep.subr.mxu0 0.0
      %357 = vmatpush1.msra.mxu0 %v310
      %358 = vmatprep.subr.mxu0 0.0
      %359 = vmatpush2.msra.mxu0 0.0
      %360 = vmatprep.subr.mxu0 0.0
      %361 = vmatpush2.msra.mxu0 0.0
      %362 = vmatprep.subr.mxu0 0.0
      %363 = vmatpush2.msra.mxu0 0.0
      %364 = vmatprep.subr.mxu0 0.0
      %365 = vmatpush2.msra.mxu0 0.0
      %366 = vmatprep.subr.mxu0 0.0
      %367 = vmatpush2.msra.mxu0 0.0
      %368 = vmatprep.subr.mxu0 0.0
      %369 = vmatpush2.msra.mxu0 0.0
      %370 = vmatprep.subr.mxu0 0.0
      %371 = vmatpush2.msra.mxu0 0.0
      %372 = vmatprep.subr.mxu0 0.0
      %373 = vmatpush2.msra.mxu0 0.0
      %374 = vmatprep.subr.mxu0 0.0
      %375 = vmatpush2.msra.mxu0 0.0
      %376 = vmatprep.subr.mxu0 0.0
      %377 = vmatpush2.msra.mxu0 0.0
      %378 = vmatprep.subr.mxu0 0.0
      %379 = vmatpush2.msra.mxu0 0.0
      %380 = vmatprep.subr.mxu0 0.0
      %381 = vmatpush2.msra.mxu0 0.0
      %382 = vmatprep.subr.mxu0 0.0
      %383 = vmatpush2.msra.mxu0 0.0
      %384 = vmatprep.subr.mxu0 0.0
      %385 = vmatpush2.msra.mxu0 0.0
      %386 = vmatprep.subr.mxu0 0.0
      %387 = vmatpush2.msra.mxu0 0.0
      %388 = vmatprep.subr.mxu0 0.0
      %389 = vmatpush2.msra.mxu0 0.0
      %390 = vmatprep.mubr.f32.mxu0 0.0
      %391 = vmatmul.mubr.f32.gmra.mxu0 %v307
      %v392 = vpop.f32.mrf.mxu0
      %v393 = vadd.f32 0.0, %v392
      %v394 = vpop.f32.mrf.mxu0
      %395 = vmatprep.mubr.f32.mxu0 0.0
      %396 = vmatmul.mubr.f32.gmra.mxu0 %v308
      %v397 = vpop.f32.mrf.mxu0
      %v398 = vadd.f32 0.0, %v397
      %v399 = vpop.f32.mrf.mxu0
      %400 = vdwg.mxu0
      %401 = vmatprep.subr.mxu0 0.0
      %402 = vmatpush1.msra.mxu0 %v306
      %403 = vmatprep.subr.mxu0 0.0
      %404 = vmatpush1.msra.mxu0 %v305
      %405 = vmatprep.subr.mxu0 0.0
      %406 = vmatpush1.msra.mxu0 %v304
      %407 = vmatprep.subr.mxu0 0.0
      %408 = vmatpush1.msra.mxu0 %v303
      %409 = vmatprep.subr.mxu0 0.0
      %410 = vmatpush1.msra.mxu0 %v302
      %411 = vmatprep.subr.mxu0 0.0
      %412 = vmatpush1.msra.mxu0 %v301
      %413 = vmatprep.subr.mxu0 0.0
      %414 = vmatpush1.msra.mxu0 %v300
      %415 = vmatprep.subr.mxu0 0.0
      %416 = vmatpush1.msra.mxu0 %v299
      %417 = vmatprep.subr.mxu0 0.0
      %418 = vmatpush1.msra.mxu0 %v298
      %419 = vmatprep.subr.mxu0 0.0
      %420 = vmatpush1.msra.mxu0 %v297
      %421 = vmatprep.subr.mxu0 0.0
      %422 = vmatpush1.msra.mxu0 %v296
      %423 = vmatprep.subr.mxu0 0.0
      %424 = vmatpush1.msra.mxu0 %v295
      %425 = vmatprep.subr.mxu0 0.0
      %426 = vmatpush1.msra.mxu0 %v294
      %427 = vmatprep.subr.mxu0 0.0
      %428 = vmatpush1.msra.mxu0 %v293
      %429 = vmatprep.subr.mxu0 0.0
      %430 = vmatpush1.msra.mxu0 %v292
      %431 = vmatprep.subr.mxu0 0.0
      %432 = vmatpush1.msra.mxu0 %v291
      %433 = vmatprep.subr.mxu0 0.0
      %434 = vmatpush2.msra.mxu0 0.0
      %435 = vmatprep.subr.mxu0 0.0
      %436 = vmatpush2.msra.mxu0 0.0
      %437 = vmatprep.subr.mxu0 0.0
      %438 = vmatpush2.msra.mxu0 0.0
      %439 = vmatprep.subr.mxu0 0.0
      %440 = vmatpush2.msra.mxu0 0.0
      %441 = vmatprep.subr.mxu0 0.0
      %442 = vmatpush2.msra.mxu0 0.0
      %443 = vmatprep.subr.mxu0 0.0
      %444 = vmatpush2.msra.mxu0 0.0
      %445 = vmatprep.subr.mxu0 0.0
      %446 = vmatpush2.msra.mxu0 0.0
      %447 = vmatprep.subr.mxu0 0.0
      %448 = vmatpush2.msra.mxu0 0.0
      %449 = vmatprep.subr.mxu0 0.0
      %450 = vmatpush2.msra.mxu0 0.0
      %451 = vmatprep.subr.mxu0 0.0
      %452 = vmatpush2.msra.mxu0 0.0
      %453 = vmatprep.subr.mxu0 0.0
      %454 = vmatpush2.msra.mxu0 0.0
      %455 = vmatprep.subr.mxu0 0.0
      %456 = vmatpush2.msra.mxu0 0.0
      %457 = vmatprep.subr.mxu0 0.0
      %458 = vmatpush2.msra.mxu0 0.0
      %459 = vmatprep.subr.mxu0 0.0
      %460 = vmatpush2.msra.mxu0 0.0
      %461 = vmatprep.subr.mxu0 0.0
      %462 = vmatpush2.msra.mxu0 0.0
      %463 = vmatprep.subr.mxu0 0.0
      %464 = vmatpush2.msra.mxu0 0.0
      %465 = vmatprep.mubr.f32.mxu0 0.0
      %466 = vmatmul.mubr.f32.gmra.mxu0 %v289
      %v467 = vpop.f32.mrf.mxu0
      %v468 = vadd.f32 %v393, %v467
      %v469 = vpop.f32.mrf.mxu0
      %470 = vmatprep.mubr.f32.mxu0 0.0
      %471 = vmatmul.mubr.f32.gmra.mxu0 %v290
      %v472 = vpop.f32.mrf.mxu0
      %v473 = vadd.f32 %v398, %v472
      %v474 = vpop.f32.mrf.mxu0
      %475 = vdwg.mxu0
      %v476 = vld [vmem:[#allocation2 + $0x2] sm:$0xff]
      %v477 = vld [vmem:[#allocation2 + $0xa] sm:$0xff]
      %s478 = scalar_lea.vmem %s1, 256
      %v479 = vld [vmem:[%s478] sm:$0xff]
      %v480 = vld [vmem:[%s478 + $0x8] sm:$0xff]
      %v481 = vld [vmem:[%s478 + $0x10] sm:$0xff]
      %v482 = vld [vmem:[%s478 + $0x18] sm:$0xff]
      %v483 = vld [vmem:[%s478 + $0x20] sm:$0xff]
      %v484 = vld [vmem:[%s478 + $0x28] sm:$0xff]
      %v485 = vld [vmem:[%s478 + $0x30] sm:$0xff]
      %v486 = vld [vmem:[%s478 + $0x38] sm:$0xff]
      %v487 = vld [vmem:[%s478 + $0x40] sm:$0xff]
      %v488 = vld [vmem:[%s478 + $0x48] sm:$0xff]
      %v489 = vld [vmem:[%s478 + $0x50] sm:$0xff]
      %v490 = vld [vmem:[%s478 + $0x58] sm:$0xff]
      %v491 = vld [vmem:[%s478 + $0x60] sm:$0xff]
      %v492 = vld [vmem:[%s478 + $0x68] sm:$0xff]
      %v493 = vld [vmem:[%s478 + $0x70] sm:$0xff]
      %v494 = vld [vmem:[%s478 + $0x78] sm:$0xff]
      %495 = vmatprep.subr.mxu0 0.0
      %496 = vmatpush1.msra.mxu0 %v494
      %497 = vmatprep.subr.mxu0 0.0
      %498 = vmatpush1.msra.mxu0 %v493
      %499 = vmatprep.subr.mxu0 0.0
      %500 = vmatpush1.msra.mxu0 %v492
      %501 = vmatprep.subr.mxu0 0.0
      %502 = vmatpush1.msra.mxu0 %v491
      %503 = vmatprep.subr.mxu0 0.0
      %504 = vmatpush1.msra.mxu0 %v490
      %505 = vmatprep.subr.mxu0 0.0
      %506 = vmatpush1.msra.mxu0 %v489
      %507 = vmatprep.subr.mxu0 0.0
      %508 = vmatpush1.msra.mxu0 %v488
      %509 = vmatprep.subr.mxu0 0.0
      %510 = vmatpush1.msra.mxu0 %v487
      %511 = vmatprep.subr.mxu0 0.0
      %512 = vmatpush1.msra.mxu0 %v486
      %513 = vmatprep.subr.mxu0 0.0
      %514 = vmatpush1.msra.mxu0 %v485
      %515 = vmatprep.subr.mxu0 0.0
      %516 = vmatpush1.msra.mxu0 %v484
      %517 = vmatprep.subr.mxu0 0.0
      %518 = vmatpush1.msra.mxu0 %v483
      %519 = vmatprep.subr.mxu0 0.0
      %520 = vmatpush1.msra.mxu0 %v482
      %521 = vmatprep.subr.mxu0 0.0
      %522 = vmatpush1.msra.mxu0 %v481
      %523 = vmatprep.subr.mxu0 0.0
      %524 = vmatpush1.msra.mxu0 %v480
      %525 = vmatprep.subr.mxu0 0.0
      %526 = vmatpush1.msra.mxu0 %v479
      %527 = vmatprep.subr.mxu0 0.0
      %528 = vmatpush2.msra.mxu0 0.0
      %529 = vmatprep.subr.mxu0 0.0
      %530 = vmatpush2.msra.mxu0 0.0
      %531 = vmatprep.subr.mxu0 0.0
      %532 = vmatpush2.msra.mxu0 0.0
      %533 = vmatprep.subr.mxu0 0.0
      %534 = vmatpush2.msra.mxu0 0.0
      %535 = vmatprep.subr.mxu0 0.0
      %536 = vmatpush2.msra.mxu0 0.0
      %537 = vmatprep.subr.mxu0 0.0
      %538 = vmatpush2.msra.mxu0 0.0
      %539 = vmatprep.subr.mxu0 0.0
      %540 = vmatpush2.msra.mxu0 0.0
      %541 = vmatprep.subr.mxu0 0.0
      %542 = vmatpush2.msra.mxu0 0.0
      %543 = vmatprep.subr.mxu0 0.0
      %544 = vmatpush2.msra.mxu0 0.0
      %545 = vmatprep.subr.mxu0 0.0
      %546 = vmatpush2.msra.mxu0 0.0
      %547 = vmatprep.subr.mxu0 0.0
      %548 = vmatpush2.msra.mxu0 0.0
      %549 = vmatprep.subr.mxu0 0.0
      %550 = vmatpush2.msra.mxu0 0.0
      %551 = vmatprep.subr.mxu0 0.0
      %552 = vmatpush2.msra.mxu0 0.0
      %553 = vmatprep.subr.mxu0 0.0
      %554 = vmatpush2.msra.mxu0 0.0
      %555 = vmatprep.subr.mxu0 0.0
      %556 = vmatpush2.msra.mxu0 0.0
      %557 = vmatprep.subr.mxu0 0.0
      %558 = vmatpush2.msra.mxu0 0.0
      %559 = vmatprep.mubr.f32.mxu0 0.0
      %560 = vmatmul.mubr.f32.gmra.mxu0 %v476
      %v561 = vpop.f32.mrf.mxu0
      %v562 = vadd.f32 0.0, %v561
      %v563 = vpop.f32.mrf.mxu0
      %564 = vmatprep.mubr.f32.mxu0 0.0
      %565 = vmatmul.mubr.f32.gmra.mxu0 %v477
      %v566 = vpop.f32.mrf.mxu0
      %v567 = vadd.f32 0.0, %v566
      %v568 = vpop.f32.mrf.mxu0
      %569 = vdwg.mxu0
      %v570 = vadd.f32 %v468, %v562
      %v571 = vadd.f32 %v473, %v567
      %572 = vst [vmem:[%s258] sm:$0xff] %v570
      %573 = vst [vmem:[%s258 + $0x8] sm:$0xff] %v571
      %v574 = vadd.f32 %v570, %v571
      %v575 = vrot.slane %v574, 4
      %v576 = vadd.f32 %v574, %v575
      %v577 = vrot.slane %v576, 2
      %v578 = vadd.f32 %v576, %v577
      %v579 = vrot.slane %v578, 1
      %v580 = vadd.f32 %v578, %v579
      %v581 = vmul.f32 %v570, %v570
      %v582 = vmul.f32 %v571, %v571
      %v583 = vadd.f32 %v581, %v582
      %v584 = vrot.slane %v583, 4
      %v585 = vadd.f32 %v583, %v584
      %v586 = vrot.slane %v585, 2
      %v587 = vadd.f32 %v585, %v586
      %v588 = vrot.slane %v587, 1
      %v589 = vadd.f32 %v587, %v588
      %vm590 = vcmask 1040384
      %v591 = vsel %vm590, %v580, %v589
      %v592 = vadd.f32 %v591, 0.0
      %v593 = vld [vmem:[%s2] sm:$0xff]
      %v594 = vld [vmem:[%s2 + $0x8] sm:$0xff]
      %v595 = vld [vmem:[%s2 + $0x10] sm:$0xff]
      %v596 = vld [vmem:[%s2 + $0x18] sm:$0xff]
      %v597 = vld [vmem:[%s2 + $0x20] sm:$0xff]
      %v598 = vld [vmem:[%s2 + $0x28] sm:$0xff]
      %v599 = vld [vmem:[%s2 + $0x30] sm:$0xff]
      %v600 = vld [vmem:[%s2 + $0x38] sm:$0xff]
      %v601 = vld [vmem:[%s2 + $0x40] sm:$0xff]
      %v602 = vld [vmem:[%s2 + $0x48] sm:$0xff]
      %v603 = vld [vmem:[%s2 + $0x50] sm:$0xff]
      %v604 = vld [vmem:[%s2 + $0x58] sm:$0xff]
      %v605 = vld [vmem:[%s2 + $0x60] sm:$0xff]
      %v606 = vld [vmem:[%s2 + $0x68] sm:$0xff]
      %v607 = vld [vmem:[%s2 + $0x70] sm:$0xff]
      %v608 = vld [vmem:[%s2 + $0x78] sm:$0xff]
      %609 = vmatprep.subr.mxu0 0.0
      %610 = vmatpush1.msra.mxu0 %v608
      %611 = vmatprep.subr.mxu0 0.0
      %612 = vmatpush1.msra.mxu0 %v607
      %613 = vmatprep.subr.mxu0 0.0
      %614 = vmatpush1.msra.mxu0 %v606
      %615 = vmatprep.subr.mxu0 0.0
      %616 = vmatpush1.msra.mxu0 %v605
      %617 = vmatprep.subr.mxu0 0.0
      %618 = vmatpush1.msra.mxu0 %v604
      %619 = vmatprep.subr.mxu0 0.0
      %620 = vmatpush1.msra.mxu0 %v603
      %621 = vmatprep.subr.mxu0 0.0
      %622 = vmatpush1.msra.mxu0 %v602
      %623 = vmatprep.subr.mxu0 0.0
      %624 = vmatpush1.msra.mxu0 %v601
      %625 = vmatprep.subr.mxu0 0.0
      %626 = vmatpush1.msra.mxu0 %v600
      %627 = vmatprep.subr.mxu0 0.0
      %628 = vmatpush1.msra.mxu0 %v599
      %629 = vmatprep.subr.mxu0 0.0
      %630 = vmatpush1.msra.mxu0 %v598
      %631 = vmatprep.subr.mxu0 0.0
      %632 = vmatpush1.msra.mxu0 %v597
      %633 = vmatprep.subr.mxu0 0.0
      %634 = vmatpush1.msra.mxu0 %v596
      %635 = vmatprep.subr.mxu0 0.0
      %636 = vmatpush1.msra.mxu0 %v595
      %637 = vmatprep.subr.mxu0 0.0
      %638 = vmatpush1.msra.mxu0 %v594
      %639 = vmatprep.subr.mxu0 0.0
      %640 = vmatpush1.msra.mxu0 %v593
      %641 = vmatprep.subr.mxu0 0.0
      %642 = vmatpush2.msra.mxu0 0.0
      %643 = vmatprep.subr.mxu0 0.0
      %644 = vmatpush2.msra.mxu0 0.0
      %645 = vmatprep.subr.mxu0 0.0
      %646 = vmatpush2.msra.mxu0 0.0
      %647 = vmatprep.subr.mxu0 0.0
      %648 = vmatpush2.msra.mxu0 0.0
      %649 = vmatprep.subr.mxu0 0.0
      %650 = vmatpush2.msra.mxu0 0.0
      %651 = vmatprep.subr.mxu0 0.0
      %652 = vmatpush2.msra.mxu0 0.0
      %653 = vmatprep.subr.mxu0 0.0
      %654 = vmatpush2.msra.mxu0 0.0
      %655 = vmatprep.subr.mxu0 0.0
      %656 = vmatpush2.msra.mxu0 0.0
      %657 = vmatprep.subr.mxu0 0.0
      %658 = vmatpush2.msra.mxu0 0.0
      %659 = vmatprep.subr.mxu0 0.0
      %660 = vmatpush2.msra.mxu0 0.0
      %661 = vmatprep.subr.mxu0 0.0
      %662 = vmatpush2.msra.mxu0 0.0
      %663 = vmatprep.subr.mxu0 0.0
      %664 = vmatpush2.msra.mxu0 0.0
      %665 = vmatprep.subr.mxu0 0.0
      %666 = vmatpush2.msra.mxu0 0.0
      %667 = vmatprep.subr.mxu0 0.0
      %668 = vmatpush2.msra.mxu0 0.0
      %669 = vmatprep.subr.mxu0 0.0
      %670 = vmatpush2.msra.mxu0 0.0
      %671 = vmatprep.subr.mxu0 0.0
      %672 = vmatpush2.msra.mxu0 0.0
      %673 = vmatprep.mubr.f32.mxu0 0.0
      %674 = vmatmul.mubr.f32.gmra.mxu0 %v592
      %v675 = vpop.f32.mrf.mxu0
      %v676 = vadd.f32 0.0, %v675
      %v677 = vpop.f32.mrf.mxu0
      %678 = vdwg.mxu0
      %vm679 = vcmask 58368
      %680 = vst.msk [vmem:[%s262] sm:$0x3] %vm679, %v676
      %p681 = scmp.lt.s32.totalorder %s18, 1
      %s682 = scalar_select %p681, %s18, 1
      %s683 = smul.addr %s682, 2
      %s684 = smul.addr %s683, 8
      %s685 = scalar_lea.vmem %s5, %s684
      %p686 = scmp.lt.s32.totalorder %s18, 1
      %s687 = scalar_select %p686, %s18, 1
      %s688 = smul.addr %s687, 2
      %s689 = scalar_lea.vmem %s6, %s688
      // Predicated region
      $region41: #{residual_layer_forward.6} parent=39 // pred_check
        %p690 = pneg %p146
      $region42: #{residual_layer_forward.6} parent=39 // pred_check_branch
        %692 = sbr.rel (%p690) target = $region44
      $region43: #{residual_layer_forward.6} parent=39 // pred_region
        _
      $region44: #{residual_layer_forward.6} parent=39 // pred_fallthru
        _
      // Predicated region
      $region45: #{residual_layer_forward.6} parent=39 // pred_check
        %p693 = pneg %p172
      $region46: #{residual_layer_forward.6} parent=39 // pred_check_branch
        %695 = sbr.rel (%p693) target = $region48
      $region47: #{residual_layer_forward.6} parent=39 // pred_region
        _
      $region48: #{residual_layer_forward.6} parent=39 // pred_fallthru
        _
    $region40: #{residual_layer_forward.6} parent=5 // pred_fallthru
      _
    %p696 = scmp.le.s32.totalorder 2, %s13
    // Predicated region
    $region49: #{residual_layer_forward.6} parent=5 // pred_check
      %p697 = pneg %p696
    $region50: #{residual_layer_forward.6} parent=5 // pred_check_branch
      %699 = sbr.rel (%p697) target = $region52
    $region51: #{residual_layer_forward.6} parent=5 // pred_region
      %s700 = ssub.s32 %s13, 2
      // Predicated region
      $region53: #{residual_layer_forward.6} parent=51 // pred_check
        %p701 = pneg %p152
      $region54: #{residual_layer_forward.6} parent=51 // pred_check_branch
        %703 = sbr.rel (%p701) target = $region56
      $region55: #{residual_layer_forward.6} parent=51 // pred_region
        %p704 = scmp.lt.s32.totalorder %s19, 1
        %s705 = scalar_select %p704, %s19, 1
        %s706 = smul.addr %s705, 2
        %s707 = smul.addr %s706, 8
        %s708 = scalar_lea.vmem %s5, %s707
      $region56: #{residual_layer_forward.6} parent=51 // pred_fallthru
        _
      // Predicated region
      $region57: #{residual_layer_forward.6} parent=51 // pred_check
        %p709 = pneg %p178
      $region58: #{residual_layer_forward.6} parent=51 // pred_check_branch
        %711 = sbr.rel (%p709) target = $region60
      $region59: #{residual_layer_forward.6} parent=51 // pred_region
        %p712 = scmp.lt.s32.totalorder %s19, 1
        %s713 = scalar_select %p712, %s19, 1
        %s714 = smul.addr %s713, 2
        %s715 = scalar_lea.vmem %s6, %s714
      $region60: #{residual_layer_forward.6} parent=51 // pred_fallthru
        _
    $region52: #{residual_layer_forward.6} parent=5 // pred_fallthru
      _
  $region6: #{residual_layer_forward.6} parent=0 // loop_footer
    %s17 = sadd.s32 1, %s13
  $region7: #{residual_layer_forward.6} parent=0 // loop_footer_branch
    %12 = sbr.rel target = $region3
  $region8: #{residual_layer_forward.6} parent=0 // loop_exit
    _

// kernel: residual_layer_forward.9
$region0: #{residual_layer_forward.9}
  #allocation0 [shape = 'u32[]', space=smem, size = 0x4, offset = 0x4, fixed_abs, tag = 'smem constant byte address 0x4 - core index']
  #allocation1 [shape = 'u32[144,128]{1,0:T(1,128)}', space=vmem, size = 0x12000, scoped, tag = 'internal scratch']
  %s0 = inlined_call_operand.vmem [shape: f32[64,128], index: 0, kind: input, shape index: {}, may-alias: {0,6}]
  %s1 = inlined_call_operand.vmem [shape: f32[64,128], index: 1, kind: input, shape index: {}]
  %s2 = inlined_call_operand.vmem [shape: f32[1,128], index: 2, kind: input, shape index: {}]
  %s3 = inlined_call_operand.vmem [shape: f32[1,128], index: 3, kind: input, shape index: {}]
  %s4 = inlined_call_operand.vmem [shape: f32[1,128], index: 4, kind: input, shape index: {}]
  %s5 = inlined_call_operand.vmem [shape: f32[1,128], index: 5, kind: input, shape index: {}]
  %s6 = inlined_call_operand.vmem [shape: f32[64,128], index: 6, kind: output, shape index: {}, may-alias: {0,6}]
  %s7 = sld [smem:[#allocation0]]
  $region57: #{residual_layer_forward.9} parent=0
    _
  %s9 = ssub.s32 1, %s7
  %s10 = scalar_select 0, %s9, %s7
  loop: start=0, step=1, limit=4
  $region2: #{residual_layer_forward.9} parent=0 // loop_pre_header
    _
  $region3: #{residual_layer_forward.9} parent=0 // loop_header
    %s12 = sphi 0, %s16
    %p13 = scmp.ge.s32.totalorder %s12, 4
    %s22 = sphi 0, %s24
    %s25 = sphi 0, %s22
    %s26 = sphi 0, %s25
    %s42 = sphi 0, %s26
    %s48 = sphi 0, %s50
    %s51 = sphi 0, %s48
    %s52 = sphi 0, %s51
    %s68 = sphi 0, %s52
    %s72 = sphi 0, %s72
    %s74 = sphi 0, %s72
    %s75 = sphi 0, %s74
    %s89 = sphi 0, %s75
    %s93 = sphi 0, %s93
    %s95 = sphi 0, %s93
    %s96 = sphi 0, %s95
    %s110 = sphi 0, %s96
    %s114 = sphi 0, %s114
    %s116 = sphi 0, %s114
    %s117 = sphi 0, %s116
    %s131 = sphi 0, %s117
    %s135 = sphi 0, %s135
    %s137 = sphi 0, %s135
    %s138 = sphi 0, %s137
    %s152 = sphi 0, %s138
    %s158 = sphi 0, %s160
    %s161 = sphi 0, %s158
    %s162 = sphi 0, %s161
    %s178 = sphi 0, %s162
  $region4: #{residual_layer_forward.9} parent=0 // loop_header_branch
    %15 = sbr.rel (%p13) target = $region8
  $region5: #{residual_layer_forward.9} parent=0 // loop_body
    %s17 = ssub.s32 %s12, 1
    %s18 = ssub.s32 %s12, 2
    %s19 = sadd.s32 %s12, 1
    %s20 = ssub.s32 %s12, %s19
    %p21 = scmp.eq.s32.totalorder %s20, 0
    %s23 = sadd.s32 %s22, 1
    %s24 = scalar_select %p21, %s22, %s23
    %p27 = pneg %p21
    %p28 = scmp.eq.s32.totalorder %s12, 1
    %p29 = por %p27, %p28
    %p30 = scmp.ne.s32.totalorder %s22, %s25
    %p31 = scmp.eq.s32.totalorder %s12, 0
    %p32 = por %p30, %p31
    %p33 = scmp.ne.s32.totalorder %s22, %s25
    %p34 = scmp.eq.s32.totalorder %s17, 1
    %p35 = por %p33, %p34
    %p36 = scmp.ne.s32.totalorder %s25, %s26
    %p37 = scmp.eq.s32.totalorder %s17, 0
    %p38 = por %p36, %p37
    %p39 = scmp.ne.s32.totalorder %s25, %s26
    %p40 = scmp.eq.s32.totalorder %s18, 1
    %p41 = por %p39, %p40
    %p43 = scmp.ne.s32.totalorder %s26, %s42
    %p44 = scmp.eq.s32.totalorder %s18, 0
    %p45 = por %p43, %p44
    %s46 = ssub.s32 %s12, %s19
    %p47 = scmp.eq.s32.totalorder %s46, 0
    %s49 = sadd.s32 %s48, 1
    %s50 = scalar_select %p47, %s48, %s49
    %p53 = pneg %p47
    %p54 = scmp.eq.s32.totalorder %s12, 1
    %p55 = por %p53, %p54
    %p56 = scmp.ne.s32.totalorder %s48, %s51
    %p57 = scmp.eq.s32.totalorder %s12, 0
    %p58 = por %p56, %p57
    %p59 = scmp.ne.s32.totalorder %s48, %s51
    %p60 = scmp.eq.s32.totalorder %s17, 1
    %p61 = por %p59, %p60
    %p62 = scmp.ne.s32.totalorder %s51, %s52
    %p63 = scmp.eq.s32.totalorder %s17, 0
    %p64 = por %p62, %p63
    %p65 = scmp.ne.s32.totalorder %s51, %s52
    %p66 = scmp.eq.s32.totalorder %s18, 1
    %p67 = por %p65, %p66
    %p69 = scmp.ne.s32.totalorder %s52, %s68
    %p70 = scmp.eq.s32.totalorder %s18, 0
    %p71 = por %p69, %p70
    %s73 = sadd.s32 %s72, 1
    %p76 = scmp.eq.s32.totalorder %s12, 1
    %p77 = scmp.ne.s32.totalorder %s72, %s74
    %p78 = scmp.eq.s32.totalorder %s12, 0
    %p79 = por %p77, %p78
    %p80 = scmp.ne.s32.totalorder %s72, %s74
    %p81 = scmp.eq.s32.totalorder %s17, 1
    %p82 = por %p80, %p81
    %p83 = scmp.ne.s32.totalorder %s74, %s75
    %p84 = scmp.eq.s32.totalorder %s17, 0
    %p85 = por %p83, %p84
    %p86 = scmp.ne.s32.totalorder %s74, %s75
    %p87 = scmp.eq.s32.totalorder %s18, 1
    %p88 = por %p86, %p87
    %p90 = scmp.ne.s32.totalorder %s75, %s89
    %p91 = scmp.eq.s32.totalorder %s18, 0
    %p92 = por %p90, %p91
    %s94 = sadd.s32 %s93, 1
    %p97 = scmp.eq.s32.totalorder %s12, 1
    %p98 = scmp.ne.s32.totalorder %s93, %s95
    %p99 = scmp.eq.s32.totalorder %s12, 0
    %p100 = por %p98, %p99
    %p101 = scmp.ne.s32.totalorder %s93, %s95
    %p102 = scmp.eq.s32.totalorder %s17, 1
    %p103 = por %p101, %p102
    %p104 = scmp.ne.s32.totalorder %s95, %s96
    %p105 = scmp.eq.s32.totalorder %s17, 0
    %p106 = por %p104, %p105
    %p107 = scmp.ne.s32.totalorder %s95, %s96
    %p108 = scmp.eq.s32.totalorder %s18, 1
    %p109 = por %p107, %p108
    %p111 = scmp.ne.s32.totalorder %s96, %s110
    %p112 = scmp.eq.s32.totalorder %s18, 0
    %p113 = por %p111, %p112
    %s115 = sadd.s32 %s114, 1
    %p118 = scmp.eq.s32.totalorder %s12, 1
    %p119 = scmp.ne.s32.totalorder %s114, %s116
    %p120 = scmp.eq.s32.totalorder %s12, 0
    %p121 = por %p119, %p120
    %p122 = scmp.ne.s32.totalorder %s114, %s116
    %p123 = scmp.eq.s32.totalorder %s17, 1
    %p124 = por %p122, %p123
    %p125 = scmp.ne.s32.totalorder %s116, %s117
    %p126 = scmp.eq.s32.totalorder %s17, 0
    %p127 = por %p125, %p126
    %p128 = scmp.ne.s32.totalorder %s116, %s117
    %p129 = scmp.eq.s32.totalorder %s18, 1
    %p130 = por %p128, %p129
    %p132 = scmp.ne.s32.totalorder %s117, %s131
    %p133 = scmp.eq.s32.totalorder %s18, 0
    %p134 = por %p132, %p133
    %s136 = sadd.s32 %s135, 1
    %p139 = scmp.eq.s32.totalorder %s12, 1
    %p140 = scmp.ne.s32.totalorder %s135, %s137
    %p141 = scmp.eq.s32.totalorder %s12, 0
    %p142 = por %p140, %p141
    %p143 = scmp.ne.s32.totalorder %s135, %s137
    %p144 = scmp.eq.s32.totalorder %s17, 1
    %p145 = por %p143, %p144
    %p146 = scmp.ne.s32.totalorder %s137, %s138
    %p147 = scmp.eq.s32.totalorder %s17, 0
    %p148 = por %p146, %p147
    %p149 = scmp.ne.s32.totalorder %s137, %s138
    %p150 = scmp.eq.s32.totalorder %s18, 1
    %p151 = por %p149, %p150
    %p153 = scmp.ne.s32.totalorder %s138, %s152
    %p154 = scmp.eq.s32.totalorder %s18, 0
    %p155 = por %p153, %p154
    %s156 = ssub.s32 %s12, %s19
    %p157 = scmp.eq.s32.totalorder %s156, 0
    %s159 = sadd.s32 %s158, 1
    %s160 = scalar_select %p157, %s158, %s159
    %p163 = pneg %p157
    %p164 = scmp.eq.s32.totalorder %s12, 1
    %p165 = por %p163, %p164
    %p166 = scmp.ne.s32.totalorder %s158, %s161
    %p167 = scmp.eq.s32.totalorder %s12, 0
    %p168 = por %p166, %p167
    %p169 = scmp.ne.s32.totalorder %s158, %s161
    %p170 = scmp.eq.s32.totalorder %s17, 1
    %p171 = por %p169, %p170
    %p172 = scmp.ne.s32.totalorder %s161, %s162
    %p173 = scmp.eq.s32.totalorder %s17, 0
    %p174 = por %p172, %p173
    %p175 = scmp.ne.s32.totalorder %s161, %s162
    %p176 = scmp.eq.s32.totalorder %s18, 1
    %p177 = por %p175, %p176
    %p179 = scmp.ne.s32.totalorder %s162, %s178
    %p180 = scmp.eq.s32.totalorder %s18, 0
    %p181 = por %p179, %p180
    %p182 = scmp.le.s32.totalorder 1, %s12
    %p183 = scmp.lt.s32.totalorder %s12, 3
    %p184 = pnand %p182, %p183
    %p185 = pneg %p184
    // Predicated region
    $region9: #{residual_layer_forward.9} parent=5 // pred_check
      _
    $region10: #{residual_layer_forward.9} parent=5 // pred_check_branch
      %187 = sbr.rel (%p184) target = $region12
    $region11: #{residual_layer_forward.9} parent=5 // pred_region
      %s188 = ssub.s32 %s12, 1
      // Predicated region
      $region13: #{residual_layer_forward.9} parent=11 // pred_check
        %p189 = pneg %p85
      $region14: #{residual_layer_forward.9} parent=11 // pred_check_branch
        %191 = sbr.rel (%p189) target = $region16
      $region15: #{residual_layer_forward.9} parent=11 // pred_region
        _
      $region16: #{residual_layer_forward.9} parent=11 // pred_fallthru
        _
      // Predicated region
      $region17: #{residual_layer_forward.9} parent=11 // pred_check
        %p192 = pneg %p106
      $region18: #{residual_layer_forward.9} parent=11 // pred_check_branch
        %194 = sbr.rel (%p192) target = $region20
      $region19: #{residual_layer_forward.9} parent=11 // pred_region
        _
      $region20: #{residual_layer_forward.9} parent=11 // pred_fallthru
        _
      // Predicated region
      $region21: #{residual_layer_forward.9} parent=11 // pred_check
        %p195 = pneg %p127
      $region22: #{residual_layer_forward.9} parent=11 // pred_check_branch
        %197 = sbr.rel (%p195) target = $region24
      $region23: #{residual_layer_forward.9} parent=11 // pred_region
        _
      $region24: #{residual_layer_forward.9} parent=11 // pred_fallthru
        _
      // Predicated region
      $region25: #{residual_layer_forward.9} parent=11 // pred_check
        %p198 = pneg %p148
      $region26: #{residual_layer_forward.9} parent=11 // pred_check_branch
        %200 = sbr.rel (%p198) target = $region28
      $region27: #{residual_layer_forward.9} parent=11 // pred_region
        _
      $region28: #{residual_layer_forward.9} parent=11 // pred_fallthru
        _
    $region12: #{residual_layer_forward.9} parent=5 // pred_fallthru
      _
    %p201 = scmp.lt.s32.totalorder %s12, 2
    // Predicated region
    $region29: #{residual_layer_forward.9} parent=5 // pred_check
      %p202 = pneg %p201
    $region30: #{residual_layer_forward.9} parent=5 // pred_check_branch
      %204 = sbr.rel (%p202) target = $region32
    $region31: #{residual_layer_forward.9} parent=5 // pred_region
      // Predicated region
      $region33: #{residual_layer_forward.9} parent=31 // pred_check
        %p205 = pneg %p32
      $region34: #{residual_layer_forward.9} parent=31 // pred_check_branch
        %207 = sbr.rel (%p205) target = $region36
      $region35: #{residual_layer_forward.9} parent=31 // pred_region
        %s208 = smul.u32 4, %s12
        %p209 = scmp.lt.s32.totalorder %s208, 7
        %s210 = scalar_select %p209, %s208, 7
        %s211 = smul.addr %s210, 8
        %s212 = scalar_lea.vmem %s0, %s211
        %s213 = smul.u32 4, %s12
      $region36: #{residual_layer_forward.9} parent=31 // pred_fallthru
        _
      // Predicated region
      $region37: #{residual_layer_forward.9} parent=31 // pred_check
        %p214 = pneg %p58
      $region38: #{residual_layer_forward.9} parent=31 // pred_check_branch
        %216 = sbr.rel (%p214) target = $region40
      $region39: #{residual_layer_forward.9} parent=31 // pred_region
        %s217 = smul.u32 4, %s12
        %p218 = scmp.lt.s32.totalorder %s217, 7
        %s219 = scalar_select %p218, %s217, 7
        %s220 = smul.addr %s219, 8
        %s221 = scalar_lea.vmem %s1, %s220
        %s222 = smul.u32 4, %s12
      $region40: #{residual_layer_forward.9} parent=31 // pred_fallthru
        _
    $region32: #{residual_layer_forward.9} parent=5 // pred_fallthru
      _
    %p223 = scmp.le.s32.totalorder 1, %s12
    %p224 = scmp.lt.s32.totalorder %s12, 3
    %p225 = pnand %p223, %p224
    %p226 = pneg %p225
    // Predicated region
    $region41: #{residual_layer_forward.9} parent=5 // pred_check
      _
    $region42: #{residual_layer_forward.9} parent=5 // pred_check_branch
      %228 = sbr.rel (%p225) target = $region44
    $region43: #{residual_layer_forward.9} parent=5 // pred_region
      %s229 = ssub.s32 %s12, 1
      %s230 = smul.u32 4, %s17
      %p231 = scmp.lt.s32.totalorder %s230, 7
      %s232 = scalar_select %p231, %s230, 7
      %s233 = smul.addr %s232, 8
      %s234 = scalar_lea.vmem %s0, %s233
      %p235 = pneg %p38
      %p236 = pneg %p35
      %s237 = smul.u32 4, %s17
      %p238 = scmp.lt.s32.totalorder %s237, 7
      %s239 = scalar_select %p238, %s237, 7
      %s240 = smul.addr %s239, 8
      %s241 = scalar_lea.vmem %s1, %s240
      %p242 = pneg %p64
      %p243 = pneg %p61
      %p244 = pneg %p85
      %p245 = pneg %p82
      %p246 = pneg %p106
      %p247 = pneg %p103
      %p248 = pneg %p127
      %p249 = pneg %p124
      %p250 = pneg %p148
      %p251 = pneg %p145
      %p252 = pneg %p174
      %p253 = pneg %p171
      %s254 = smul.u32 4, %s17
      %p255 = scmp.lt.s32.totalorder %s254, 7
      %s256 = scalar_select %p255, %s254, 7
      %s257 = smul.addr %s256, 8
      %s258 = scalar_lea.vmem %s6, %s257
      %s259 = smul.u32 4, %s17
      %p260 = scmp.lt.s32.totalorder %s259, 7
      %s261 = scalar_select %p260, %s259, 7
      %s262 = smul.addr %s261, 8
      %s263 = scalar_lea.vmem %s0, %s262
      %s264 = smul.u32 4, %s17
      %s265 = smul.u32 4, %s17
      %p266 = scmp.lt.s32.totalorder %s265, 7
      %s267 = scalar_select %p266, %s265, 7
      %s268 = smul.addr %s267, 8
      %s269 = scalar_lea.vmem %s1, %s268
      %s270 = smul.u32 4, %s17
      %s271 = smul.u32 4, %s17
      %p272 = scmp.lt.s32.totalorder %s271, 7
      %s273 = scalar_select %p272, %s271, 7
      %s274 = smul.addr %s273, 8
      %s275 = scalar_lea.vmem %s6, %s274
      %s276 = smul.u32 4, %s17
      %v277 = vld [vmem:[%s263] sm:$0xff]
      %v278 = vld [vmem:[%s263 + $0x8] sm:$0xff]
      %v279 = vld [vmem:[%s263 + $0x10] sm:$0xff]
      %v280 = vld [vmem:[%s263 + $0x18] sm:$0xff]
      %v281 = vld [vmem:[%s269] sm:$0xff]
      %v282 = vld [vmem:[%s269 + $0x8] sm:$0xff]
      %v283 = vld [vmem:[%s269 + $0x10] sm:$0xff]
      %v284 = vld [vmem:[%s269 + $0x18] sm:$0xff]
      %v285 = vld [vmem:[%s2] sm:$0x1]
      %v287 = vlaneseq
      %v288 = vshrl.u32 %v287, 7
      %v289 = vsub.s32 0, %v288
      %v290 = vrot.slane %v285, %v289
      %v292 = vmul.f32 %v277, %v290
      %v293 = vmul.f32 %v278, %v290
      %v294 = vmul.f32 %v279, %v290
      %v295 = vmul.f32 %v280, %v290
      %v296 = vld [vmem:[%s3] sm:$0x1]
      %v298 = vlaneseq
      %v299 = vshrl.u32 %v298, 7
      %v300 = vsub.s32 0, %v299
      %v301 = vrot.slane %v296, %v300
      %v303 = vadd.f32 %v292, %v301
      %v304 = vadd.f32 %v293, %v301
      %v305 = vadd.f32 %v294, %v301
      %v306 = vadd.f32 %v295, %v301
      %v307 = vld [vmem:[%s4] sm:$0x1]
      %v309 = vlaneseq
      %v310 = vshrl.u32 %v309, 7
      %v311 = vsub.s32 0, %v310
      %v312 = vrot.slane %v307, %v311
      %v314 = vmul.f32 %v281, %v312
      %v315 = vmul.f32 %v282, %v312
      %v316 = vmul.f32 %v283, %v312
      %v317 = vmul.f32 %v284, %v312
      %v318 = vadd.f32 %v303, %v314
      %v319 = vadd.f32 %v304, %v315
      %v320 = vadd.f32 %v305, %v316
      %v321 = vadd.f32 %v306, %v317
      %v322 = vld [vmem:[%s5] sm:$0x1]
      %v324 = vlaneseq
      %v325 = vshrl.u32 %v324, 7
      %v326 = vsub.s32 0, %v325
      %v327 = vrot.slane %v322, %v326
      %v329 = vadd.f32 %v318, %v327
      %v330 = vadd.f32 %v319, %v327
      %v331 = vadd.f32 %v320, %v327
      %v332 = vadd.f32 %v321, %v327
      %v333 = vmax.f32 %v329, 0.0
      %v334 = vmax.f32 %v330, 0.0
      %v335 = vmax.f32 %v331, 0.0
      %v336 = vmax.f32 %v332, 0.0
      %337 = vst [vmem:[%s275] sm:$0xff] %v333
      %338 = vst [vmem:[%s275 + $0x8] sm:$0xff] %v334
      %339 = vst [vmem:[%s275 + $0x10] sm:$0xff] %v335
      %340 = vst [vmem:[%s275 + $0x18] sm:$0xff] %v336
      %s341 = smul.u32 4, %s17
      %p342 = scmp.lt.s32.totalorder %s341, 7
      %s343 = scalar_select %p342, %s341, 7
      %s344 = smul.addr %s343, 8
      %s345 = scalar_lea.vmem %s6, %s344
      // Predicated region
      $region45: #{residual_layer_forward.9} parent=43 // pred_check
        %p346 = pneg %p171
      $region46: #{residual_layer_forward.9} parent=43 // pred_check_branch
        %348 = sbr.rel (%p346) target = $region48
      $region47: #{residual_layer_forward.9} parent=43 // pred_region
        %s349 = smul.u32 4, %s17
      $region48: #{residual_layer_forward.9} parent=43 // pred_fallthru
        _
    $region44: #{residual_layer_forward.9} parent=5 // pred_fallthru
      _
    %p350 = scmp.le.s32.totalorder 2, %s12
    // Predicated region
    $region49: #{residual_layer_forward.9} parent=5 // pred_check
      %p351 = pneg %p350
    $region50: #{residual_layer_forward.9} parent=5 // pred_check_branch
      %353 = sbr.rel (%p351) target = $region52
    $region51: #{residual_layer_forward.9} parent=5 // pred_region
      %s354 = ssub.s32 %s12, 2
      // Predicated region
      $region53: #{residual_layer_forward.9} parent=51 // pred_check
        %p355 = pneg %p177
      $region54: #{residual_layer_forward.9} parent=51 // pred_check_branch
        %357 = sbr.rel (%p355) target = $region56
      $region55: #{residual_layer_forward.9} parent=51 // pred_region
        %s358 = smul.u32 4, %s18
        %p359 = scmp.lt.s32.totalorder %s358, 7
        %s360 = scalar_select %p359, %s358, 7
        %s361 = smul.addr %s360, 8
        %s362 = scalar_lea.vmem %s6, %s361
      $region56: #{residual_layer_forward.9} parent=51 // pred_fallthru
        _
    $region52: #{residual_layer_forward.9} parent=5 // pred_fallthru
      _
  $region6: #{residual_layer_forward.9} parent=0 // loop_footer
    %s16 = sadd.s32 1, %s12
  $region7: #{residual_layer_forward.9} parent=0 // loop_footer_branch
    %11 = sbr.rel target = $region3
  $region8: #{residual_layer_forward.9} parent=0 // loop_exit
    _

// kernel: residual_layer_forward.7
$region0: #{residual_layer_forward.7}
  #allocation0 [shape = 'u32[]', space=smem, size = 0x4, offset = 0x4, fixed_abs, tag = 'smem constant byte address 0x4 - core index']
  #allocation1 [shape = 'u32[144,128]{1,0:T(1,128)}', space=vmem, size = 0x12000, scoped, tag = 'internal scratch']
  %s0 = inlined_call_operand.vmem [shape: f32[512,8], index: 0, kind: input, shape index: {}]
  %s1 = inlined_call_operand.vmem [shape: f32[8,16], index: 1, kind: input, shape index: {}]
  %s2 = inlined_call_operand.vmem [shape: f32[1,8], index: 2, kind: input, shape index: {}]
  %s3 = inlined_call_operand.vmem [shape: f32[1,8], index: 3, kind: input, shape index: {}]
  %s4 = inlined_call_operand.vmem [shape: f32[512,16], index: 4, kind: output, shape index: {0}]
  %s5 = inlined_call_operand.vmem [shape: f32[2,2,16], index: 5, kind: output, shape index: {1}]
  %6 = xla_tuple %s4, %s5
  %s7 = sld [smem:[#allocation0]]
  $region57: #{residual_layer_forward.7} parent=0
    _
  %s9 = ssub.s32 1, %s7
  %s10 = scalar_select 0, %s9, %s7
  loop: start=0, step=1, limit=4
  $region2: #{residual_layer_forward.7} parent=0 // loop_pre_header
    _
  $region3: #{residual_layer_forward.7} parent=0 // loop_header
    %s12 = sphi 0, %s16
    %p13 = scmp.ge.s32.totalorder %s12, 4
    %s22 = sphi 0, %s24
    %s25 = sphi 0, %s22
    %s26 = sphi 0, %s25
    %s42 = sphi 0, %s26
    %s46 = sphi 0, %s46
    %s48 = sphi 0, %s46
    %s49 = sphi 0, %s48
    %s63 = sphi 0, %s49
    %s67 = sphi 0, %s67
    %s69 = sphi 0, %s67
    %s70 = sphi 0, %s69
    %s84 = sphi 0, %s70
    %s88 = sphi 0, %s88
    %s90 = sphi 0, %s88
    %s91 = sphi 0, %s90
    %s105 = sphi 0, %s91
    %s111 = sphi 0, %s113
    %s114 = sphi 0, %s111
    %s115 = sphi 0, %s114
    %s131 = sphi 0, %s115
    %s137 = sphi 0, %s139
    %s140 = sphi 0, %s137
    %s141 = sphi 0, %s140
    %s157 = sphi 0, %s141
  $region4: #{residual_layer_forward.7} parent=0 // loop_header_branch
    %15 = sbr.rel (%p13) target = $region8
  $region5: #{residual_layer_forward.7} parent=0 // loop_body
    %s17 = ssub.s32 %s12, 1
    %s18 = ssub.s32 %s12, 2
    %s19 = sadd.s32 %s12, 1
    %s20 = ssub.s32 %s12, %s19
    %p21 = scmp.eq.s32.totalorder %s20, 0
    %s23 = sadd.s32 %s22, 1
    %s24 = scalar_select %p21, %s22, %s23
    %p27 = pneg %p21
    %p28 = scmp.eq.s32.totalorder %s12, 1
    %p29 = por %p27, %p28
    %p30 = scmp.ne.s32.totalorder %s22, %s25
    %p31 = scmp.eq.s32.totalorder %s12, 0
    %p32 = por %p30, %p31
    %p33 = scmp.ne.s32.totalorder %s22, %s25
    %p34 = scmp.eq.s32.totalorder %s17, 1
    %p35 = por %p33, %p34
    %p36 = scmp.ne.s32.totalorder %s25, %s26
    %p37 = scmp.eq.s32.totalorder %s17, 0
    %p38 = por %p36, %p37
    %p39 = scmp.ne.s32.totalorder %s25, %s26
    %p40 = scmp.eq.s32.totalorder %s18, 1
    %p41 = por %p39, %p40
    %p43 = scmp.ne.s32.totalorder %s26, %s42
    %p44 = scmp.eq.s32.totalorder %s18, 0
    %p45 = por %p43, %p44
    %s47 = sadd.s32 %s46, 1
    %p50 = scmp.eq.s32.totalorder %s12, 1
    %p51 = scmp.ne.s32.totalorder %s46, %s48
    %p52 = scmp.eq.s32.totalorder %s12, 0
    %p53 = por %p51, %p52
    %p54 = scmp.ne.s32.totalorder %s46, %s48
    %p55 = scmp.eq.s32.totalorder %s17, 1
    %p56 = por %p54, %p55
    %p57 = scmp.ne.s32.totalorder %s48, %s49
    %p58 = scmp.eq.s32.totalorder %s17, 0
    %p59 = por %p57, %p58
    %p60 = scmp.ne.s32.totalorder %s48, %s49
    %p61 = scmp.eq.s32.totalorder %s18, 1
    %p62 = por %p60, %p61
    %p64 = scmp.ne.s32.totalorder %s49, %s63
    %p65 = scmp.eq.s32.totalorder %s18, 0
    %p66 = por %p64, %p65
    %s68 = sadd.s32 %s67, 1
    %p71 = scmp.eq.s32.totalorder %s12, 1
    %p72 = scmp.ne.s32.totalorder %s67, %s69
    %p73 = scmp.eq.s32.totalorder %s12, 0
    %p74 = por %p72, %p73
    %p75 = scmp.ne.s32.totalorder %s67, %s69
    %p76 = scmp.eq.s32.totalorder %s17, 1
    %p77 = por %p75, %p76
    %p78 = scmp.ne.s32.totalorder %s69, %s70
    %p79 = scmp.eq.s32.totalorder %s17, 0
    %p80 = por %p78, %p79
    %p81 = scmp.ne.s32.totalorder %s69, %s70
    %p82 = scmp.eq.s32.totalorder %s18, 1
    %p83 = por %p81, %p82
    %p85 = scmp.ne.s32.totalorder %s70, %s84
    %p86 = scmp.eq.s32.totalorder %s18, 0
    %p87 = por %p85, %p86
    %s89 = sadd.s32 %s88, 1
    %p92 = scmp.eq.s32.totalorder %s12, 1
    %p93 = scmp.ne.s32.totalorder %s88, %s90
    %p94 = scmp.eq.s32.totalorder %s12, 0
    %p95 = por %p93, %p94
    %p96 = scmp.ne.s32.totalorder %s88, %s90
    %p97 = scmp.eq.s32.totalorder %s17, 1
    %p98 = por %p96, %p97
    %p99 = scmp.ne.s32.totalorder %s90, %s91
    %p100 = scmp.eq.s32.totalorder %s17, 0
    %p101 = por %p99, %p100
    %p102 = scmp.ne.s32.totalorder %s90, %s91
    %p103 = scmp.eq.s32.totalorder %s18, 1
    %p104 = por %p102, %p103
    %p106 = scmp.ne.s32.totalorder %s91, %s105
    %p107 = scmp.eq.s32.totalorder %s18, 0
    %p108 = por %p106, %p107
    %s109 = ssub.s32 %s12, %s19
    %p110 = scmp.eq.s32.totalorder %s109, 0
    %s112 = sadd.s32 %s111, 1
    %s113 = scalar_select %p110, %s111, %s112
    %p116 = pneg %p110
    %p117 = scmp.eq.s32.totalorder %s12, 1
    %p118 = por %p116, %p117
    %p119 = scmp.ne.s32.totalorder %s111, %s114
    %p120 = scmp.eq.s32.totalorder %s12, 0
    %p121 = por %p119, %p120
    %p122 = scmp.ne.s32.totalorder %s111, %s114
    %p123 = scmp.eq.s32.totalorder %s17, 1
    %p124 = por %p122, %p123
    %p125 = scmp.ne.s32.totalorder %s114, %s115
    %p126 = scmp.eq.s32.totalorder %s17, 0
    %p127 = por %p125, %p126
    %p128 = scmp.ne.s32.totalorder %s114, %s115
    %p129 = scmp.eq.s32.totalorder %s18, 1
    %p130 = por %p128, %p129
    %p132 = scmp.ne.s32.totalorder %s115, %s131
    %p133 = scmp.eq.s32.totalorder %s18, 0
    %p134 = por %p132, %p133
    %s135 = ssub.s32 %s12, %s19
    %p136 = scmp.eq.s32.totalorder %s135, 0
    %s138 = sadd.s32 %s137, 1
    %s139 = scalar_select %p136, %s137, %s138
    %p142 = pneg %p136
    %p143 = scmp.eq.s32.totalorder %s12, 1
    %p144 = por %p142, %p143
    %p145 = scmp.ne.s32.totalorder %s137, %s140
    %p146 = scmp.eq.s32.totalorder %s12, 0
    %p147 = por %p145, %p146
    %p148 = scmp.ne.s32.totalorder %s137, %s140
    %p149 = scmp.eq.s32.totalorder %s17, 1
    %p150 = por %p148, %p149
    %p151 = scmp.ne.s32.totalorder %s140, %s141
    %p152 = scmp.eq.s32.totalorder %s17, 0
    %p153 = por %p151, %p152
    %p154 = scmp.ne.s32.totalorder %s140, %s141
    %p155 = scmp.eq.s32.totalorder %s18, 1
    %p156 = por %p154, %p155
    %p158 = scmp.ne.s32.totalorder %s141, %s157
    %p159 = scmp.eq.s32.totalorder %s18, 0
    %p160 = por %p158, %p159
    %p161 = scmp.le.s32.totalorder 1, %s12
    %p162 = scmp.lt.s32.totalorder %s12, 3
    %p163 = pnand %p161, %p162
    %p164 = pneg %p163
    // Predicated region
    $region9: #{residual_layer_forward.7} parent=5 // pred_check
      _
    $region10: #{residual_layer_forward.7} parent=5 // pred_check_branch
      %166 = sbr.rel (%p163) target = $region12
    $region11: #{residual_layer_forward.7} parent=5 // pred_region
      %s167 = ssub.s32 %s12, 1
      // Predicated region
      $region13: #{residual_layer_forward.7} parent=11 // pred_check
        %p168 = pneg %p59
      $region14: #{residual_layer_forward.7} parent=11 // pred_check_branch
        %170 = sbr.rel (%p168) target = $region16
      $region15: #{residual_layer_forward.7} parent=11 // pred_region
        _
      $region16: #{residual_layer_forward.7} parent=11 // pred_fallthru
        _
      // Predicated region
      $region17: #{residual_layer_forward.7} parent=11 // pred_check
        %p171 = pneg %p80
      $region18: #{residual_layer_forward.7} parent=11 // pred_check_branch
        %173 = sbr.rel (%p171) target = $region20
      $region19: #{residual_layer_forward.7} parent=11 // pred_region
        _
      $region20: #{residual_layer_forward.7} parent=11 // pred_fallthru
        _
      // Predicated region
      $region21: #{residual_layer_forward.7} parent=11 // pred_check
        %p174 = pneg %p101
      $region22: #{residual_layer_forward.7} parent=11 // pred_check_branch
        %176 = sbr.rel (%p174) target = $region24
      $region23: #{residual_layer_forward.7} parent=11 // pred_region
        _
      $region24: #{residual_layer_forward.7} parent=11 // pred_fallthru
        _
    $region12: #{residual_layer_forward.7} parent=5 // pred_fallthru
      _
    %p177 = scmp.lt.s32.totalorder %s12, 2
    // Predicated region
    $region25: #{residual_layer_forward.7} parent=5 // pred_check
      %p178 = pneg %p177
    $region26: #{residual_layer_forward.7} parent=5 // pred_check_branch
      %180 = sbr.rel (%p178) target = $region28
    $region27: #{residual_layer_forward.7} parent=5 // pred_region
      // Predicated region
      $region29: #{residual_layer_forward.7} parent=27 // pred_check
        %p181 = pneg %p32
      $region30: #{residual_layer_forward.7} parent=27 // pred_check_branch
        %183 = sbr.rel (%p181) target = $region32
      $region31: #{residual_layer_forward.7} parent=27 // pred_region
        %s184 = smul.u32 32, %s12
        %p185 = scmp.lt.s32.totalorder %s184, 63
        %s186 = scalar_select %p185, %s184, 63
        %s187 = smul.addr %s186, 8
        %s188 = scalar_lea.vmem %s0, %s187
        %s189 = smul.u32 32, %s12
      $region32: #{residual_layer_forward.7} parent=27 // pred_fallthru
        _
    $region28: #{residual_layer_forward.7} parent=5 // pred_fallthru
      _
    %p190 = scmp.le.s32.totalorder 1, %s12
    %p191 = scmp.lt.s32.totalorder %s12, 3
    %p192 = pnand %p190, %p191
    %p193 = pneg %p192
    // Predicated region
    $region33: #{residual_layer_forward.7} parent=5 // pred_check
      _
    $region34: #{residual_layer_forward.7} parent=5 // pred_check_branch
      %195 = sbr.rel (%p192) target = $region36
    $region35: #{residual_layer_forward.7} parent=5 // pred_region
      %s196 = ssub.s32 %s12, 1
      %s197 = smul.u32 32, %s17
      %p198 = scmp.lt.s32.totalorder %s197, 63
      %s199 = scalar_select %p198, %s197, 63
      %s200 = smul.addr %s199, 8
      %s201 = scalar_lea.vmem %s0, %s200
      %p202 = pneg %p38
      %p203 = pneg %p35
      %p204 = pneg %p59
      %p205 = pneg %p56
      %p206 = pneg %p80
      %p207 = pneg %p77
      %p208 = pneg %p101
      %p209 = pneg %p98
      %p210 = pneg %p127
      %p211 = pneg %p124
      %s212 = smul.u32 32, %s17
      %p213 = scmp.lt.s32.totalorder %s212, 63
      %s214 = scalar_select %p213, %s212, 63
      %s215 = smul.addr %s214, 8
      %s216 = scalar_lea.vmem %s4, %s215
      %p217 = pneg %p153
      %p218 = pneg %p150
      %p219 = scmp.lt.s32.totalorder %s17, 1
      %s220 = scalar_select %p219, %s17, 1
      %s221 = smul.addr %s220, 2
      %s222 = scalar_lea.vmem %s5, %s221
      %s223 = smul.u32 32, %s17
      %p224 = scmp.lt.s32.totalorder %s223, 63
      %s225 = scalar_select %p224, %s223, 63
      %s226 = smul.addr %s225, 8
      %s227 = scalar_lea.vmem %s0, %s226
      %s228 = smul.u32 32, %s17
      %s229 = smul.u32 32, %s17
      %p230 = scmp.lt.s32.totalorder %s229, 63
      %s231 = scalar_select %p230, %s229, 63
      %s232 = smul.addr %s231, 8
      %s233 = scalar_lea.vmem %s4, %s232
      %s234 = smul.u32 32, %s17
      %p235 = scmp.lt.s32.totalorder %s17, 1
      %s236 = scalar_select %p235, %s17, 1
      %s237 = smul.addr %s236, 2
      %s238 = scalar_lea.vmem %s5, %s237
      %v239 = vld [vmem:[%s227] sm:$0xff]
      %v240 = vld [vmem:[%s227 + $0x8] sm:$0xff]
      %v241 = vld [vmem:[%s227 + $0x10] sm:$0xff]
      %v242 = vld [vmem:[%s227 + $0x18] sm:$0xff]
      %v243 = vld [vmem:[%s227 + $0x20] sm:$0xff]
      %v244 = vld [vmem:[%s227 + $0x28] sm:$0xff]
      %v245 = vld [vmem:[%s227 + $0x30] sm:$0xff]
      %v246 = vld [vmem:[%s227 + $0x38] sm:$0xff]
      %v247 = vld [vmem:[%s227 + $0x40] sm:$0xff]
      %v248 = vld [vmem:[%s227 + $0x48] sm:$0xff]
      %v249 = vld [vmem:[%s227 + $0x50] sm:$0xff]
      %v250 = vld [vmem:[%s227 + $0x58] sm:$0xff]
      %v251 = vld [vmem:[%s227 + $0x60] sm:$0xff]
      %v252 = vld [vmem:[%s227 + $0x68] sm:$0xff]
      %v253 = vld [vmem:[%s227 + $0x70] sm:$0xff]
      %v254 = vld [vmem:[%s227 + $0x78] sm:$0xff]
      %v255 = vld [vmem:[%s227 + $0x80] sm:$0xff]
      %v256 = vld [vmem:[%s227 + $0x88] sm:$0xff]
      %v257 = vld [vmem:[%s227 + $0x90] sm:$0xff]
      %v258 = vld [vmem:[%s227 + $0x98] sm:$0xff]
      %v259 = vld [vmem:[%s227 + $0xa0] sm:$0xff]
      %v260 = vld [vmem:[%s227 + $0xa8] sm:$0xff]
      %v261 = vld [vmem:[%s227 + $0xb0] sm:$0xff]
      %v262 = vld [vmem:[%s227 + $0xb8] sm:$0xff]
      %v263 = vld [vmem:[%s227 + $0xc0] sm:$0xff]
      %v264 = vld [vmem:[%s227 + $0xc8] sm:$0xff]
      %v265 = vld [vmem:[%s227 + $0xd0] sm:$0xff]
      %v266 = vld [vmem:[%s227 + $0xd8] sm:$0xff]
      %v267 = vld [vmem:[%s227 + $0xe0] sm:$0xff]
      %v268 = vld [vmem:[%s227 + $0xe8] sm:$0xff]
      %v269 = vld [vmem:[%s227 + $0xf0] sm:$0xff]
      %v270 = vld [vmem:[%s227 + $0xf8] sm:$0xff]
      %v271 = vld [vmem:[%s2] sm:$0x1]
      %v273 = vlaneseq
      %v274 = vshrl.u32 %v273, 7
      %v275 = vsub.s32 0, %v274
      %v276 = vrot.slane %v271, %v275
      %v278 = vmul.f32 %v239, %v276
      %v279 = vmul.f32 %v240, %v276
      %v280 = vmul.f32 %v241, %v276
      %v281 = vmul.f32 %v242, %v276
      %v282 = vmul.f32 %v243, %v276
      %v283 = vmul.f32 %v244, %v276
      %v284 = vmul.f32 %v245, %v276
      %v285 = vmul.f32 %v246, %v276
      %v286 = vmul.f32 %v247, %v276
      %v287 = vmul.f32 %v248, %v276
      %v288 = vmul.f32 %v249, %v276
      %v289 = vmul.f32 %v250, %v276
      %v290 = vmul.f32 %v251, %v276
      %v291 = vmul.f32 %v252, %v276
      %v292 = vmul.f32 %v253, %v276
      %v293 = vmul.f32 %v254, %v276
      %v294 = vmul.f32 %v255, %v276
      %v295 = vmul.f32 %v256, %v276
      %v296 = vmul.f32 %v257, %v276
      %v297 = vmul.f32 %v258, %v276
      %v298 = vmul.f32 %v259, %v276
      %v299 = vmul.f32 %v260, %v276
      %v300 = vmul.f32 %v261, %v276
      %v301 = vmul.f32 %v262, %v276
      %v302 = vmul.f32 %v263, %v276
      %v303 = vmul.f32 %v264, %v276
      %v304 = vmul.f32 %v265, %v276
      %v305 = vmul.f32 %v266, %v276
      %v306 = vmul.f32 %v267, %v276
      %v307 = vmul.f32 %v268, %v276
      %v308 = vmul.f32 %v269, %v276
      %v309 = vmul.f32 %v270, %v276
      %v310 = vld [vmem:[%s3] sm:$0x1]
      %v312 = vlaneseq
      %v313 = vshrl.u32 %v312, 7
      %v314 = vsub.s32 0, %v313
      %v315 = vrot.slane %v310, %v314
      %v317 = vadd.f32 %v278, %v315
      %v318 = vadd.f32 %v279, %v315
      %v319 = vadd.f32 %v280, %v315
      %v320 = vadd.f32 %v281, %v315
      %v321 = vadd.f32 %v282, %v315
      %v322 = vadd.f32 %v283, %v315
      %v323 = vadd.f32 %v284, %v315
      %v324 = vadd.f32 %v285, %v315
      %v325 = vadd.f32 %v286, %v315
      %v326 = vadd.f32 %v287, %v315
      %v327 = vadd.f32 %v288, %v315
      %v328 = vadd.f32 %v289, %v315
      %v329 = vadd.f32 %v290, %v315
      %v330 = vadd.f32 %v291, %v315
      %v331 = vadd.f32 %v292, %v315
      %v332 = vadd.f32 %v293, %v315
      %v333 = vadd.f32 %v294, %v315
      %v334 = vadd.f32 %v295, %v315
      %v335 = vadd.f32 %v296, %v315
      %v336 = vadd.f32 %v297, %v315
      %v337 = vadd.f32 %v298, %v315
      %v338 = vadd.f32 %v299, %v315
      %v339 = vadd.f32 %v300, %v315
      %v340 = vadd.f32 %v301, %v315
      %v341 = vadd.f32 %v302, %v315
      %v342 = vadd.f32 %v303, %v315
      %v343 = vadd.f32 %v304, %v315
      %v344 = vadd.f32 %v305, %v315
      %v345 = vadd.f32 %v306, %v315
      %v346 = vadd.f32 %v307, %v315
      %v347 = vadd.f32 %v308, %v315
      %v348 = vadd.f32 %v309, %v315
      %v349 = vmax.f32 %v317, 0.0
      %v350 = vmax.f32 %v318, 0.0
      %v351 = vmax.f32 %v319, 0.0
      %v352 = vmax.f32 %v320, 0.0
      %v353 = vmax.f32 %v321, 0.0
      %v354 = vmax.f32 %v322, 0.0
      %v355 = vmax.f32 %v323, 0.0
      %v356 = vmax.f32 %v324, 0.0
      %v357 = vmax.f32 %v325, 0.0
      %v358 = vmax.f32 %v326, 0.0
      %v359 = vmax.f32 %v327, 0.0
      %v360 = vmax.f32 %v328, 0.0
      %v361 = vmax.f32 %v329, 0.0
      %v362 = vmax.f32 %v330, 0.0
      %v363 = vmax.f32 %v331, 0.0
      %v364 = vmax.f32 %v332, 0.0
      %v365 = vmax.f32 %v333, 0.0
      %v366 = vmax.f32 %v334, 0.0
      %v367 = vmax.f32 %v335, 0.0
      %v368 = vmax.f32 %v336, 0.0
      %v369 = vmax.f32 %v337, 0.0
      %v370 = vmax.f32 %v338, 0.0
      %v371 = vmax.f32 %v339, 0.0
      %v372 = vmax.f32 %v340, 0.0
      %v373 = vmax.f32 %v341, 0.0
      %v374 = vmax.f32 %v342, 0.0
      %v375 = vmax.f32 %v343, 0.0
      %v376 = vmax.f32 %v344, 0.0
      %v377 = vmax.f32 %v345, 0.0
      %v378 = vmax.f32 %v346, 0.0
      %v379 = vmax.f32 %v347, 0.0
      %v380 = vmax.f32 %v348, 0.0
      %v381 = vld [vmem:[%s1] sm:$0xff]
      %vm382 = vcmask 64512
      %v384 = vsel %vm382, %v349, 0
      %v387 = vsel %vm382, %v350, 0
      %v390 = vsel %vm382, %v351, 0
      %v393 = vsel %vm382, %v352, 0
      %v396 = vsel %vm382, %v353, 0
      %v399 = vsel %vm382, %v354, 0
      %v402 = vsel %vm382, %v355, 0
      %v405 = vsel %vm382, %v356, 0
      %v408 = vsel %vm382, %v357, 0
      %v411 = vsel %vm382, %v358, 0
      %v414 = vsel %vm382, %v359, 0
      %v417 = vsel %vm382, %v360, 0
      %v420 = vsel %vm382, %v361, 0
      %v423 = vsel %vm382, %v362, 0
      %v426 = vsel %vm382, %v363, 0
      %v429 = vsel %vm382, %v364, 0
      %v432 = vsel %vm382, %v365, 0
      %v435 = vsel %vm382, %v366, 0
      %v438 = vsel %vm382, %v367, 0
      %v441 = vsel %vm382, %v368, 0
      %v444 = vsel %vm382, %v369, 0
      %v447 = vsel %vm382, %v370, 0
      %v450 = vsel %vm382, %v371, 0
      %v453 = vsel %vm382, %v372, 0
      %v456 = vsel %vm382, %v373, 0
      %v459 = vsel %vm382, %v374, 0
      %v462 = vsel %vm382, %v375, 0
      %v465 = vsel %vm382, %v376, 0
      %v468 = vsel %vm382, %v377, 0
      %v471 = vsel %vm382, %v378, 0
      %v474 = vsel %vm382, %v379, 0
      %v477 = vsel %vm382, %v380, 0
      %479 = vmatprep.subr.mxu0 0.0
      %480 = vmatpush1.msra.mxu0 0.0
      %481 = vmatprep.subr.mxu0 0.0
      %482 = vmatpush1.msra.mxu0 0.0
      %483 = vmatprep.subr.mxu0 0.0
      %484 = vmatpush1.msra.mxu0 0.0
      %485 = vmatprep.subr.mxu0 0.0
      %486 = vmatpush1.msra.mxu0 0.0
      %487 = vmatprep.subr.mxu0 0.0
      %488 = vmatpush1.msra.mxu0 0.0
      %489 = vmatprep.subr.mxu0 0.0
      %490 = vmatpush1.msra.mxu0 0.0
      %491 = vmatprep.subr.mxu0 0.0
      %492 = vmatpush1.msra.mxu0 0.0
      %493 = vmatprep.subr.mxu0 0.0
      %494 = vmatpush1.msra.mxu0 0.0
      %495 = vmatprep.subr.mxu0 0.0
      %496 = vmatpush1.msra.mxu0 0.0
      %497 = vmatprep.subr.mxu0 0.0
      %498 = vmatpush1.msra.mxu0 0.0
      %499 = vmatprep.subr.mxu0 0.0
      %500 = vmatpush1.msra.mxu0 0.0
      %501 = vmatprep.subr.mxu0 0.0
      %502 = vmatpush1.msra.mxu0 0.0
      %503 = vmatprep.subr.mxu0 0.0
      %504 = vmatpush1.msra.mxu0 0.0
      %505 = vmatprep.subr.mxu0 0.0
      %506 = vmatpush1.msra.mxu0 0.0
      %507 = vmatprep.subr.mxu0 0.0
      %508 = vmatpush1.msra.mxu0 0.0
      %509 = vmatprep.subr.mxu0 0.0
      %510 = vmatpush1.msra.mxu0 %v381
      %511 = vmatprep.subr.mxu0 0.0
      %512 = vmatpush2.msra.mxu0 0.0
      %513 = vmatprep.subr.mxu0 0.0
      %514 = vmatpush2.msra.mxu0 0.0
      %515 = vmatprep.subr.mxu0 0.0
      %516 = vmatpush2.msra.mxu0 0.0
      %517 = vmatprep.subr.mxu0 0.0
      %518 = vmatpush2.msra.mxu0 0.0
      %519 = vmatprep.subr.mxu0 0.0
      %520 = vmatpush2.msra.mxu0 0.0
      %521 = vmatprep.subr.mxu0 0.0
      %522 = vmatpush2.msra.mxu0 0.0
      %523 = vmatprep.subr.mxu0 0.0
      %524 = vmatpush2.msra.mxu0 0.0
      %525 = vmatprep.subr.mxu0 0.0
      %526 = vmatpush2.msra.mxu0 0.0
      %527 = vmatprep.subr.mxu0 0.0
      %528 = vmatpush2.msra.mxu0 0.0
      %529 = vmatprep.subr.mxu0 0.0
      %530 = vmatpush2.msra.mxu0 0.0
      %531 = vmatprep.subr.mxu0 0.0
      %532 = vmatpush2.msra.mxu0 0.0
      %533 = vmatprep.subr.mxu0 0.0
      %534 = vmatpush2.msra.mxu0 0.0
      %535 = vmatprep.subr.mxu0 0.0
      %536 = vmatpush2.msra.mxu0 0.0
      %537 = vmatprep.subr.mxu0 0.0
      %538 = vmatpush2.msra.mxu0 0.0
      %539 = vmatprep.subr.mxu0 0.0
      %540 = vmatpush2.msra.mxu0 0.0
      %541 = vmatprep.subr.mxu0 0.0
      %542 = vmatpush2.msra.mxu0 0.0
      %543 = vmatprep.mubr.f32.mxu0 0.0
      %544 = vmatmul.mubr.f32.gmra.mxu0 %v384
      %v545 = vpop.f32.mrf.mxu0
      %v546 = vadd.f32 0.0, %v545
      %v547 = vpop.f32.mrf.mxu0
      %548 = vmatprep.mubr.f32.mxu0 0.0
      %549 = vmatmul.mubr.f32.gmra.mxu0 %v387
      %v550 = vpop.f32.mrf.mxu0
      %v551 = vadd.f32 0.0, %v550
      %v552 = vpop.f32.mrf.mxu0
      %553 = vmatprep.mubr.f32.mxu0 0.0
      %554 = vmatmul.mubr.f32.gmra.mxu0 %v390
      %v555 = vpop.f32.mrf.mxu0
      %v556 = vadd.f32 0.0, %v555
      %v557 = vpop.f32.mrf.mxu0
      %558 = vmatprep.mubr.f32.mxu0 0.0
      %559 = vmatmul.mubr.f32.gmra.mxu0 %v393
      %v560 = vpop.f32.mrf.mxu0
      %v561 = vadd.f32 0.0, %v560
      %v562 = vpop.f32.mrf.mxu0
      %563 = vmatprep.mubr.f32.mxu0 0.0
      %564 = vmatmul.mubr.f32.gmra.mxu0 %v396
      %v565 = vpop.f32.mrf.mxu0
      %v566 = vadd.f32 0.0, %v565
      %v567 = vpop.f32.mrf.mxu0
      %568 = vmatprep.mubr.f32.mxu0 0.0
      %569 = vmatmul.mubr.f32.gmra.mxu0 %v399
      %v570 = vpop.f32.mrf.mxu0
      %v571 = vadd.f32 0.0, %v570
      %v572 = vpop.f32.mrf.mxu0
      %573 = vmatprep.mubr.f32.mxu0 0.0
      %574 = vmatmul.mubr.f32.gmra.mxu0 %v402
      %v575 = vpop.f32.mrf.mxu0
      %v576 = vadd.f32 0.0, %v575
      %v577 = vpop.f32.mrf.mxu0
      %578 = vmatprep.mubr.f32.mxu0 0.0
      %579 = vmatmul.mubr.f32.gmra.mxu0 %v405
      %v580 = vpop.f32.mrf.mxu0
      %v581 = vadd.f32 0.0, %v580
      %v582 = vpop.f32.mrf.mxu0
      %583 = vmatprep.mubr.f32.mxu0 0.0
      %584 = vmatmul.mubr.f32.gmra.mxu0 %v408
      %v585 = vpop.f32.mrf.mxu0
      %v586 = vadd.f32 0.0, %v585
      %v587 = vpop.f32.mrf.mxu0
      %588 = vmatprep.mubr.f32.mxu0 0.0
      %589 = vmatmul.mubr.f32.gmra.mxu0 %v411
      %v590 = vpop.f32.mrf.mxu0
      %v591 = vadd.f32 0.0, %v590
      %v592 = vpop.f32.mrf.mxu0
      %593 = vmatprep.mubr.f32.mxu0 0.0
      %594 = vmatmul.mubr.f32.gmra.mxu0 %v414
      %v595 = vpop.f32.mrf.mxu0
      %v596 = vadd.f32 0.0, %v595
      %v597 = vpop.f32.mrf.mxu0
      %598 = vmatprep.mubr.f32.mxu0 0.0
      %599 = vmatmul.mubr.f32.gmra.mxu0 %v417
      %v600 = vpop.f32.mrf.mxu0
      %v601 = vadd.f32 0.0, %v600
      %v602 = vpop.f32.mrf.mxu0
      %603 = vmatprep.mubr.f32.mxu0 0.0
      %604 = vmatmul.mubr.f32.gmra.mxu0 %v420
      %v605 = vpop.f32.mrf.mxu0
      %v606 = vadd.f32 0.0, %v605
      %v607 = vpop.f32.mrf.mxu0
      %608 = vmatprep.mubr.f32.mxu0 0.0
      %609 = vmatmul.mubr.f32.gmra.mxu0 %v423
      %v610 = vpop.f32.mrf.mxu0
      %v611 = vadd.f32 0.0, %v610
      %v612 = vpop.f32.mrf.mxu0
      %613 = vmatprep.mubr.f32.mxu0 0.0
      %614 = vmatmul.mubr.f32.gmra.mxu0 %v426
      %v615 = vpop.f32.mrf.mxu0
      %v616 = vadd.f32 0.0, %v615
      %v617 = vpop.f32.mrf.mxu0
      %618 = vmatprep.mubr.f32.mxu0 0.0
      %619 = vmatmul.mubr.f32.gmra.mxu0 %v429
      %v620 = vpop.f32.mrf.mxu0
      %v621 = vadd.f32 0.0, %v620
      %v622 = vpop.f32.mrf.mxu0
      %623 = vmatprep.mubr.f32.mxu0 0.0
      %624 = vmatmul.mubr.f32.gmra.mxu0 %v432
      %v625 = vpop.f32.mrf.mxu0
      %v626 = vadd.f32 0.0, %v625
      %v627 = vpop.f32.mrf.mxu0
      %628 = vmatprep.mubr.f32.mxu0 0.0
      %629 = vmatmul.mubr.f32.gmra.mxu0 %v435
      %v630 = vpop.f32.mrf.mxu0
      %v631 = vadd.f32 0.0, %v630
      %v632 = vpop.f32.mrf.mxu0
      %633 = vmatprep.mubr.f32.mxu0 0.0
      %634 = vmatmul.mubr.f32.gmra.mxu0 %v438
      %v635 = vpop.f32.mrf.mxu0
      %v636 = vadd.f32 0.0, %v635
      %v637 = vpop.f32.mrf.mxu0
      %638 = vmatprep.mubr.f32.mxu0 0.0
      %639 = vmatmul.mubr.f32.gmra.mxu0 %v441
      %v640 = vpop.f32.mrf.mxu0
      %v641 = vadd.f32 0.0, %v640
      %v642 = vpop.f32.mrf.mxu0
      %643 = vmatprep.mubr.f32.mxu0 0.0
      %644 = vmatmul.mubr.f32.gmra.mxu0 %v444
      %v645 = vpop.f32.mrf.mxu0
      %v646 = vadd.f32 0.0, %v645
      %v647 = vpop.f32.mrf.mxu0
      %648 = vmatprep.mubr.f32.mxu0 0.0
      %649 = vmatmul.mubr.f32.gmra.mxu0 %v447
      %v650 = vpop.f32.mrf.mxu0
      %v651 = vadd.f32 0.0, %v650
      %v652 = vpop.f32.mrf.mxu0
      %653 = vmatprep.mubr.f32.mxu0 0.0
      %654 = vmatmul.mubr.f32.gmra.mxu0 %v450
      %v655 = vpop.f32.mrf.mxu0
      %v656 = vadd.f32 0.0, %v655
      %v657 = vpop.f32.mrf.mxu0
      %658 = vmatprep.mubr.f32.mxu0 0.0
      %659 = vmatmul.mubr.f32.gmra.mxu0 %v453
      %v660 = vpop.f32.mrf.mxu0
      %v661 = vadd.f32 0.0, %v660
      %v662 = vpop.f32.mrf.mxu0
      %663 = vmatprep.mubr.f32.mxu0 0.0
      %664 = vmatmul.mubr.f32.gmra.mxu0 %v456
      %v665 = vpop.f32.mrf.mxu0
      %v666 = vadd.f32 0.0, %v665
      %v667 = vpop.f32.mrf.mxu0
      %668 = vmatprep.mubr.f32.mxu0 0.0
      %669 = vmatmul.mubr.f32.gmra.mxu0 %v459
      %v670 = vpop.f32.mrf.mxu0
      %v671 = vadd.f32 0.0, %v670
      %v672 = vpop.f32.mrf.mxu0
      %673 = vmatprep.mubr.f32.mxu0 0.0
      %674 = vmatmul.mubr.f32.gmra.mxu0 %v462
      %v675 = vpop.f32.mrf.mxu0
      %v676 = vadd.f32 0.0, %v675
      %v677 = vpop.f32.mrf.mxu0
      %678 = vmatprep.mubr.f32.mxu0 0.0
      %679 = vmatmul.mubr.f32.gmra.mxu0 %v465
      %v680 = vpop.f32.mrf.mxu0
      %v681 = vadd.f32 0.0, %v680
      %v682 = vpop.f32.mrf.mxu0
      %683 = vmatprep.mubr.f32.mxu0 0.0
      %684 = vmatmul.mubr.f32.gmra.mxu0 %v468
      %v685 = vpop.f32.mrf.mxu0
      %v686 = vadd.f32 0.0, %v685
      %v687 = vpop.f32.mrf.mxu0
      %688 = vmatprep.mubr.f32.mxu0 0.0
      %689 = vmatmul.mubr.f32.gmra.mxu0 %v471
      %v690 = vpop.f32.mrf.mxu0
      %v691 = vadd.f32 0.0, %v690
      %v692 = vpop.f32.mrf.mxu0
      %693 = vmatprep.mubr.f32.mxu0 0.0
      %694 = vmatmul.mubr.f32.gmra.mxu0 %v474
      %v695 = vpop.f32.mrf.mxu0
      %v696 = vadd.f32 0.0, %v695
      %v697 = vpop.f32.mrf.mxu0
      %698 = vmatprep.mubr.f32.mxu0 0.0
      %699 = vmatmul.mubr.f32.gmra.mxu0 %v477
      %v700 = vpop.f32.mrf.mxu0
      %v701 = vadd.f32 0.0, %v700
      %v702 = vpop.f32.mrf.mxu0
      %703 = vdwg.mxu0
      %vm704 = vcmask 130048
      %705 = vst.msk [vmem:[%s233] sm:$0xff] %vm704, %v546
      %706 = vst.msk [vmem:[%s233 + $0x8] sm:$0xff] %vm704, %v551
      %707 = vst.msk [vmem:[%s233 + $0x10] sm:$0xff] %vm704, %v556
      %708 = vst.msk [vmem:[%s233 + $0x18] sm:$0xff] %vm704, %v561
      %709 = vst.msk [vmem:[%s233 + $0x20] sm:$0xff] %vm704, %v566
      %710 = vst.msk [vmem:[%s233 + $0x28] sm:$0xff] %vm704, %v571
      %711 = vst.msk [vmem:[%s233 + $0x30] sm:$0xff] %vm704, %v576
      %712 = vst.msk [vmem:[%s233 + $0x38] sm:$0xff] %vm704, %v581
      %713 = vst.msk [vmem:[%s233 + $0x40] sm:$0xff] %vm704, %v586
      %714 = vst.msk [vmem:[%s233 + $0x48] sm:$0xff] %vm704, %v591
      %715 = vst.msk [vmem:[%s233 + $0x50] sm:$0xff] %vm704, %v596
      %716 = vst.msk [vmem:[%s233 + $0x58] sm:$0xff] %vm704, %v601
      %717 = vst.msk [vmem:[%s233 + $0x60] sm:$0xff] %vm704, %v606
      %718 = vst.msk [vmem:[%s233 + $0x68] sm:$0xff] %vm704, %v611
      %719 = vst.msk [vmem:[%s233 + $0x70] sm:$0xff] %vm704, %v616
      %720 = vst.msk [vmem:[%s233 + $0x78] sm:$0xff] %vm704, %v621
      %721 = vst.msk [vmem:[%s233 + $0x80] sm:$0xff] %vm704, %v626
      %722 = vst.msk [vmem:[%s233 + $0x88] sm:$0xff] %vm704, %v631
      %723 = vst.msk [vmem:[%s233 + $0x90] sm:$0xff] %vm704, %v636
      %724 = vst.msk [vmem:[%s233 + $0x98] sm:$0xff] %vm704, %v641
      %725 = vst.msk [vmem:[%s233 + $0xa0] sm:$0xff] %vm704, %v646
      %726 = vst.msk [vmem:[%s233 + $0xa8] sm:$0xff] %vm704, %v651
      %727 = vst.msk [vmem:[%s233 + $0xb0] sm:$0xff] %vm704, %v656
      %728 = vst.msk [vmem:[%s233 + $0xb8] sm:$0xff] %vm704, %v661
      %729 = vst.msk [vmem:[%s233 + $0xc0] sm:$0xff] %vm704, %v666
      %730 = vst.msk [vmem:[%s233 + $0xc8] sm:$0xff] %vm704, %v671
      %731 = vst.msk [vmem:[%s233 + $0xd0] sm:$0xff] %vm704, %v676
      %732 = vst.msk [vmem:[%s233 + $0xd8] sm:$0xff] %vm704, %v681
      %733 = vst.msk [vmem:[%s233 + $0xe0] sm:$0xff] %vm704, %v686
      %734 = vst.msk [vmem:[%s233 + $0xe8] sm:$0xff] %vm704, %v691
      %735 = vst.msk [vmem:[%s233 + $0xf0] sm:$0xff] %vm704, %v696
      %736 = vst.msk [vmem:[%s233 + $0xf8] sm:$0xff] %vm704, %v701
      %s737 = smul.u32 %s17, 256
      %v738 = vlaneseq
      %v739 = vshrl.u32 %v738, 7
      %v740 = vadd.s32 %v739, 8
      %v741 = vadd.s32 %v739, 16
      %v742 = vadd.s32 %v739, 24
      %v743 = vadd.s32 %v739, 32
      %v744 = vadd.s32 %v739, 40
      %v745 = vadd.s32 %v739, 48
      %v746 = vadd.s32 %v739, 56
      %v747 = vadd.s32 %v739, 64
      %v748 = vadd.s32 %v739, 72
      %v749 = vadd.s32 %v739, 80
      %v750 = vadd.s32 %v739, 88
      %v751 = vadd.s32 %v739, 96
      %v752 = vadd.s32 %v739, 104
      %v753 = vadd.s32 %v739, 112
      %v754 = vadd.s32 %v739, 120
      %v755 = vadd.s32 %v739, 128
      %v756 = vadd.s32 %v739, 136
      %v757 = vadd.s32 %v739, 144
      %v758 = vadd.s32 %v739, 152
      %v759 = vadd.s32 %v739, 160
      %v760 = vadd.s32 %v739, 168
      %v761 = vadd.s32 %v739, 176
      %v762 = vadd.s32 %v739, 184
      %v763 = vadd.s32 %v739, 192
      %v764 = vadd.s32 %v739, 200
      %v765 = vadd.s32 %v739, 208
      %v766 = vadd.s32 %v739, 216
      %v767 = vadd.s32 %v739, 224
      %v768 = vadd.s32 %v739, 232
      %v769 = vadd.s32 %v739, 240
      %v770 = vadd.s32 %v739, 248
      %v771 = vstv %s737
      %v772 = vadd.s32 %v771, %v739
      %v773 = vadd.s32 %v771, %v740
      %v774 = vadd.s32 %v771, %v741
      %v775 = vadd.s32 %v771, %v742
      %v776 = vadd.s32 %v771, %v743
      %v777 = vadd.s32 %v771, %v744
      %v778 = vadd.s32 %v771, %v745
      %v779 = vadd.s32 %v771, %v746
      %v780 = vadd.s32 %v771, %v747
      %v781 = vadd.s32 %v771, %v748
      %v782 = vadd.s32 %v771, %v749
      %v783 = vadd.s32 %v771, %v750
      %v784 = vadd.s32 %v771, %v751
      %v785 = vadd.s32 %v771, %v752
      %v786 = vadd.s32 %v771, %v753
      %v787 = vadd.s32 %v771, %v754
      %v788 = vadd.s32 %v771, %v755
      %v789 = vadd.s32 %v771, %v756
      %v790 = vadd.s32 %v771, %v757
      %v791 = vadd.s32 %v771, %v758
      %v792 = vadd.s32 %v771, %v759
      %v793 = vadd.s32 %v771, %v760
      %v794 = vadd.s32 %v771, %v761
      %v795 = vadd.s32 %v771, %v762
      %v796 = vadd.s32 %v771, %v763
      %v797 = vadd.s32 %v771, %v764
      %v798 = vadd.s32 %v771, %v765
      %v799 = vadd.s32 %v771, %v766
      %v800 = vadd.s32 %v771, %v767
      %v801 = vadd.s32 %v771, %v768
      %v802 = vadd.s32 %v771, %v769
      %v803 = vadd.s32 %v771, %v770
      %vm804 = vcmp.lt.s32.totalorder %v772, 512
      %vm805 = vcmp.lt.s32.totalorder %v773, 512
      %vm806 = vcmp.lt.s32.totalorder %v774, 512
      %vm807 = vcmp.lt.s32.totalorder %v775, 512
      %vm808 = vcmp.lt.s32.totalorder %v776, 512
      %vm809 = vcmp.lt.s32.totalorder %v777, 512
      %vm810 = vcmp.lt.s32.totalorder %v778, 512
      %vm811 = vcmp.lt.s32.totalorder %v779, 512
      %vm812 = vcmp.lt.s32.totalorder %v780, 512
      %vm813 = vcmp.lt.s32.totalorder %v781, 512
      %vm814 = vcmp.lt.s32.totalorder %v782, 512
      %vm815 = vcmp.lt.s32.totalorder %v783, 512
      %vm816 = vcmp.lt.s32.totalorder %v784, 512
      %vm817 = vcmp.lt.s32.totalorder %v785, 512
      %vm818 = vcmp.lt.s32.totalorder %v786, 512
      %vm819 = vcmp.lt.s32.totalorder %v787, 512
      %vm820 = vcmp.lt.s32.totalorder %v788, 512
      %vm821 = vcmp.lt.s32.totalorder %v789, 512
      %vm822 = vcmp.lt.s32.totalorder %v790, 512
      %vm823 = vcmp.lt.s32.totalorder %v791, 512
      %vm824 = vcmp.lt.s32.totalorder %v792, 512
      %vm825 = vcmp.lt.s32.totalorder %v793, 512
      %vm826 = vcmp.lt.s32.totalorder %v794, 512
      %vm827 = vcmp.lt.s32.totalorder %v795, 512
      %vm828 = vcmp.lt.s32.totalorder %v796, 512
      %vm829 = vcmp.lt.s32.totalorder %v797, 512
      %vm830 = vcmp.lt.s32.totalorder %v798, 512
      %vm831 = vcmp.lt.s32.totalorder %v799, 512
      %vm832 = vcmp.lt.s32.totalorder %v800, 512
      %vm833 = vcmp.lt.s32.totalorder %v801, 512
      %vm834 = vcmp.lt.s32.totalorder %v802, 512
      %vm835 = vcmp.lt.s32.totalorder %v803, 512
      %v836 = vsel %vm804, 1, 0
      %v837 = vsel %vm805, 1, 0
      %v838 = vsel %vm806, 1, 0
      %v839 = vsel %vm807, 1, 0
      %v840 = vsel %vm808, 1, 0
      %v841 = vsel %vm809, 1, 0
      %v842 = vsel %vm810, 1, 0
      %v843 = vsel %vm811, 1, 0
      %v844 = vsel %vm812, 1, 0
      %v845 = vsel %vm813, 1, 0
      %v846 = vsel %vm814, 1, 0
      %v847 = vsel %vm815, 1, 0
      %v848 = vsel %vm816, 1, 0
      %v849 = vsel %vm817, 1, 0
      %v850 = vsel %vm818, 1, 0
      %v851 = vsel %vm819, 1, 0
      %v852 = vsel %vm820, 1, 0
      %v853 = vsel %vm821, 1, 0
      %v854 = vsel %vm822, 1, 0
      %v855 = vsel %vm823, 1, 0
      %v856 = vsel %vm824, 1, 0
      %v857 = vsel %vm825, 1, 0
      %v858 = vsel %vm826, 1, 0
      %v859 = vsel %vm827, 1, 0
      %v860 = vsel %vm828, 1, 0
      %v861 = vsel %vm829, 1, 0
      %v862 = vsel %vm830, 1, 0
      %v863 = vsel %vm831, 1, 0
      %v864 = vsel %vm832, 1, 0
      %v865 = vsel %vm833, 1, 0
      %v866 = vsel %vm834, 1, 0
      %v867 = vsel %vm835, 1, 0
      %vm868 = vcmp.eq.s32.totalorder %v836, 1
      %vm869 = vcmp.eq.s32.totalorder %v837, 1
      %vm870 = vcmp.eq.s32.totalorder %v838, 1
      %vm871 = vcmp.eq.s32.totalorder %v839, 1
      %vm872 = vcmp.eq.s32.totalorder %v840, 1
      %vm873 = vcmp.eq.s32.totalorder %v841, 1
      %vm874 = vcmp.eq.s32.totalorder %v842, 1
      %vm875 = vcmp.eq.s32.totalorder %v843, 1
      %vm876 = vcmp.eq.s32.totalorder %v844, 1
      %vm877 = vcmp.eq.s32.totalorder %v845, 1
      %vm878 = vcmp.eq.s32.totalorder %v846, 1
      %vm879 = vcmp.eq.s32.totalorder %v847, 1
      %vm880 = vcmp.eq.s32.totalorder %v848, 1
      %vm881 = vcmp.eq.s32.totalorder %v849, 1
      %vm882 = vcmp.eq.s32.totalorder %v850, 1
      %vm883 = vcmp.eq.s32.totalorder %v851, 1
      %vm884 = vcmp.eq.s32.totalorder %v852, 1
      %vm885 = vcmp.eq.s32.totalorder %v853, 1
      %vm886 = vcmp.eq.s32.totalorder %v854, 1
      %vm887 = vcmp.eq.s32.totalorder %v855, 1
      %vm888 = vcmp.eq.s32.totalorder %v856, 1
      %vm889 = vcmp.eq.s32.totalorder %v857, 1
      %vm890 = vcmp.eq.s32.totalorder %v858, 1
      %vm891 = vcmp.eq.s32.totalorder %v859, 1
      %vm892 = vcmp.eq.s32.totalorder %v860, 1
      %vm893 = vcmp.eq.s32.totalorder %v861, 1
      %vm894 = vcmp.eq.s32.totalorder %v862, 1
      %vm895 = vcmp.eq.s32.totalorder %v863, 1
      %vm896 = vcmp.eq.s32.totalorder %v864, 1
      %vm897 = vcmp.eq.s32.totalorder %v865, 1
      %vm898 = vcmp.eq.s32.totalorder %v866, 1
      %vm899 = vcmp.eq.s32.totalorder %v867, 1
      %v900 = vsel %vm868, %v546, 0.0
      %v901 = vsel %vm869, %v551, 0.0
      %v902 = vsel %vm870, %v556, 0.0
      %v903 = vsel %vm871, %v561, 0.0
      %v904 = vsel %vm872, %v566, 0.0
      %v905 = vsel %vm873, %v571, 0.0
      %v906 = vsel %vm874, %v576, 0.0
      %v907 = vsel %vm875, %v581, 0.0
      %v908 = vsel %vm876, %v586, 0.0
      %v909 = vsel %vm877, %v591, 0.0
      %v910 = vsel %vm878, %v596, 0.0
      %v911 = vsel %vm879, %v601, 0.0
      %v912 = vsel %vm880, %v606, 0.0
      %v913 = vsel %vm881, %v611, 0.0
      %v914 = vsel %vm882, %v616, 0.0
      %v915 = vsel %vm883, %v621, 0.0
      %v916 = vsel %vm884, %v626, 0.0
      %v917 = vsel %vm885, %v631, 0.0
      %v918 = vsel %vm886, %v636, 0.0
      %v919 = vsel %vm887, %v641, 0.0
      %v920 = vsel %vm888, %v646, 0.0
      %v921 = vsel %vm889, %v651, 0.0
      %v922 = vsel %vm890, %v656, 0.0
      %v923 = vsel %vm891, %v661, 0.0
      %v924 = vsel %vm892, %v666, 0.0
      %v925 = vsel %vm893, %v671, 0.0
      %v926 = vsel %vm894, %v676, 0.0
      %v927 = vsel %vm895, %v681, 0.0
      %v928 = vsel %vm896, %v686, 0.0
      %v929 = vsel %vm897, %v691, 0.0
      %v930 = vsel %vm898, %v696, 0.0
      %v931 = vsel %vm899, %v701, 0.0
      %v932 = vsel %vm704, %v900, 0.0
      %v933 = vsel %vm704, %v901, 0.0
      %v934 = vadd.f32 %v932, %v933
      %v935 = vsel %vm704, %v902, 0.0
      %v936 = vadd.f32 %v934, %v935
      %v937 = vsel %vm704, %v903, 0.0
      %v938 = vadd.f32 %v936, %v937
      %v939 = vsel %vm704, %v904, 0.0
      %v940 = vadd.f32 %v938, %v939
      %v941 = vsel %vm704, %v905, 0.0
      %v942 = vadd.f32 %v940, %v941
      %v943 = vsel %vm704, %v906, 0.0
      %v944 = vadd.f32 %v942, %v943
      %v945 = vsel %vm704, %v907, 0.0
      %v946 = vadd.f32 %v944, %v945
      %v947 = vsel %vm704, %v908, 0.0
      %v948 = vadd.f32 %v946, %v947
      %v949 = vsel %vm704, %v909, 0.0
      %v950 = vadd.f32 %v948, %v949
      %v951 = vsel %vm704, %v910, 0.0
      %v952 = vadd.f32 %v950, %v951
      %v953 = vsel %vm704, %v911, 0.0
      %v954 = vadd.f32 %v952, %v953
      %v955 = vsel %vm704, %v912, 0.0
      %v956 = vadd.f32 %v954, %v955
      %v957 = vsel %vm704, %v913, 0.0
      %v958 = vadd.f32 %v956, %v957
      %v959 = vsel %vm704, %v914, 0.0
      %v960 = vadd.f32 %v958, %v959
      %v961 = vsel %vm704, %v915, 0.0
      %v962 = vadd.f32 %v960, %v961
      %v963 = vsel %vm704, %v916, 0.0
      %v964 = vadd.f32 %v962, %v963
      %v965 = vsel %vm704, %v917, 0.0
      %v966 = vadd.f32 %v964, %v965
      %v967 = vsel %vm704, %v918, 0.0
      %v968 = vadd.f32 %v966, %v967
      %v969 = vsel %vm704, %v919, 0.0
      %v970 = vadd.f32 %v968, %v969
      %v971 = vsel %vm704, %v920, 0.0
      %v972 = vadd.f32 %v970, %v971
      %v973 = vsel %vm704, %v921, 0.0
      %v974 = vadd.f32 %v972, %v973
      %v975 = vsel %vm704, %v922, 0.0
      %v976 = vadd.f32 %v974, %v975
      %v977 = vsel %vm704, %v923, 0.0
      %v978 = vadd.f32 %v976, %v977
      %v979 = vsel %vm704, %v924, 0.0
      %v980 = vadd.f32 %v978, %v979
      %v981 = vsel %vm704, %v925, 0.0
      %v982 = vadd.f32 %v980, %v981
      %v983 = vsel %vm704, %v926, 0.0
      %v984 = vadd.f32 %v982, %v983
      %v985 = vsel %vm704, %v927, 0.0
      %v986 = vadd.f32 %v984, %v985
      %v987 = vsel %vm704, %v928, 0.0
      %v988 = vadd.f32 %v986, %v987
      %v989 = vsel %vm704, %v929, 0.0
      %v990 = vadd.f32 %v988, %v989
      %v991 = vsel %vm704, %v930, 0.0
      %v992 = vadd.f32 %v990, %v991
      %v993 = vsel %vm704, %v931, 0.0
      %v994 = vadd.f32 %v992, %v993
      %v995 = vrot.slane %v994, 4
      %v996 = vadd.f32 %v994, %v995
      %v997 = vrot.slane %v996, 2
      %v998 = vadd.f32 %v996, %v997
      %v999 = vrot.slane %v998, 1
      %v1000 = vadd.f32 %v998, %v999
      %v1001 = vmul.f32 %v900, %v900
      %v1002 = vmul.f32 %v901, %v901
      %v1003 = vmul.f32 %v902, %v902
      %v1004 = vmul.f32 %v903, %v903
      %v1005 = vmul.f32 %v904, %v904
      %v1006 = vmul.f32 %v905, %v905
      %v1007 = vmul.f32 %v906, %v906
      %v1008 = vmul.f32 %v907, %v907
      %v1009 = vmul.f32 %v908, %v908
      %v1010 = vmul.f32 %v909, %v909
      %v1011 = vmul.f32 %v910, %v910
      %v1012 = vmul.f32 %v911, %v911
      %v1013 = vmul.f32 %v912, %v912
      %v1014 = vmul.f32 %v913, %v913
      %v1015 = vmul.f32 %v914, %v914
      %v1016 = vmul.f32 %v915, %v915
      %v1017 = vmul.f32 %v916, %v916
      %v1018 = vmul.f32 %v917, %v917
      %v1019 = vmul.f32 %v918, %v918
      %v1020 = vmul.f32 %v919, %v919
      %v1021 = vmul.f32 %v920, %v920
      %v1022 = vmul.f32 %v921, %v921
      %v1023 = vmul.f32 %v922, %v922
      %v1024 = vmul.f32 %v923, %v923
      %v1025 = vmul.f32 %v924, %v924
      %v1026 = vmul.f32 %v925, %v925
      %v1027 = vmul.f32 %v926, %v926
      %v1028 = vmul.f32 %v927, %v927
      %v1029 = vmul.f32 %v928, %v928
      %v1030 = vmul.f32 %v929, %v929
      %v1031 = vmul.f32 %v930, %v930
      %v1032 = vmul.f32 %v931, %v931
      %v1033 = vsel %vm704, %v1001, 0.0
      %v1034 = vsel %vm704, %v1002, 0.0
      %v1035 = vadd.f32 %v1033, %v1034
      %v1036 = vsel %vm704, %v1003, 0.0
      %v1037 = vadd.f32 %v1035, %v1036
      %v1038 = vsel %vm704, %v1004, 0.0
      %v1039 = vadd.f32 %v1037, %v1038
      %v1040 = vsel %vm704, %v1005, 0.0
      %v1041 = vadd.f32 %v1039, %v1040
      %v1042 = vsel %vm704, %v1006, 0.0
      %v1043 = vadd.f32 %v1041, %v1042
      %v1044 = vsel %vm704, %v1007, 0.0
      %v1045 = vadd.f32 %v1043, %v1044
      %v1046 = vsel %vm704, %v1008, 0.0
      %v1047 = vadd.f32 %v1045, %v1046
      %v1048 = vsel %vm704, %v1009, 0.0
      %v1049 = vadd.f32 %v1047, %v1048
      %v1050 = vsel %vm704, %v1010, 0.0
      %v1051 = vadd.f32 %v1049, %v1050
      %v1052 = vsel %vm704, %v1011, 0.0
      %v1053 = vadd.f32 %v1051, %v1052
      %v1054 = vsel %vm704, %v1012, 0.0
      %v1055 = vadd.f32 %v1053, %v1054
      %v1056 = vsel %vm704, %v1013, 0.0
      %v1057 = vadd.f32 %v1055, %v1056
      %v1058 = vsel %vm704, %v1014, 0.0
      %v1059 = vadd.f32 %v1057, %v1058
      %v1060 = vsel %vm704, %v1015, 0.0
      %v1061 = vadd.f32 %v1059, %v1060
      %v1062 = vsel %vm704, %v1016, 0.0
      %v1063 = vadd.f32 %v1061, %v1062
      %v1064 = vsel %vm704, %v1017, 0.0
      %v1065 = vadd.f32 %v1063, %v1064
      %v1066 = vsel %vm704, %v1018, 0.0
      %v1067 = vadd.f32 %v1065, %v1066
      %v1068 = vsel %vm704, %v1019, 0.0
      %v1069 = vadd.f32 %v1067, %v1068
      %v1070 = vsel %vm704, %v1020, 0.0
      %v1071 = vadd.f32 %v1069, %v1070
      %v1072 = vsel %vm704, %v1021, 0.0
      %v1073 = vadd.f32 %v1071, %v1072
      %v1074 = vsel %vm704, %v1022, 0.0
      %v1075 = vadd.f32 %v1073, %v1074
      %v1076 = vsel %vm704, %v1023, 0.0
      %v1077 = vadd.f32 %v1075, %v1076
      %v1078 = vsel %vm704, %v1024, 0.0
      %v1079 = vadd.f32 %v1077, %v1078
      %v1080 = vsel %vm704, %v1025, 0.0
      %v1081 = vadd.f32 %v1079, %v1080
      %v1082 = vsel %vm704, %v1026, 0.0
      %v1083 = vadd.f32 %v1081, %v1082
      %v1084 = vsel %vm704, %v1027, 0.0
      %v1085 = vadd.f32 %v1083, %v1084
      %v1086 = vsel %vm704, %v1028, 0.0
      %v1087 = vadd.f32 %v1085, %v1086
      %v1088 = vsel %vm704, %v1029, 0.0
      %v1089 = vadd.f32 %v1087, %v1088
      %v1090 = vsel %vm704, %v1030, 0.0
      %v1091 = vadd.f32 %v1089, %v1090
      %v1092 = vsel %vm704, %v1031, 0.0
      %v1093 = vadd.f32 %v1091, %v1092
      %v1094 = vsel %vm704, %v1032, 0.0
      %v1095 = vadd.f32 %v1093, %v1094
      %v1096 = vrot.slane %v1095, 4
      %v1097 = vadd.f32 %v1095, %v1096
      %v1098 = vrot.slane %v1097, 2
      %v1099 = vadd.f32 %v1097, %v1098
      %v1100 = vrot.slane %v1099, 1
      %v1101 = vadd.f32 %v1099, %v1100
      %vm1102 = vcmask 1040384
      %v1103 = vsel %vm1102, %v1000, %v1101
      %vm1104 = vcmask 123904
      %1105 = vst.msk [vmem:[%s238] sm:$0x3] %vm1104, %v1103
      %s1106 = smul.u32 32, %s17
      %p1107 = scmp.lt.s32.totalorder %s1106, 63
      %s1108 = scalar_select %p1107, %s1106, 63
      %s1109 = smul.addr %s1108, 8
      %s1110 = scalar_lea.vmem %s4, %s1109
      %p1111 = scmp.lt.s32.totalorder %s17, 1
      %s1112 = scalar_select %p1111, %s17, 1
      %s1113 = smul.addr %s1112, 2
      %s1114 = scalar_lea.vmem %s5, %s1113
      // Predicated region
      $region37: #{residual_layer_forward.7} parent=35 // pred_check
        %p1115 = pneg %p124
      $region38: #{residual_layer_forward.7} parent=35 // pred_check_branch
        %1117 = sbr.rel (%p1115) target = $region40
      $region39: #{residual_layer_forward.7} parent=35 // pred_region
        %s1118 = smul.u32 32, %s17
      $region40: #{residual_layer_forward.7} parent=35 // pred_fallthru
        _
      // Predicated region
      $region41: #{residual_layer_forward.7} parent=35 // pred_check
        %p1119 = pneg %p150
      $region42: #{residual_layer_forward.7} parent=35 // pred_check_branch
        %1121 = sbr.rel (%p1119) target = $region44
      $region43: #{residual_layer_forward.7} parent=35 // pred_region
        _
      $region44: #{residual_layer_forward.7} parent=35 // pred_fallthru
        _
    $region36: #{residual_layer_forward.7} parent=5 // pred_fallthru
      _
    %p1122 = scmp.le.s32.totalorder 2, %s12
    // Predicated region
    $region45: #{residual_layer_forward.7} parent=5 // pred_check
      %p1123 = pneg %p1122
    $region46: #{residual_layer_forward.7} parent=5 // pred_check_branch
      %1125 = sbr.rel (%p1123) target = $region48
    $region47: #{residual_layer_forward.7} parent=5 // pred_region
      %s1126 = ssub.s32 %s12, 2
      // Predicated region
      $region49: #{residual_layer_forward.7} parent=47 // pred_check
        %p1127 = pneg %p130
      $region50: #{residual_layer_forward.7} parent=47 // pred_check_branch
        %1129 = sbr.rel (%p1127) target = $region52
      $region51: #{residual_layer_forward.7} parent=47 // pred_region
        %s1130 = smul.u32 32, %s18
        %p1131 = scmp.lt.s32.totalorder %s1130, 63
        %s1132 = scalar_select %p1131, %s1130, 63
        %s1133 = smul.addr %s1132, 8
        %s1134 = scalar_lea.vmem %s4, %s1133
      $region52: #{residual_layer_forward.7} parent=47 // pred_fallthru
        _
      // Predicated region
      $region53: #{residual_layer_forward.7} parent=47 // pred_check
        %p1135 = pneg %p156
      $region54: #{residual_layer_forward.7} parent=47 // pred_check_branch
        %1137 = sbr.rel (%p1135) target = $region56
      $region55: #{residual_layer_forward.7} parent=47 // pred_region
        %p1138 = scmp.lt.s32.totalorder %s18, 1
        %s1139 = scalar_select %p1138, %s18, 1
        %s1140 = smul.addr %s1139, 2
        %s1141 = scalar_lea.vmem %s5, %s1140
      $region56: #{residual_layer_forward.7} parent=47 // pred_fallthru
        _
    $region48: #{residual_layer_forward.7} parent=5 // pred_fallthru
      _
  $region6: #{residual_layer_forward.7} parent=0 // loop_footer
    %s16 = sadd.s32 1, %s12
  $region7: #{residual_layer_forward.7} parent=0 // loop_footer_branch
    %11 = sbr.rel target = $region3
  $region8: #{residual_layer_forward.7} parent=0 // loop_exit
    _

</llo_original>
